<compile_context>
chip_gen: v7x
topology: tpu7x:2x2x1
jax: 0.10.0
libtpu: 0.0.40
codegen_flags: <defaults>
</compile_context>

<pallas_src>
import numpy as np

import jax
import jax.numpy as jnp
from jax.experimental import pallas as pl
from jax.experimental.pallas import tpu as pltpu


# Network geometry (synthetic 'ucihar'-style config).
CHANNELS = (8, 16, 16, 16)
NUM_CLASSES = 6
H_IN, W_IN = 30, 32            # raw input spatial size (H replicate-padded to 32)
# (width W, flattened size P = H*W) of the INPUT of each layer in the [C, H*W] layout.
LAYER_W = (32, 16, 8, 4)
LAYER_P = (1024, 256, 64, 16)


# -----------------------------------------------------------------------------
# Fused Pallas kernel: conv1..4 (+BN+ReLU+pool) + classifier, single invocation.
# -----------------------------------------------------------------------------
def _conv_bn_relu_pool_block(x_b, w_img, p_img, w_all, scale, bias, wmask, pool_sel):
    """conv3x3(p1) -> BN(eval) -> ReLU -> maxpool2x2(s2):  [Cin, P] -> [Cout, P//4].

    x_b:      [Cin, P]      channels on sublanes, row-major flattened spatial (p=i*W+j).
    w_all:    [Cout, 9*Cin] conv weight, row order (kh, kw, cin).
    scale:    [Cout, 1]     folded BatchNorm scale.
    bias:     [Cout, 1]     folded BatchNorm bias.
    wmask:    [2, P]        wmask[0] = (j > 0), wmask[1] = (j < W-1) column masks.
    pool_sel: [P, P//4]     0/1 matrix selecting lanes p = 2i*W + 2j -> q = i*(W//2)+j.
    """
    f32 = jnp.float32
    cin = x_b.shape[0]
    cout = w_all.shape[0]

    # Zero-pad the flattened spatial axis so every 3x3 tap is a static lane slice;
    # the pad also realises the conv's zero padding in the row (H) direction.
    zpad = jnp.zeros((cin, w_img + 1), f32)
    xz = jnp.concatenate([zpad, x_b, zpad], axis=1)              # [Cin, P + 2W + 2]

    taps = []
    for dh in (-1, 0, 1):
        for dw in (-1, 0, 1):
            d = dh * w_img + dw
            t = xz[:, w_img + 1 + d:w_img + 1 + d + p_img]       # = x[p + d] (0 off-rows)
            if dw == -1:
                t = t * wmask[0:1, :]                            # needs j - 1 >= 0
            elif dw == 1:
                t = t * wmask[1:2, :]                            # needs j + 1 <  W
            taps.append(t)
    patches = jnp.concatenate(taps, axis=0)                      # [9*Cin, P]

    # Conv as one MXU matmul, then eval-mode BN affine + ReLU (order preserved).
    y = jnp.dot(w_all, patches, preferred_element_type=f32)      # [Cout, P]
    y = jnp.maximum(y * scale + bias, 0.0)

    # 2x2/2 max pool: combine the 2x2 window via shifted maxes, then compact the kept
    # lanes (p = 2i*W + 2j) with a tiny constant 0/1 selection matmul.
    yz = jnp.concatenate([y, jnp.zeros((cout, w_img + 2), f32)], axis=1)
    m = y
    for d in (1, w_img, w_img + 1):
        m = jnp.maximum(m, yz[:, d:d + p_img])
    return jnp.dot(m, pool_sel, preferred_element_type=f32)      # [Cout, P // 4]


def _base_cnn_kernel(planes_ref,
                     w1_ref, s1_ref, b1_ref,
                     w2_ref, s2_ref, b2_ref,
                     w3_ref, s3_ref, b3_ref,
                     w4_ref, s4_ref, b4_ref,
                     wm2_ref, wm3_ref, wm4_ref,
                     sel2_ref, sel3_ref, sel4_ref,
                     fcw_ref, fcb_ref,
                     out_ref):
    f32 = jnp.float32
    batch = planes_ref.shape[0]

    w1, s1, b1 = w1_ref[...], s1_ref[...], b1_ref[...]
    wm2 = wm2_ref[...]                       # [2, 256] column masks on the 16-wide grid
    fcw, fcb = fcw_ref[...], fcb_ref[...]

    logits = []
    for b in range(batch):                   # batch folded into straight-line code
        planes = planes_ref[b]               # [4, 256] 2x2-parity planes of the 32x32 input

        # ---- layer 1: polyphase conv3x3 (Cin=1 -> skip MXU, VPU MACs) + BN/ReLU/pool.
        zpad = jnp.zeros((1, 18), f32)
        padded = [jnp.concatenate([zpad, planes[k:k + 1, :], zpad], axis=1)   # [1, 292]
                  for k in range(4)]

        # Distinct source taps, keyed by absolute offsets (th, tw) = (a+dh, b2+dw).
        # Source pixel x[2I+th, 2J+tw] -> parity plane (th&1, tw&1), shifted by
        # (th>>1, tw>>1) on its 16x16 grid; column validity is exactly wm2.
        l1_taps = {}
        for th in (-1, 0, 1, 2):
            pp, u = th & 1, th >> 1
            for tw in (-1, 0, 1, 2):
                qp, v = tw & 1, tw >> 1
                start = 18 + u * 16 + v
                t = padded[pp * 2 + qp][:, start:start + 256]    # [1, 256]
                if v == -1:
                    t = t * wm2[0:1, :]
                elif v == 1:
                    t = t * wm2[1:2, :]
                l1_taps[(th, tw)] = t

        pooled1 = None
        for a in (0, 1):                     # 2x2 pool-window row offset
            for b2 in (0, 1):                # 2x2 pool-window col offset
                acc = jnp.zeros((CHANNELS[0], 256), f32)
                for dh in (-1, 0, 1):
                    for dw in (-1, 0, 1):
                        idx = (dh + 1) * 3 + (dw + 1)
                        acc = acc + w1[:, idx:idx + 1] * l1_taps[(a + dh, b2 + dw)]
                y = jnp.maximum(acc * s1 + b1, 0.0)              # BN(eval) + ReLU
                pooled1 = y if pooled1 is None else jnp.maximum(pooled1, y)
        # pooled1: [8, 256] == layer-2 input in [C, H*W] layout (16x16 grid).

        # ---- layers 2..4: conv as one MXU matmul each, everything stays in VMEM.
        x2 = _conv_bn_relu_pool_block(pooled1, LAYER_W[1], LAYER_P[1],
                                      w2_ref[...], s2_ref[...], b2_ref[...],
                                      wm2, sel2_ref[...])             # [16, 64]
        x3 = _conv_bn_relu_pool_block(x2, LAYER_W[2], LAYER_P[2],
                                      w3_ref[...], s3_ref[...], b3_ref[...],
                                      wm3_ref[...], sel3_ref[...])    # [16, 16]
        x4 = _conv_bn_relu_pool_block(x3, LAYER_W[3], LAYER_P[3],
                                      w4_ref[...], s4_ref[...], b4_ref[...],
                                      wm4_ref[...], sel4_ref[...])    # [16, 4]

        # ---- classifier: x.view(B, -1) flattens in (C, H, W) order; with
        # fcw[c, p*6+n] = W_fc[c*4+p, n] the flatten is free: contract the 4 spatial
        # positions with broadcast MACs, then reduce over channels (sublanes).
        acc_fc = jnp.zeros((CHANNELS[3], NUM_CLASSES), f32)
        for p in range(4):
            acc_fc = acc_fc + x4[:, p:p + 1] * fcw[:, p * NUM_CLASSES:(p + 1) * NUM_CLASSES]
        logits.append(jnp.sum(acc_fc, axis=0, keepdims=True) + fcb)   # [1, 6]

    out_ref[...] = jnp.concatenate(logits, axis=0)                    # [B, 6]


# -----------------------------------------------------------------------------
# Wrapper: one pallas_call for the whole forward pass.
# -----------------------------------------------------------------------------
def _vmem_spec():
    return pl.BlockSpec(memory_space=pltpu.MemorySpace.VMEM)


@jax.jit
def base_cnn_forward(x_nchw, params):
    """Mirrors BaseCNN.forward for dataset 'ucihar' (use_adativeavg=False)."""
    B = x_nchw.shape[0]
    # F.pad(x, (0, 0, 1, 1), mode='replicate'): pad H by 1 on each side (replicate).
    x = jnp.pad(x_nchw, ((0, 0), (0, 0), (1, 1), (0, 0)), mode="edge")   # [B,1,32,32]
    # Polyphase reorder of the padded image into its four 2x2-parity planes
    # planes[b, 2*ph+pw, i*16+j] = x[b, 0, 2i+ph, 2j+pw]  (pure layout, no duplication).
    planes = (x.reshape(B, 16, 2, 16, 2)
               .transpose(0, 2, 4, 1, 3)
               .reshape(B, 4, 256)
               .astype(jnp.float32))

    args = (planes,
            params["w1"], params["s1"], params["b1"],
            params["w2"], params["s2"], params["b2"],
            params["w3"], params["s3"], params["b3"],
            params["w4"], params["s4"], params["b4"],
            params["wm2"], params["wm3"], params["wm4"],
            params["sel2"], params["sel3"], params["sel4"],
            params["fcw"], params["fcb"])

    logits = pl.pallas_call(
        _base_cnn_kernel,
        out_shape=jax.ShapeDtypeStruct((B, NUM_CLASSES), jnp.float32),
        in_specs=[_vmem_spec() for _ in args],
        out_specs=_vmem_spec(),
    )(*args)
    return {"output": logits}


# -----------------------------------------------------------------------------
# Constant helpers + deterministic synthetic parameters.
# -----------------------------------------------------------------------------
def _pool_select(w_img, p_img):
    """0/1 matrix [P, P//4] compacting lanes p = 2i*W + 2j -> q = i*(W//2) + j."""
    wo, q_len = w_img // 2, p_img // 4
    q = np.arange(q_len)
    src = 2 * (q // wo) * w_img + 2 * (q % wo)
    sel = np.zeros((p_img, q_len), np.float32)
    sel[src, q] = 1.0
    return jnp.asarray(sel)


def _col_masks(w_img, p_img):
    """[2, P]: row 0 = (j > 0) for dw=-1 taps, row 1 = (j < W-1) for dw=+1 taps."""
    j = np.arange(p_img) % w_img
    return jnp.asarray(np.stack([(j > 0), (j < w_img - 1)]).astype(np.float32))


def init_params(key):
    """Deterministic synthetic parameters (not a checkpoint load), pre-laid-out for the
    kernel: conv w -> [Cout, 9*Cin] (tap-major rows), BN folded to scale/bias [Cout,1]."""
    # TODO(synk): PyTorch BatchNorm2d in training mode uses batch statistics; here we
    # fold eval-mode running stats (mean=0, var=1) into a per-channel scale/bias.
    eps = 1e-5
    params = {}
    cin = 1
    for li, cout in enumerate(CHANNELS, start=1):
        key, kw, kg, kb = jax.random.split(key, 4)
        w = jax.random.normal(kw, (3, 3, cin, cout), jnp.float32) / np.sqrt(9.0 * cin)
        gamma = 1.0 + 0.1 * jax.random.normal(kg, (cout,), jnp.float32)
        beta = 0.1 * jax.random.normal(kb, (cout,), jnp.float32)
        running_mean = jnp.zeros((cout,), jnp.float32)
        running_var = jnp.ones((cout,), jnp.float32)
        scale = gamma / jnp.sqrt(running_var + eps)
        bias = beta - running_mean * scale
        params[f"w{li}"] = jnp.transpose(w, (3, 0, 1, 2)).reshape(cout, 9 * cin)
        params[f"s{li}"] = scale.reshape(cout, 1)
        params[f"b{li}"] = bias.reshape(cout, 1)
        cin = cout

    key, kfw, kfb = jax.random.split(key, 3)
    flat = CHANNELS[-1] * 2 * 2                       # 16 * 2 * 2 = 64 features
    fc_w = jax.random.normal(kfw, (flat, NUM_CLASSES), jnp.float32) / np.sqrt(float(flat))
    fc_b = 0.1 * jax.random.normal(kfb, (1, NUM_CLASSES), jnp.float32)
    # fcw[c, p*6+n] = fc_w[c*4 + p, n]  (matches the (C, H, W) flatten order).
    params["fcw"] = fc_w.reshape(CHANNELS[-1], 4 * NUM_CLASSES)
    params["fcb"] = fc_b

    # Constant helpers: column-boundary masks + pool lane-compaction matrices.
    params["wm2"] = _col_masks(LAYER_W[1], LAYER_P[1])   # also reused by layer-1 taps
    params["wm3"] = _col_masks(LAYER_W[2], LAYER_P[2])
    params["wm4"] = _col_masks(LAYER_W[3], LAYER_P[3])
    params["sel2"] = _pool_select(LAYER_W[1], LAYER_P[1])
    params["sel3"] = _pool_select(LAYER_W[2], LAYER_P[2])
    params["sel4"] = _pool_select(LAYER_W[3], LAYER_P[3])
    return params


# -----------------------------------------------------------------------------
if __name__ == "__main__":
    key = jax.random.PRNGKey(0)
    key, kx = jax.random.split(key)

    # Small 'ucihar'-style input: [B, 1, H, W] = [2, 1, 30, 32] (NCHW).
    B = 2
    x = jax.random.normal(kx, (B, 1, H_IN, W_IN), jnp.float32)

    params = init_params(key)
    res = base_cnn_forward(x, params)
    out = jax.block_until_ready(res["output"])
    assert out.shape == (B, NUM_CLASSES)
    assert bool(jnp.all(jnp.isfinite(out)))
    print("KERNEL_OK")
</pallas_src>

<mosaic_0001>
module attributes {stable_mosaic.version = 11 : i64} {
  func.func @_base_cnn_kernel(%arg0: memref<2x4x256xf32, #tpu.memory_space<vmem>>, %arg1: memref<8x9xf32, #tpu.memory_space<vmem>>, %arg2: memref<8x1xf32, #tpu.memory_space<vmem>>, %arg3: memref<8x1xf32, #tpu.memory_space<vmem>>, %arg4: memref<16x72xf32, #tpu.memory_space<vmem>>, %arg5: memref<16x1xf32, #tpu.memory_space<vmem>>, %arg6: memref<16x1xf32, #tpu.memory_space<vmem>>, %arg7: memref<16x144xf32, #tpu.memory_space<vmem>>, %arg8: memref<16x1xf32, #tpu.memory_space<vmem>>, %arg9: memref<16x1xf32, #tpu.memory_space<vmem>>, %arg10: memref<16x144xf32, #tpu.memory_space<vmem>>, %arg11: memref<16x1xf32, #tpu.memory_space<vmem>>, %arg12: memref<16x1xf32, #tpu.memory_space<vmem>>, %arg13: memref<2x256xf32, #tpu.memory_space<vmem>>, %arg14: memref<2x64xf32, #tpu.memory_space<vmem>>, %arg15: memref<2x16xf32, #tpu.memory_space<vmem>>, %arg16: memref<256x64xf32, #tpu.memory_space<vmem>>, %arg17: memref<64x16xf32, #tpu.memory_space<vmem>>, %arg18: memref<16x4xf32, #tpu.memory_space<vmem>>, %arg19: memref<16x24xf32, #tpu.memory_space<vmem>>, %arg20: memref<1x6xf32, #tpu.memory_space<vmem>>, %arg21: memref<2x6xf32, #tpu.memory_space<vmem>>) attributes {dimension_semantics = [], scalar_prefetch = 0 : i64, scratch_operands = 0 : i64, tpu.core_type = #tpu.core_type<tc>} {
    %c0 = arith.constant 0 : index
    %c0_0 = arith.constant 0 : index
    %0 = vector.load %arg1[%c0, %c0_0] : memref<8x9xf32, #tpu.memory_space<vmem>>, vector<8x9xf32>
    %c0_1 = arith.constant 0 : index
    %c0_2 = arith.constant 0 : index
    %1 = vector.load %arg2[%c0_1, %c0_2] : memref<8x1xf32, #tpu.memory_space<vmem>>, vector<8x1xf32>
    %c0_3 = arith.constant 0 : index
    %c0_4 = arith.constant 0 : index
    %2 = vector.load %arg3[%c0_3, %c0_4] : memref<8x1xf32, #tpu.memory_space<vmem>>, vector<8x1xf32>
    %c0_5 = arith.constant 0 : index
    %c0_6 = arith.constant 0 : index
    %3 = vector.load %arg13[%c0_5, %c0_6] : memref<2x256xf32, #tpu.memory_space<vmem>>, vector<2x256xf32>
    %c0_7 = arith.constant 0 : index
    %c0_8 = arith.constant 0 : index
    %4 = vector.load %arg19[%c0_7, %c0_8] : memref<16x24xf32, #tpu.memory_space<vmem>>, vector<16x24xf32>
    %c0_9 = arith.constant 0 : index
    %c0_10 = arith.constant 0 : index
    %5 = vector.load %arg20[%c0_9, %c0_10] : memref<1x6xf32, #tpu.memory_space<vmem>>, vector<1x6xf32>
    %c0_11 = arith.constant 0 : index
    %c0_12 = arith.constant 0 : index
    %c0_13 = arith.constant 0 : index
    %6 = vector.load %arg0[%c0_11, %c0_12, %c0_13] : memref<2x4x256xf32, #tpu.memory_space<vmem>>, vector<1x4x256xf32>
    %7 = vector.shape_cast %6 : vector<1x4x256xf32> to vector<4x256xf32>
    %cst = arith.constant 0.000000e+00 : f32
    %8 = vector.broadcast %cst : f32 to vector<1x18xf32>
    %9 = vector.extract_strided_slice %7 {offsets = [0, 0], sizes = [1, 256], strides = [1, 1]} : vector<4x256xf32> to vector<1x256xf32>
    %10 = tpu.concatenate %8, %9, %8 in 1 : vector<1x18xf32>, vector<1x256xf32>, vector<1x18xf32> -> vector<1x292xf32>
    %11 = vector.extract_strided_slice %7 {offsets = [1, 0], sizes = [1, 256], strides = [1, 1]} : vector<4x256xf32> to vector<1x256xf32>
    %12 = tpu.concatenate %8, %11, %8 in 1 : vector<1x18xf32>, vector<1x256xf32>, vector<1x18xf32> -> vector<1x292xf32>
    %13 = vector.extract_strided_slice %7 {offsets = [2, 0], sizes = [1, 256], strides = [1, 1]} : vector<4x256xf32> to vector<1x256xf32>
    %14 = tpu.concatenate %8, %13, %8 in 1 : vector<1x18xf32>, vector<1x256xf32>, vector<1x18xf32> -> vector<1x292xf32>
    %15 = vector.extract_strided_slice %7 {offsets = [3, 0], sizes = [1, 256], strides = [1, 1]} : vector<4x256xf32> to vector<1x256xf32>
    %16 = tpu.concatenate %8, %15, %8 in 1 : vector<1x18xf32>, vector<1x256xf32>, vector<1x18xf32> -> vector<1x292xf32>
    %17 = vector.extract_strided_slice %16 {offsets = [0, 1], sizes = [1, 256], strides = [1, 1]} : vector<1x292xf32> to vector<1x256xf32>
    %18 = vector.extract_strided_slice %3 {offsets = [0, 0], sizes = [1, 256], strides = [1, 1]} : vector<2x256xf32> to vector<1x256xf32>
    %19 = arith.mulf %17, %18 : vector<1x256xf32>
    %20 = vector.extract_strided_slice %14 {offsets = [0, 2], sizes = [1, 256], strides = [1, 1]} : vector<1x292xf32> to vector<1x256xf32>
    %21 = vector.extract_strided_slice %16 {offsets = [0, 2], sizes = [1, 256], strides = [1, 1]} : vector<1x292xf32> to vector<1x256xf32>
    %22 = vector.extract_strided_slice %14 {offsets = [0, 3], sizes = [1, 256], strides = [1, 1]} : vector<1x292xf32> to vector<1x256xf32>
    %23 = vector.extract_strided_slice %3 {offsets = [1, 0], sizes = [1, 256], strides = [1, 1]} : vector<2x256xf32> to vector<1x256xf32>
    %24 = arith.mulf %22, %23 : vector<1x256xf32>
    %25 = vector.extract_strided_slice %12 {offsets = [0, 17], sizes = [1, 256], strides = [1, 1]} : vector<1x292xf32> to vector<1x256xf32>
    %26 = vector.extract_strided_slice %3 {offsets = [0, 0], sizes = [1, 256], strides = [1, 1]} : vector<2x256xf32> to vector<1x256xf32>
    %27 = arith.mulf %25, %26 : vector<1x256xf32>
    %28 = vector.extract_strided_slice %10 {offsets = [0, 18], sizes = [1, 256], strides = [1, 1]} : vector<1x292xf32> to vector<1x256xf32>
    %29 = vector.extract_strided_slice %12 {offsets = [0, 18], sizes = [1, 256], strides = [1, 1]} : vector<1x292xf32> to vector<1x256xf32>
    %30 = vector.extract_strided_slice %10 {offsets = [0, 19], sizes = [1, 256], strides = [1, 1]} : vector<1x292xf32> to vector<1x256xf32>
    %31 = vector.extract_strided_slice %3 {offsets = [1, 0], sizes = [1, 256], strides = [1, 1]} : vector<2x256xf32> to vector<1x256xf32>
    %32 = arith.mulf %30, %31 : vector<1x256xf32>
    %33 = vector.extract_strided_slice %16 {offsets = [0, 17], sizes = [1, 256], strides = [1, 1]} : vector<1x292xf32> to vector<1x256xf32>
    %34 = vector.extract_strided_slice %3 {offsets = [0, 0], sizes = [1, 256], strides = [1, 1]} : vector<2x256xf32> to vector<1x256xf32>
    %35 = arith.mulf %33, %34 : vector<1x256xf32>
    %36 = vector.extract_strided_slice %14 {offsets = [0, 18], sizes = [1, 256], strides = [1, 1]} : vector<1x292xf32> to vector<1x256xf32>
    %37 = vector.extract_strided_slice %16 {offsets = [0, 18], sizes = [1, 256], strides = [1, 1]} : vector<1x292xf32> to vector<1x256xf32>
    %38 = vector.extract_strided_slice %14 {offsets = [0, 19], sizes = [1, 256], strides = [1, 1]} : vector<1x292xf32> to vector<1x256xf32>
    %39 = vector.extract_strided_slice %3 {offsets = [1, 0], sizes = [1, 256], strides = [1, 1]} : vector<2x256xf32> to vector<1x256xf32>
    %40 = arith.mulf %38, %39 : vector<1x256xf32>
    %41 = vector.extract_strided_slice %12 {offsets = [0, 33], sizes = [1, 256], strides = [1, 1]} : vector<1x292xf32> to vector<1x256xf32>
    %42 = vector.extract_strided_slice %3 {offsets = [0, 0], sizes = [1, 256], strides = [1, 1]} : vector<2x256xf32> to vector<1x256xf32>
    %43 = arith.mulf %41, %42 : vector<1x256xf32>
    %44 = vector.extract_strided_slice %10 {offsets = [0, 34], sizes = [1, 256], strides = [1, 1]} : vector<1x292xf32> to vector<1x256xf32>
    %45 = vector.extract_strided_slice %12 {offsets = [0, 34], sizes = [1, 256], strides = [1, 1]} : vector<1x292xf32> to vector<1x256xf32>
    %46 = vector.extract_strided_slice %10 {offsets = [0, 35], sizes = [1, 256], strides = [1, 1]} : vector<1x292xf32> to vector<1x256xf32>
    %47 = vector.extract_strided_slice %3 {offsets = [1, 0], sizes = [1, 256], strides = [1, 1]} : vector<2x256xf32> to vector<1x256xf32>
    %48 = arith.mulf %46, %47 : vector<1x256xf32>
    %cst_14 = arith.constant 0.000000e+00 : f32
    %49 = vector.broadcast %cst_14 : f32 to vector<8x256xf32>
    %50 = vector.extract_strided_slice %0 {offsets = [0, 0], sizes = [8, 1], strides = [1, 1]} : vector<8x9xf32> to vector<8x1xf32>
    %51 = vector.broadcast %50 : vector<8x1xf32> to vector<8x256xf32>
    %52 = vector.broadcast %19 : vector<1x256xf32> to vector<8x256xf32>
    %53 = arith.mulf %51, %52 : vector<8x256xf32>
    %54 = arith.addf %49, %53 : vector<8x256xf32>
    %55 = vector.extract_strided_slice %0 {offsets = [0, 1], sizes = [8, 1], strides = [1, 1]} : vector<8x9xf32> to vector<8x1xf32>
    %56 = vector.broadcast %55 : vector<8x1xf32> to vector<8x256xf32>
    %57 = vector.broadcast %20 : vector<1x256xf32> to vector<8x256xf32>
    %58 = arith.mulf %56, %57 : vector<8x256xf32>
    %59 = arith.addf %54, %58 : vector<8x256xf32>
    %60 = vector.extract_strided_slice %0 {offsets = [0, 2], sizes = [8, 1], strides = [1, 1]} : vector<8x9xf32> to vector<8x1xf32>
    %61 = vector.broadcast %60 : vector<8x1xf32> to vector<8x256xf32>
    %62 = vector.broadcast %21 : vector<1x256xf32> to vector<8x256xf32>
    %63 = arith.mulf %61, %62 : vector<8x256xf32>
    %64 = arith.addf %59, %63 : vector<8x256xf32>
    %65 = vector.extract_strided_slice %0 {offsets = [0, 3], sizes = [8, 1], strides = [1, 1]} : vector<8x9xf32> to vector<8x1xf32>
    %66 = vector.broadcast %65 : vector<8x1xf32> to vector<8x256xf32>
    %67 = vector.broadcast %27 : vector<1x256xf32> to vector<8x256xf32>
    %68 = arith.mulf %66, %67 : vector<8x256xf32>
    %69 = arith.addf %64, %68 : vector<8x256xf32>
    %70 = vector.extract_strided_slice %0 {offsets = [0, 4], sizes = [8, 1], strides = [1, 1]} : vector<8x9xf32> to vector<8x1xf32>
    %71 = vector.broadcast %70 : vector<8x1xf32> to vector<8x256xf32>
    %72 = vector.broadcast %28 : vector<1x256xf32> to vector<8x256xf32>
    %73 = arith.mulf %71, %72 : vector<8x256xf32>
    %74 = arith.addf %69, %73 : vector<8x256xf32>
    %75 = vector.extract_strided_slice %0 {offsets = [0, 5], sizes = [8, 1], strides = [1, 1]} : vector<8x9xf32> to vector<8x1xf32>
    %76 = vector.broadcast %75 : vector<8x1xf32> to vector<8x256xf32>
    %77 = vector.broadcast %29 : vector<1x256xf32> to vector<8x256xf32>
    %78 = arith.mulf %76, %77 : vector<8x256xf32>
    %79 = arith.addf %74, %78 : vector<8x256xf32>
    %80 = vector.extract_strided_slice %0 {offsets = [0, 6], sizes = [8, 1], strides = [1, 1]} : vector<8x9xf32> to vector<8x1xf32>
    %81 = vector.broadcast %80 : vector<8x1xf32> to vector<8x256xf32>
    %82 = vector.broadcast %35 : vector<1x256xf32> to vector<8x256xf32>
    %83 = arith.mulf %81, %82 : vector<8x256xf32>
    %84 = arith.addf %79, %83 : vector<8x256xf32>
    %85 = vector.extract_strided_slice %0 {offsets = [0, 7], sizes = [8, 1], strides = [1, 1]} : vector<8x9xf32> to vector<8x1xf32>
    %86 = vector.broadcast %85 : vector<8x1xf32> to vector<8x256xf32>
    %87 = vector.broadcast %36 : vector<1x256xf32> to vector<8x256xf32>
    %88 = arith.mulf %86, %87 : vector<8x256xf32>
    %89 = arith.addf %84, %88 : vector<8x256xf32>
    %90 = vector.extract_strided_slice %0 {offsets = [0, 8], sizes = [8, 1], strides = [1, 1]} : vector<8x9xf32> to vector<8x1xf32>
    %91 = vector.broadcast %90 : vector<8x1xf32> to vector<8x256xf32>
    %92 = vector.broadcast %37 : vector<1x256xf32> to vector<8x256xf32>
    %93 = arith.mulf %91, %92 : vector<8x256xf32>
    %94 = arith.addf %89, %93 : vector<8x256xf32>
    %95 = vector.broadcast %1 : vector<8x1xf32> to vector<8x256xf32>
    %96 = arith.mulf %94, %95 : vector<8x256xf32>
    %97 = vector.broadcast %2 : vector<8x1xf32> to vector<8x256xf32>
    %98 = arith.addf %96, %97 : vector<8x256xf32>
    %cst_15 = arith.constant 0.000000e+00 : f32
    %99 = vector.broadcast %cst_15 : f32 to vector<8x256xf32>
    %100 = arith.maximumf %98, %99 : vector<8x256xf32>
    %cst_16 = arith.constant 0.000000e+00 : f32
    %101 = vector.broadcast %cst_16 : f32 to vector<8x256xf32>
    %102 = vector.extract_strided_slice %0 {offsets = [0, 0], sizes = [8, 1], strides = [1, 1]} : vector<8x9xf32> to vector<8x1xf32>
    %103 = vector.broadcast %102 : vector<8x1xf32> to vector<8x256xf32>
    %104 = vector.broadcast %20 : vector<1x256xf32> to vector<8x256xf32>
    %105 = arith.mulf %103, %104 : vector<8x256xf32>
    %106 = arith.addf %101, %105 : vector<8x256xf32>
    %107 = vector.extract_strided_slice %0 {offsets = [0, 1], sizes = [8, 1], strides = [1, 1]} : vector<8x9xf32> to vector<8x1xf32>
    %108 = vector.broadcast %107 : vector<8x1xf32> to vector<8x256xf32>
    %109 = vector.broadcast %21 : vector<1x256xf32> to vector<8x256xf32>
    %110 = arith.mulf %108, %109 : vector<8x256xf32>
    %111 = arith.addf %106, %110 : vector<8x256xf32>
    %112 = vector.extract_strided_slice %0 {offsets = [0, 2], sizes = [8, 1], strides = [1, 1]} : vector<8x9xf32> to vector<8x1xf32>
    %113 = vector.broadcast %112 : vector<8x1xf32> to vector<8x256xf32>
    %114 = vector.broadcast %24 : vector<1x256xf32> to vector<8x256xf32>
    %115 = arith.mulf %113, %114 : vector<8x256xf32>
    %116 = arith.addf %111, %115 : vector<8x256xf32>
    %117 = vector.extract_strided_slice %0 {offsets = [0, 3], sizes = [8, 1], strides = [1, 1]} : vector<8x9xf32> to vector<8x1xf32>
    %118 = vector.broadcast %117 : vector<8x1xf32> to vector<8x256xf32>
    %119 = vector.broadcast %28 : vector<1x256xf32> to vector<8x256xf32>
    %120 = arith.mulf %118, %119 : vector<8x256xf32>
    %121 = arith.addf %116, %120 : vector<8x256xf32>
    %122 = vector.extract_strided_slice %0 {offsets = [0, 4], sizes = [8, 1], strides = [1, 1]} : vector<8x9xf32> to vector<8x1xf32>
    %123 = vector.broadcast %122 : vector<8x1xf32> to vector<8x256xf32>
    %124 = vector.broadcast %29 : vector<1x256xf32> to vector<8x256xf32>
    %125 = arith.mulf %123, %124 : vector<8x256xf32>
    %126 = arith.addf %121, %125 : vector<8x256xf32>
    %127 = vector.extract_strided_slice %0 {offsets = [0, 5], sizes = [8, 1], strides = [1, 1]} : vector<8x9xf32> to vector<8x1xf32>
    %128 = vector.broadcast %127 : vector<8x1xf32> to vector<8x256xf32>
    %129 = vector.broadcast %32 : vector<1x256xf32> to vector<8x256xf32>
    %130 = arith.mulf %128, %129 : vector<8x256xf32>
    %131 = arith.addf %126, %130 : vector<8x256xf32>
    %132 = vector.extract_strided_slice %0 {offsets = [0, 6], sizes = [8, 1], strides = [1, 1]} : vector<8x9xf32> to vector<8x1xf32>
    %133 = vector.broadcast %132 : vector<8x1xf32> to vector<8x256xf32>
    %134 = vector.broadcast %36 : vector<1x256xf32> to vector<8x256xf32>
    %135 = arith.mulf %133, %134 : vector<8x256xf32>
    %136 = arith.addf %131, %135 : vector<8x256xf32>
    %137 = vector.extract_strided_slice %0 {offsets = [0, 7], sizes = [8, 1], strides = [1, 1]} : vector<8x9xf32> to vector<8x1xf32>
    %138 = vector.broadcast %137 : vector<8x1xf32> to vector<8x256xf32>
    %139 = vector.broadcast %37 : vector<1x256xf32> to vector<8x256xf32>
    %140 = arith.mulf %138, %139 : vector<8x256xf32>
    %141 = arith.addf %136, %140 : vector<8x256xf32>
    %142 = vector.extract_strided_slice %0 {offsets = [0, 8], sizes = [8, 1], strides = [1, 1]} : vector<8x9xf32> to vector<8x1xf32>
    %143 = vector.broadcast %142 : vector<8x1xf32> to vector<8x256xf32>
    %144 = vector.broadcast %40 : vector<1x256xf32> to vector<8x256xf32>
    %145 = arith.mulf %143, %144 : vector<8x256xf32>
    %146 = arith.addf %141, %145 : vector<8x256xf32>
    %147 = vector.broadcast %1 : vector<8x1xf32> to vector<8x256xf32>
    %148 = arith.mulf %146, %147 : vector<8x256xf32>
    %149 = vector.broadcast %2 : vector<8x1xf32> to vector<8x256xf32>
    %150 = arith.addf %148, %149 : vector<8x256xf32>
    %cst_17 = arith.constant 0.000000e+00 : f32
    %151 = vector.broadcast %cst_17 : f32 to vector<8x256xf32>
    %152 = arith.maximumf %150, %151 : vector<8x256xf32>
    %153 = arith.maximumf %100, %152 : vector<8x256xf32>
    %cst_18 = arith.constant 0.000000e+00 : f32
    %154 = vector.broadcast %cst_18 : f32 to vector<8x256xf32>
    %155 = vector.extract_strided_slice %0 {offsets = [0, 0], sizes = [8, 1], strides = [1, 1]} : vector<8x9xf32> to vector<8x1xf32>
    %156 = vector.broadcast %155 : vector<8x1xf32> to vector<8x256xf32>
    %157 = vector.broadcast %27 : vector<1x256xf32> to vector<8x256xf32>
    %158 = arith.mulf %156, %157 : vector<8x256xf32>
    %159 = arith.addf %154, %158 : vector<8x256xf32>
    %160 = vector.extract_strided_slice %0 {offsets = [0, 1], sizes = [8, 1], strides = [1, 1]} : vector<8x9xf32> to vector<8x1xf32>
    %161 = vector.broadcast %160 : vector<8x1xf32> to vector<8x256xf32>
    %162 = vector.broadcast %28 : vector<1x256xf32> to vector<8x256xf32>
    %163 = arith.mulf %161, %162 : vector<8x256xf32>
    %164 = arith.addf %159, %163 : vector<8x256xf32>
    %165 = vector.extract_strided_slice %0 {offsets = [0, 2], sizes = [8, 1], strides = [1, 1]} : vector<8x9xf32> to vector<8x1xf32>
    %166 = vector.broadcast %165 : vector<8x1xf32> to vector<8x256xf32>
    %167 = vector.broadcast %29 : vector<1x256xf32> to vector<8x256xf32>
    %168 = arith.mulf %166, %167 : vector<8x256xf32>
    %169 = arith.addf %164, %168 : vector<8x256xf32>
    %170 = vector.extract_strided_slice %0 {offsets = [0, 3], sizes = [8, 1], strides = [1, 1]} : vector<8x9xf32> to vector<8x1xf32>
    %171 = vector.broadcast %170 : vector<8x1xf32> to vector<8x256xf32>
    %172 = vector.broadcast %35 : vector<1x256xf32> to vector<8x256xf32>
    %173 = arith.mulf %171, %172 : vector<8x256xf32>
    %174 = arith.addf %169, %173 : vector<8x256xf32>
    %175 = vector.extract_strided_slice %0 {offsets = [0, 4], sizes = [8, 1], strides = [1, 1]} : vector<8x9xf32> to vector<8x1xf32>
    %176 = vector.broadcast %175 : vector<8x1xf32> to vector<8x256xf32>
    %177 = vector.broadcast %36 : vector<1x256xf32> to vector<8x256xf32>
    %178 = arith.mulf %176, %177 : vector<8x256xf32>
    %179 = arith.addf %174, %178 : vector<8x256xf32>
    %180 = vector.extract_strided_slice %0 {offsets = [0, 5], sizes = [8, 1], strides = [1, 1]} : vector<8x9xf32> to vector<8x1xf32>
    %181 = vector.broadcast %180 : vector<8x1xf32> to vector<8x256xf32>
    %182 = vector.broadcast %37 : vector<1x256xf32> to vector<8x256xf32>
    %183 = arith.mulf %181, %182 : vector<8x256xf32>
    %184 = arith.addf %179, %183 : vector<8x256xf32>
    %185 = vector.extract_strided_slice %0 {offsets = [0, 6], sizes = [8, 1], strides = [1, 1]} : vector<8x9xf32> to vector<8x1xf32>
    %186 = vector.broadcast %185 : vector<8x1xf32> to vector<8x256xf32>
    %187 = vector.broadcast %43 : vector<1x256xf32> to vector<8x256xf32>
    %188 = arith.mulf %186, %187 : vector<8x256xf32>
    %189 = arith.addf %184, %188 : vector<8x256xf32>
    %190 = vector.extract_strided_slice %0 {offsets = [0, 7], sizes = [8, 1], strides = [1, 1]} : vector<8x9xf32> to vector<8x1xf32>
    %191 = vector.broadcast %190 : vector<8x1xf32> to vector<8x256xf32>
    %192 = vector.broadcast %44 : vector<1x256xf32> to vector<8x256xf32>
    %193 = arith.mulf %191, %192 : vector<8x256xf32>
    %194 = arith.addf %189, %193 : vector<8x256xf32>
    %195 = vector.extract_strided_slice %0 {offsets = [0, 8], sizes = [8, 1], strides = [1, 1]} : vector<8x9xf32> to vector<8x1xf32>
    %196 = vector.broadcast %195 : vector<8x1xf32> to vector<8x256xf32>
    %197 = vector.broadcast %45 : vector<1x256xf32> to vector<8x256xf32>
    %198 = arith.mulf %196, %197 : vector<8x256xf32>
    %199 = arith.addf %194, %198 : vector<8x256xf32>
    %200 = vector.broadcast %1 : vector<8x1xf32> to vector<8x256xf32>
    %201 = arith.mulf %199, %200 : vector<8x256xf32>
    %202 = vector.broadcast %2 : vector<8x1xf32> to vector<8x256xf32>
    %203 = arith.addf %201, %202 : vector<8x256xf32>
    %cst_19 = arith.constant 0.000000e+00 : f32
    %204 = vector.broadcast %cst_19 : f32 to vector<8x256xf32>
    %205 = arith.maximumf %203, %204 : vector<8x256xf32>
    %206 = arith.maximumf %153, %205 : vector<8x256xf32>
    %cst_20 = arith.constant 0.000000e+00 : f32
    %207 = vector.broadcast %cst_20 : f32 to vector<8x256xf32>
    %208 = vector.extract_strided_slice %0 {offsets = [0, 0], sizes = [8, 1], strides = [1, 1]} : vector<8x9xf32> to vector<8x1xf32>
    %209 = vector.broadcast %208 : vector<8x1xf32> to vector<8x256xf32>
    %210 = vector.broadcast %28 : vector<1x256xf32> to vector<8x256xf32>
    %211 = arith.mulf %209, %210 : vector<8x256xf32>
    %212 = arith.addf %207, %211 : vector<8x256xf32>
    %213 = vector.extract_strided_slice %0 {offsets = [0, 1], sizes = [8, 1], strides = [1, 1]} : vector<8x9xf32> to vector<8x1xf32>
    %214 = vector.broadcast %213 : vector<8x1xf32> to vector<8x256xf32>
    %215 = vector.broadcast %29 : vector<1x256xf32> to vector<8x256xf32>
    %216 = arith.mulf %214, %215 : vector<8x256xf32>
    %217 = arith.addf %212, %216 : vector<8x256xf32>
    %218 = vector.extract_strided_slice %0 {offsets = [0, 2], sizes = [8, 1], strides = [1, 1]} : vector<8x9xf32> to vector<8x1xf32>
    %219 = vector.broadcast %218 : vector<8x1xf32> to vector<8x256xf32>
    %220 = vector.broadcast %32 : vector<1x256xf32> to vector<8x256xf32>
    %221 = arith.mulf %219, %220 : vector<8x256xf32>
    %222 = arith.addf %217, %221 : vector<8x256xf32>
    %223 = vector.extract_strided_slice %0 {offsets = [0, 3], sizes = [8, 1], strides = [1, 1]} : vector<8x9xf32> to vector<8x1xf32>
    %224 = vector.broadcast %223 : vector<8x1xf32> to vector<8x256xf32>
    %225 = vector.broadcast %36 : vector<1x256xf32> to vector<8x256xf32>
    %226 = arith.mulf %224, %225 : vector<8x256xf32>
    %227 = arith.addf %222, %226 : vector<8x256xf32>
    %228 = vector.extract_strided_slice %0 {offsets = [0, 4], sizes = [8, 1], strides = [1, 1]} : vector<8x9xf32> to vector<8x1xf32>
    %229 = vector.broadcast %228 : vector<8x1xf32> to vector<8x256xf32>
    %230 = vector.broadcast %37 : vector<1x256xf32> to vector<8x256xf32>
    %231 = arith.mulf %229, %230 : vector<8x256xf32>
    %232 = arith.addf %227, %231 : vector<8x256xf32>
    %233 = vector.extract_strided_slice %0 {offsets = [0, 5], sizes = [8, 1], strides = [1, 1]} : vector<8x9xf32> to vector<8x1xf32>
    %234 = vector.broadcast %233 : vector<8x1xf32> to vector<8x256xf32>
    %235 = vector.broadcast %40 : vector<1x256xf32> to vector<8x256xf32>
    %236 = arith.mulf %234, %235 : vector<8x256xf32>
    %237 = arith.addf %232, %236 : vector<8x256xf32>
    %238 = vector.extract_strided_slice %0 {offsets = [0, 6], sizes = [8, 1], strides = [1, 1]} : vector<8x9xf32> to vector<8x1xf32>
    %239 = vector.broadcast %238 : vector<8x1xf32> to vector<8x256xf32>
    %240 = vector.broadcast %44 : vector<1x256xf32> to vector<8x256xf32>
    %241 = arith.mulf %239, %240 : vector<8x256xf32>
    %242 = arith.addf %237, %241 : vector<8x256xf32>
    %243 = vector.extract_strided_slice %0 {offsets = [0, 7], sizes = [8, 1], strides = [1, 1]} : vector<8x9xf32> to vector<8x1xf32>
    %244 = vector.broadcast %243 : vector<8x1xf32> to vector<8x256xf32>
    %245 = vector.broadcast %45 : vector<1x256xf32> to vector<8x256xf32>
    %246 = arith.mulf %244, %245 : vector<8x256xf32>
    %247 = arith.addf %242, %246 : vector<8x256xf32>
    %248 = vector.extract_strided_slice %0 {offsets = [0, 8], sizes = [8, 1], strides = [1, 1]} : vector<8x9xf32> to vector<8x1xf32>
    %249 = vector.broadcast %248 : vector<8x1xf32> to vector<8x256xf32>
    %250 = vector.broadcast %48 : vector<1x256xf32> to vector<8x256xf32>
    %251 = arith.mulf %249, %250 : vector<8x256xf32>
    %252 = arith.addf %247, %251 : vector<8x256xf32>
    %253 = vector.broadcast %1 : vector<8x1xf32> to vector<8x256xf32>
    %254 = arith.mulf %252, %253 : vector<8x256xf32>
    %255 = vector.broadcast %2 : vector<8x1xf32> to vector<8x256xf32>
    %256 = arith.addf %254, %255 : vector<8x256xf32>
    %cst_21 = arith.constant 0.000000e+00 : f32
    %257 = vector.broadcast %cst_21 : f32 to vector<8x256xf32>
    %258 = arith.maximumf %256, %257 : vector<8x256xf32>
    %259 = arith.maximumf %206, %258 : vector<8x256xf32>
    %c0_22 = arith.constant 0 : index
    %c0_23 = arith.constant 0 : index
    %260 = vector.load %arg4[%c0_22, %c0_23] : memref<16x72xf32, #tpu.memory_space<vmem>>, vector<16x72xf32>
    %c0_24 = arith.constant 0 : index
    %c0_25 = arith.constant 0 : index
    %261 = vector.load %arg5[%c0_24, %c0_25] : memref<16x1xf32, #tpu.memory_space<vmem>>, vector<16x1xf32>
    %c0_26 = arith.constant 0 : index
    %c0_27 = arith.constant 0 : index
    %262 = vector.load %arg6[%c0_26, %c0_27] : memref<16x1xf32, #tpu.memory_space<vmem>>, vector<16x1xf32>
    %c0_28 = arith.constant 0 : index
    %c0_29 = arith.constant 0 : index
    %263 = vector.load %arg16[%c0_28, %c0_29] : memref<256x64xf32, #tpu.memory_space<vmem>>, vector<256x64xf32>
    %cst_30 = arith.constant 0.000000e+00 : f32
    %264 = vector.broadcast %cst_30 : f32 to vector<8x17xf32>
    %265 = tpu.concatenate %264, %259, %264 in 1 : vector<8x17xf32>, vector<8x256xf32>, vector<8x17xf32> -> vector<8x290xf32>
    %266 = vector.extract_strided_slice %265 {offsets = [0, 0], sizes = [8, 256], strides = [1, 1]} : vector<8x290xf32> to vector<8x256xf32>
    %267 = vector.extract_strided_slice %3 {offsets = [0, 0], sizes = [1, 256], strides = [1, 1]} : vector<2x256xf32> to vector<1x256xf32>
    %268 = vector.broadcast %267 : vector<1x256xf32> to vector<8x256xf32>
    %269 = arith.mulf %266, %268 : vector<8x256xf32>
    %270 = vector.extract_strided_slice %265 {offsets = [0, 1], sizes = [8, 256], strides = [1, 1]} : vector<8x290xf32> to vector<8x256xf32>
    %271 = vector.extract_strided_slice %265 {offsets = [0, 2], sizes = [8, 256], strides = [1, 1]} : vector<8x290xf32> to vector<8x256xf32>
    %272 = vector.extract_strided_slice %3 {offsets = [1, 0], sizes = [1, 256], strides = [1, 1]} : vector<2x256xf32> to vector<1x256xf32>
    %273 = vector.broadcast %272 : vector<1x256xf32> to vector<8x256xf32>
    %274 = arith.mulf %271, %273 : vector<8x256xf32>
    %275 = vector.extract_strided_slice %265 {offsets = [0, 16], sizes = [8, 256], strides = [1, 1]} : vector<8x290xf32> to vector<8x256xf32>
    %276 = vector.extract_strided_slice %3 {offsets = [0, 0], sizes = [1, 256], strides = [1, 1]} : vector<2x256xf32> to vector<1x256xf32>
    %277 = vector.broadcast %276 : vector<1x256xf32> to vector<8x256xf32>
    %278 = arith.mulf %275, %277 : vector<8x256xf32>
    %279 = vector.extract_strided_slice %265 {offsets = [0, 17], sizes = [8, 256], strides = [1, 1]} : vector<8x290xf32> to vector<8x256xf32>
    %280 = vector.extract_strided_slice %265 {offsets = [0, 18], sizes = [8, 256], strides = [1, 1]} : vector<8x290xf32> to vector<8x256xf32>
    %281 = vector.extract_strided_slice %3 {offsets = [1, 0], sizes = [1, 256], strides = [1, 1]} : vector<2x256xf32> to vector<1x256xf32>
    %282 = vector.broadcast %281 : vector<1x256xf32> to vector<8x256xf32>
    %283 = arith.mulf %280, %282 : vector<8x256xf32>
    %284 = vector.extract_strided_slice %265 {offsets = [0, 32], sizes = [8, 256], strides = [1, 1]} : vector<8x290xf32> to vector<8x256xf32>
    %285 = vector.extract_strided_slice %3 {offsets = [0, 0], sizes = [1, 256], strides = [1, 1]} : vector<2x256xf32> to vector<1x256xf32>
    %286 = vector.broadcast %285 : vector<1x256xf32> to vector<8x256xf32>
    %287 = arith.mulf %284, %286 : vector<8x256xf32>
    %288 = vector.extract_strided_slice %265 {offsets = [0, 33], sizes = [8, 256], strides = [1, 1]} : vector<8x290xf32> to vector<8x256xf32>
    %289 = vector.extract_strided_slice %265 {offsets = [0, 34], sizes = [8, 256], strides = [1, 1]} : vector<8x290xf32> to vector<8x256xf32>
    %290 = vector.extract_strided_slice %3 {offsets = [1, 0], sizes = [1, 256], strides = [1, 1]} : vector<2x256xf32> to vector<1x256xf32>
    %291 = vector.broadcast %290 : vector<1x256xf32> to vector<8x256xf32>
    %292 = arith.mulf %289, %291 : vector<8x256xf32>
    %293 = tpu.concatenate %269, %270, %274, %278, %279, %283, %287, %288, %292 in 0 : vector<8x256xf32>, vector<8x256xf32>, vector<8x256xf32>, vector<8x256xf32>, vector<8x256xf32>, vector<8x256xf32>, vector<8x256xf32>, vector<8x256xf32>, vector<8x256xf32> -> vector<72x256xf32>
    %cst_31 = arith.constant dense<0.000000e+00> : vector<16x256xf32>
    %294 = tpu.matmul %260, %293, %cst_31 {dimension_numbers = #tpu.dot_dimension_numbers<[1], [0], [0], [1], [0, 0, 1, 1], [], []>} : vector<16x72xf32>, vector<72x256xf32>, vector<16x256xf32> -> vector<16x256xf32>
    %295 = vector.broadcast %261 : vector<16x1xf32> to vector<16x256xf32>
    %296 = arith.mulf %294, %295 : vector<16x256xf32>
    %297 = vector.broadcast %262 : vector<16x1xf32> to vector<16x256xf32>
    %298 = arith.addf %296, %297 : vector<16x256xf32>
    %cst_32 = arith.constant 0.000000e+00 : f32
    %299 = vector.broadcast %cst_32 : f32 to vector<16x256xf32>
    %300 = arith.maximumf %298, %299 : vector<16x256xf32>
    %cst_33 = arith.constant 0.000000e+00 : f32
    %301 = vector.broadcast %cst_33 : f32 to vector<16x18xf32>
    %302 = tpu.concatenate %300, %301 in 1 : vector<16x256xf32>, vector<16x18xf32> -> vector<16x274xf32>
    %303 = vector.extract_strided_slice %302 {offsets = [0, 1], sizes = [16, 256], strides = [1, 1]} : vector<16x274xf32> to vector<16x256xf32>
    %304 = arith.maximumf %300, %303 : vector<16x256xf32>
    %305 = vector.extract_strided_slice %302 {offsets = [0, 16], sizes = [16, 256], strides = [1, 1]} : vector<16x274xf32> to vector<16x256xf32>
    %306 = arith.maximumf %304, %305 : vector<16x256xf32>
    %307 = vector.extract_strided_slice %302 {offsets = [0, 17], sizes = [16, 256], strides = [1, 1]} : vector<16x274xf32> to vector<16x256xf32>
    %308 = arith.maximumf %306, %307 : vector<16x256xf32>
    %cst_34 = arith.constant dense<0.000000e+00> : vector<16x64xf32>
    %309 = tpu.matmul %308, %263, %cst_34 {dimension_numbers = #tpu.dot_dimension_numbers<[1], [0], [0], [1], [0, 0, 1, 1], [], []>} : vector<16x256xf32>, vector<256x64xf32>, vector<16x64xf32> -> vector<16x64xf32>
    %c0_35 = arith.constant 0 : index
    %c0_36 = arith.constant 0 : index
    %310 = vector.load %arg7[%c0_35, %c0_36] : memref<16x144xf32, #tpu.memory_space<vmem>>, vector<16x144xf32>
    %c0_37 = arith.constant 0 : index
    %c0_38 = arith.constant 0 : index
    %311 = vector.load %arg8[%c0_37, %c0_38] : memref<16x1xf32, #tpu.memory_space<vmem>>, vector<16x1xf32>
    %c0_39 = arith.constant 0 : index
    %c0_40 = arith.constant 0 : index
    %312 = vector.load %arg9[%c0_39, %c0_40] : memref<16x1xf32, #tpu.memory_space<vmem>>, vector<16x1xf32>
    %c0_41 = arith.constant 0 : index
    %c0_42 = arith.constant 0 : index
    %313 = vector.load %arg14[%c0_41, %c0_42] : memref<2x64xf32, #tpu.memory_space<vmem>>, vector<2x64xf32>
    %c0_43 = arith.constant 0 : index
    %c0_44 = arith.constant 0 : index
    %314 = vector.load %arg17[%c0_43, %c0_44] : memref<64x16xf32, #tpu.memory_space<vmem>>, vector<64x16xf32>
    %cst_45 = arith.constant 0.000000e+00 : f32
    %315 = vector.broadcast %cst_45 : f32 to vector<16x9xf32>
    %316 = tpu.concatenate %315, %309, %315 in 1 : vector<16x9xf32>, vector<16x64xf32>, vector<16x9xf32> -> vector<16x82xf32>
    %317 = vector.extract_strided_slice %316 {offsets = [0, 0], sizes = [16, 64], strides = [1, 1]} : vector<16x82xf32> to vector<16x64xf32>
    %318 = vector.extract_strided_slice %313 {offsets = [0, 0], sizes = [1, 64], strides = [1, 1]} : vector<2x64xf32> to vector<1x64xf32>
    %319 = vector.broadcast %318 : vector<1x64xf32> to vector<16x64xf32>
    %320 = arith.mulf %317, %319 : vector<16x64xf32>
    %321 = vector.extract_strided_slice %316 {offsets = [0, 1], sizes = [16, 64], strides = [1, 1]} : vector<16x82xf32> to vector<16x64xf32>
    %322 = vector.extract_strided_slice %316 {offsets = [0, 2], sizes = [16, 64], strides = [1, 1]} : vector<16x82xf32> to vector<16x64xf32>
    %323 = vector.extract_strided_slice %313 {offsets = [1, 0], sizes = [1, 64], strides = [1, 1]} : vector<2x64xf32> to vector<1x64xf32>
    %324 = vector.broadcast %323 : vector<1x64xf32> to vector<16x64xf32>
    %325 = arith.mulf %322, %324 : vector<16x64xf32>
    %326 = vector.extract_strided_slice %316 {offsets = [0, 8], sizes = [16, 64], strides = [1, 1]} : vector<16x82xf32> to vector<16x64xf32>
    %327 = vector.extract_strided_slice %313 {offsets = [0, 0], sizes = [1, 64], strides = [1, 1]} : vector<2x64xf32> to vector<1x64xf32>
    %328 = vector.broadcast %327 : vector<1x64xf32> to vector<16x64xf32>
    %329 = arith.mulf %326, %328 : vector<16x64xf32>
    %330 = vector.extract_strided_slice %316 {offsets = [0, 9], sizes = [16, 64], strides = [1, 1]} : vector<16x82xf32> to vector<16x64xf32>
    %331 = vector.extract_strided_slice %316 {offsets = [0, 10], sizes = [16, 64], strides = [1, 1]} : vector<16x82xf32> to vector<16x64xf32>
    %332 = vector.extract_strided_slice %313 {offsets = [1, 0], sizes = [1, 64], strides = [1, 1]} : vector<2x64xf32> to vector<1x64xf32>
    %333 = vector.broadcast %332 : vector<1x64xf32> to vector<16x64xf32>
    %334 = arith.mulf %331, %333 : vector<16x64xf32>
    %335 = vector.extract_strided_slice %316 {offsets = [0, 16], sizes = [16, 64], strides = [1, 1]} : vector<16x82xf32> to vector<16x64xf32>
    %336 = vector.extract_strided_slice %313 {offsets = [0, 0], sizes = [1, 64], strides = [1, 1]} : vector<2x64xf32> to vector<1x64xf32>
    %337 = vector.broadcast %336 : vector<1x64xf32> to vector<16x64xf32>
    %338 = arith.mulf %335, %337 : vector<16x64xf32>
    %339 = vector.extract_strided_slice %316 {offsets = [0, 17], sizes = [16, 64], strides = [1, 1]} : vector<16x82xf32> to vector<16x64xf32>
    %340 = vector.extract_strided_slice %316 {offsets = [0, 18], sizes = [16, 64], strides = [1, 1]} : vector<16x82xf32> to vector<16x64xf32>
    %341 = vector.extract_strided_slice %313 {offsets = [1, 0], sizes = [1, 64], strides = [1, 1]} : vector<2x64xf32> to vector<1x64xf32>
    %342 = vector.broadcast %341 : vector<1x64xf32> to vector<16x64xf32>
    %343 = arith.mulf %340, %342 : vector<16x64xf32>
    %344 = tpu.concatenate %320, %321, %325, %329, %330, %334, %338, %339, %343 in 0 : vector<16x64xf32>, vector<16x64xf32>, vector<16x64xf32>, vector<16x64xf32>, vector<16x64xf32>, vector<16x64xf32>, vector<16x64xf32>, vector<16x64xf32>, vector<16x64xf32> -> vector<144x64xf32>
    %cst_46 = arith.constant dense<0.000000e+00> : vector<16x64xf32>
    %345 = tpu.matmul %310, %344, %cst_46 {dimension_numbers = #tpu.dot_dimension_numbers<[1], [0], [0], [1], [0, 0, 1, 1], [], []>} : vector<16x144xf32>, vector<144x64xf32>, vector<16x64xf32> -> vector<16x64xf32>
    %346 = vector.broadcast %311 : vector<16x1xf32> to vector<16x64xf32>
    %347 = arith.mulf %345, %346 : vector<16x64xf32>
    %348 = vector.broadcast %312 : vector<16x1xf32> to vector<16x64xf32>
    %349 = arith.addf %347, %348 : vector<16x64xf32>
    %cst_47 = arith.constant 0.000000e+00 : f32
    %350 = vector.broadcast %cst_47 : f32 to vector<16x64xf32>
    %351 = arith.maximumf %349, %350 : vector<16x64xf32>
    %cst_48 = arith.constant 0.000000e+00 : f32
    %352 = vector.broadcast %cst_48 : f32 to vector<16x10xf32>
    %353 = tpu.concatenate %351, %352 in 1 : vector<16x64xf32>, vector<16x10xf32> -> vector<16x74xf32>
    %354 = vector.extract_strided_slice %353 {offsets = [0, 1], sizes = [16, 64], strides = [1, 1]} : vector<16x74xf32> to vector<16x64xf32>
    %355 = arith.maximumf %351, %354 : vector<16x64xf32>
    %356 = vector.extract_strided_slice %353 {offsets = [0, 8], sizes = [16, 64], strides = [1, 1]} : vector<16x74xf32> to vector<16x64xf32>
    %357 = arith.maximumf %355, %356 : vector<16x64xf32>
    %358 = vector.extract_strided_slice %353 {offsets = [0, 9], sizes = [16, 64], strides = [1, 1]} : vector<16x74xf32> to vector<16x64xf32>
    %359 = arith.maximumf %357, %358 : vector<16x64xf32>
    %cst_49 = arith.constant dense<0.000000e+00> : vector<16x16xf32>
    %360 = tpu.matmul %359, %314, %cst_49 {dimension_numbers = #tpu.dot_dimension_numbers<[1], [0], [0], [1], [0, 0, 1, 1], [], []>} : vector<16x64xf32>, vector<64x16xf32>, vector<16x16xf32> -> vector<16x16xf32>
    %c0_50 = arith.constant 0 : index
    %c0_51 = arith.constant 0 : index
    %361 = vector.load %arg10[%c0_50, %c0_51] : memref<16x144xf32, #tpu.memory_space<vmem>>, vector<16x144xf32>
    %c0_52 = arith.constant 0 : index
    %c0_53 = arith.constant 0 : index
    %362 = vector.load %arg11[%c0_52, %c0_53] : memref<16x1xf32, #tpu.memory_space<vmem>>, vector<16x1xf32>
    %c0_54 = arith.constant 0 : index
    %c0_55 = arith.constant 0 : index
    %363 = vector.load %arg12[%c0_54, %c0_55] : memref<16x1xf32, #tpu.memory_space<vmem>>, vector<16x1xf32>
    %c0_56 = arith.constant 0 : index
    %c0_57 = arith.constant 0 : index
    %364 = vector.load %arg15[%c0_56, %c0_57] : memref<2x16xf32, #tpu.memory_space<vmem>>, vector<2x16xf32>
    %c0_58 = arith.constant 0 : index
    %c0_59 = arith.constant 0 : index
    %365 = vector.load %arg18[%c0_58, %c0_59] : memref<16x4xf32, #tpu.memory_space<vmem>>, vector<16x4xf32>
    %cst_60 = arith.constant 0.000000e+00 : f32
    %366 = vector.broadcast %cst_60 : f32 to vector<16x5xf32>
    %367 = tpu.concatenate %366, %360, %366 in 1 : vector<16x5xf32>, vector<16x16xf32>, vector<16x5xf32> -> vector<16x26xf32>
    %368 = vector.extract_strided_slice %367 {offsets = [0, 0], sizes = [16, 16], strides = [1, 1]} : vector<16x26xf32> to vector<16x16xf32>
    %369 = vector.extract_strided_slice %364 {offsets = [0, 0], sizes = [1, 16], strides = [1, 1]} : vector<2x16xf32> to vector<1x16xf32>
    %370 = vector.broadcast %369 : vector<1x16xf32> to vector<16x16xf32>
    %371 = arith.mulf %368, %370 : vector<16x16xf32>
    %372 = vector.extract_strided_slice %367 {offsets = [0, 1], sizes = [16, 16], strides = [1, 1]} : vector<16x26xf32> to vector<16x16xf32>
    %373 = vector.extract_strided_slice %367 {offsets = [0, 2], sizes = [16, 16], strides = [1, 1]} : vector<16x26xf32> to vector<16x16xf32>
    %374 = vector.extract_strided_slice %364 {offsets = [1, 0], sizes = [1, 16], strides = [1, 1]} : vector<2x16xf32> to vector<1x16xf32>
    %375 = vector.broadcast %374 : vector<1x16xf32> to vector<16x16xf32>
    %376 = arith.mulf %373, %375 : vector<16x16xf32>
    %377 = vector.extract_strided_slice %367 {offsets = [0, 4], sizes = [16, 16], strides = [1, 1]} : vector<16x26xf32> to vector<16x16xf32>
    %378 = vector.extract_strided_slice %364 {offsets = [0, 0], sizes = [1, 16], strides = [1, 1]} : vector<2x16xf32> to vector<1x16xf32>
    %379 = vector.broadcast %378 : vector<1x16xf32> to vector<16x16xf32>
    %380 = arith.mulf %377, %379 : vector<16x16xf32>
    %381 = vector.extract_strided_slice %367 {offsets = [0, 5], sizes = [16, 16], strides = [1, 1]} : vector<16x26xf32> to vector<16x16xf32>
    %382 = vector.extract_strided_slice %367 {offsets = [0, 6], sizes = [16, 16], strides = [1, 1]} : vector<16x26xf32> to vector<16x16xf32>
    %383 = vector.extract_strided_slice %364 {offsets = [1, 0], sizes = [1, 16], strides = [1, 1]} : vector<2x16xf32> to vector<1x16xf32>
    %384 = vector.broadcast %383 : vector<1x16xf32> to vector<16x16xf32>
    %385 = arith.mulf %382, %384 : vector<16x16xf32>
    %386 = vector.extract_strided_slice %367 {offsets = [0, 8], sizes = [16, 16], strides = [1, 1]} : vector<16x26xf32> to vector<16x16xf32>
    %387 = vector.extract_strided_slice %364 {offsets = [0, 0], sizes = [1, 16], strides = [1, 1]} : vector<2x16xf32> to vector<1x16xf32>
    %388 = vector.broadcast %387 : vector<1x16xf32> to vector<16x16xf32>
    %389 = arith.mulf %386, %388 : vector<16x16xf32>
    %390 = vector.extract_strided_slice %367 {offsets = [0, 9], sizes = [16, 16], strides = [1, 1]} : vector<16x26xf32> to vector<16x16xf32>
    %391 = vector.extract_strided_slice %367 {offsets = [0, 10], sizes = [16, 16], strides = [1, 1]} : vector<16x26xf32> to vector<16x16xf32>
    %392 = vector.extract_strided_slice %364 {offsets = [1, 0], sizes = [1, 16], strides = [1, 1]} : vector<2x16xf32> to vector<1x16xf32>
    %393 = vector.broadcast %392 : vector<1x16xf32> to vector<16x16xf32>
    %394 = arith.mulf %391, %393 : vector<16x16xf32>
    %395 = tpu.concatenate %371, %372, %376, %380, %381, %385, %389, %390, %394 in 0 : vector<16x16xf32>, vector<16x16xf32>, vector<16x16xf32>, vector<16x16xf32>, vector<16x16xf32>, vector<16x16xf32>, vector<16x16xf32>, vector<16x16xf32>, vector<16x16xf32> -> vector<144x16xf32>
    %cst_61 = arith.constant dense<0.000000e+00> : vector<16x16xf32>
    %396 = tpu.matmul %361, %395, %cst_61 {dimension_numbers = #tpu.dot_dimension_numbers<[1], [0], [0], [1], [0, 0, 1, 1], [], []>} : vector<16x144xf32>, vector<144x16xf32>, vector<16x16xf32> -> vector<16x16xf32>
    %397 = vector.broadcast %362 : vector<16x1xf32> to vector<16x16xf32>
    %398 = arith.mulf %396, %397 : vector<16x16xf32>
    %399 = vector.broadcast %363 : vector<16x1xf32> to vector<16x16xf32>
    %400 = arith.addf %398, %399 : vector<16x16xf32>
    %cst_62 = arith.constant 0.000000e+00 : f32
    %401 = vector.broadcast %cst_62 : f32 to vector<16x16xf32>
    %402 = arith.maximumf %400, %401 : vector<16x16xf32>
    %cst_63 = arith.constant 0.000000e+00 : f32
    %403 = vector.broadcast %cst_63 : f32 to vector<16x6xf32>
    %404 = tpu.concatenate %402, %403 in 1 : vector<16x16xf32>, vector<16x6xf32> -> vector<16x22xf32>
    %405 = vector.extract_strided_slice %404 {offsets = [0, 1], sizes = [16, 16], strides = [1, 1]} : vector<16x22xf32> to vector<16x16xf32>
    %406 = arith.maximumf %402, %405 : vector<16x16xf32>
    %407 = vector.extract_strided_slice %404 {offsets = [0, 4], sizes = [16, 16], strides = [1, 1]} : vector<16x22xf32> to vector<16x16xf32>
    %408 = arith.maximumf %406, %407 : vector<16x16xf32>
    %409 = vector.extract_strided_slice %404 {offsets = [0, 5], sizes = [16, 16], strides = [1, 1]} : vector<16x22xf32> to vector<16x16xf32>
    %410 = arith.maximumf %408, %409 : vector<16x16xf32>
    %cst_64 = arith.constant dense<0.000000e+00> : vector<16x4xf32>
    %411 = tpu.matmul %410, %365, %cst_64 {dimension_numbers = #tpu.dot_dimension_numbers<[1], [0], [0], [1], [0, 0, 1, 1], [], []>} : vector<16x16xf32>, vector<16x4xf32>, vector<16x4xf32> -> vector<16x4xf32>
    %cst_65 = arith.constant 0.000000e+00 : f32
    %412 = vector.broadcast %cst_65 : f32 to vector<16x6xf32>
    %413 = vector.extract_strided_slice %411 {offsets = [0, 0], sizes = [16, 1], strides = [1, 1]} : vector<16x4xf32> to vector<16x1xf32>
    %414 = vector.extract_strided_slice %4 {offsets = [0, 0], sizes = [16, 6], strides = [1, 1]} : vector<16x24xf32> to vector<16x6xf32>
    %415 = vector.broadcast %413 : vector<16x1xf32> to vector<16x6xf32>
    %416 = arith.mulf %415, %414 : vector<16x6xf32>
    %417 = arith.addf %412, %416 : vector<16x6xf32>
    %418 = vector.extract_strided_slice %411 {offsets = [0, 1], sizes = [16, 1], strides = [1, 1]} : vector<16x4xf32> to vector<16x1xf32>
    %419 = vector.extract_strided_slice %4 {offsets = [0, 6], sizes = [16, 6], strides = [1, 1]} : vector<16x24xf32> to vector<16x6xf32>
    %420 = vector.broadcast %418 : vector<16x1xf32> to vector<16x6xf32>
    %421 = arith.mulf %420, %419 : vector<16x6xf32>
    %422 = arith.addf %417, %421 : vector<16x6xf32>
    %423 = vector.extract_strided_slice %411 {offsets = [0, 2], sizes = [16, 1], strides = [1, 1]} : vector<16x4xf32> to vector<16x1xf32>
    %424 = vector.extract_strided_slice %4 {offsets = [0, 12], sizes = [16, 6], strides = [1, 1]} : vector<16x24xf32> to vector<16x6xf32>
    %425 = vector.broadcast %423 : vector<16x1xf32> to vector<16x6xf32>
    %426 = arith.mulf %425, %424 : vector<16x6xf32>
    %427 = arith.addf %422, %426 : vector<16x6xf32>
    %428 = vector.extract_strided_slice %411 {offsets = [0, 3], sizes = [16, 1], strides = [1, 1]} : vector<16x4xf32> to vector<16x1xf32>
    %429 = vector.extract_strided_slice %4 {offsets = [0, 18], sizes = [16, 6], strides = [1, 1]} : vector<16x24xf32> to vector<16x6xf32>
    %430 = vector.broadcast %428 : vector<16x1xf32> to vector<16x6xf32>
    %431 = arith.mulf %430, %429 : vector<16x6xf32>
    %432 = arith.addf %427, %431 : vector<16x6xf32>
    %cst_66 = arith.constant dense<0.000000e+00> : vector<6xf32>
    %433 = vector.multi_reduction <add>, %432, %cst_66 [0] : vector<16x6xf32> to vector<6xf32>
    %434 = vector.shape_cast %433 : vector<6xf32> to vector<1x6xf32>
    %435 = arith.addf %434, %5 : vector<1x6xf32>
    %c1 = arith.constant 1 : index
    %c0_67 = arith.constant 0 : index
    %c0_68 = arith.constant 0 : index
    %436 = vector.load %arg0[%c1, %c0_67, %c0_68] : memref<2x4x256xf32, #tpu.memory_space<vmem>>, vector<1x4x256xf32>
    %437 = vector.shape_cast %436 : vector<1x4x256xf32> to vector<4x256xf32>
    %cst_69 = arith.constant 0.000000e+00 : f32
    %438 = vector.broadcast %cst_69 : f32 to vector<1x18xf32>
    %439 = vector.extract_strided_slice %437 {offsets = [0, 0], sizes = [1, 256], strides = [1, 1]} : vector<4x256xf32> to vector<1x256xf32>
    %440 = tpu.concatenate %438, %439, %438 in 1 : vector<1x18xf32>, vector<1x256xf32>, vector<1x18xf32> -> vector<1x292xf32>
    %441 = vector.extract_strided_slice %437 {offsets = [1, 0], sizes = [1, 256], strides = [1, 1]} : vector<4x256xf32> to vector<1x256xf32>
    %442 = tpu.concatenate %438, %441, %438 in 1 : vector<1x18xf32>, vector<1x256xf32>, vector<1x18xf32> -> vector<1x292xf32>
    %443 = vector.extract_strided_slice %437 {offsets = [2, 0], sizes = [1, 256], strides = [1, 1]} : vector<4x256xf32> to vector<1x256xf32>
    %444 = tpu.concatenate %438, %443, %438 in 1 : vector<1x18xf32>, vector<1x256xf32>, vector<1x18xf32> -> vector<1x292xf32>
    %445 = vector.extract_strided_slice %437 {offsets = [3, 0], sizes = [1, 256], strides = [1, 1]} : vector<4x256xf32> to vector<1x256xf32>
    %446 = tpu.concatenate %438, %445, %438 in 1 : vector<1x18xf32>, vector<1x256xf32>, vector<1x18xf32> -> vector<1x292xf32>
    %447 = vector.extract_strided_slice %446 {offsets = [0, 1], sizes = [1, 256], strides = [1, 1]} : vector<1x292xf32> to vector<1x256xf32>
    %448 = vector.extract_strided_slice %3 {offsets = [0, 0], sizes = [1, 256], strides = [1, 1]} : vector<2x256xf32> to vector<1x256xf32>
    %449 = arith.mulf %447, %448 : vector<1x256xf32>
    %450 = vector.extract_strided_slice %444 {offsets = [0, 2], sizes = [1, 256], strides = [1, 1]} : vector<1x292xf32> to vector<1x256xf32>
    %451 = vector.extract_strided_slice %446 {offsets = [0, 2], sizes = [1, 256], strides = [1, 1]} : vector<1x292xf32> to vector<1x256xf32>
    %452 = vector.extract_strided_slice %444 {offsets = [0, 3], sizes = [1, 256], strides = [1, 1]} : vector<1x292xf32> to vector<1x256xf32>
    %453 = vector.extract_strided_slice %3 {offsets = [1, 0], sizes = [1, 256], strides = [1, 1]} : vector<2x256xf32> to vector<1x256xf32>
    %454 = arith.mulf %452, %453 : vector<1x256xf32>
    %455 = vector.extract_strided_slice %442 {offsets = [0, 17], sizes = [1, 256], strides = [1, 1]} : vector<1x292xf32> to vector<1x256xf32>
    %456 = vector.extract_strided_slice %3 {offsets = [0, 0], sizes = [1, 256], strides = [1, 1]} : vector<2x256xf32> to vector<1x256xf32>
    %457 = arith.mulf %455, %456 : vector<1x256xf32>
    %458 = vector.extract_strided_slice %440 {offsets = [0, 18], sizes = [1, 256], strides = [1, 1]} : vector<1x292xf32> to vector<1x256xf32>
    %459 = vector.extract_strided_slice %442 {offsets = [0, 18], sizes = [1, 256], strides = [1, 1]} : vector<1x292xf32> to vector<1x256xf32>
    %460 = vector.extract_strided_slice %440 {offsets = [0, 19], sizes = [1, 256], strides = [1, 1]} : vector<1x292xf32> to vector<1x256xf32>
    %461 = vector.extract_strided_slice %3 {offsets = [1, 0], sizes = [1, 256], strides = [1, 1]} : vector<2x256xf32> to vector<1x256xf32>
    %462 = arith.mulf %460, %461 : vector<1x256xf32>
    %463 = vector.extract_strided_slice %446 {offsets = [0, 17], sizes = [1, 256], strides = [1, 1]} : vector<1x292xf32> to vector<1x256xf32>
    %464 = vector.extract_strided_slice %3 {offsets = [0, 0], sizes = [1, 256], strides = [1, 1]} : vector<2x256xf32> to vector<1x256xf32>
    %465 = arith.mulf %463, %464 : vector<1x256xf32>
    %466 = vector.extract_strided_slice %444 {offsets = [0, 18], sizes = [1, 256], strides = [1, 1]} : vector<1x292xf32> to vector<1x256xf32>
    %467 = vector.extract_strided_slice %446 {offsets = [0, 18], sizes = [1, 256], strides = [1, 1]} : vector<1x292xf32> to vector<1x256xf32>
    %468 = vector.extract_strided_slice %444 {offsets = [0, 19], sizes = [1, 256], strides = [1, 1]} : vector<1x292xf32> to vector<1x256xf32>
    %469 = vector.extract_strided_slice %3 {offsets = [1, 0], sizes = [1, 256], strides = [1, 1]} : vector<2x256xf32> to vector<1x256xf32>
    %470 = arith.mulf %468, %469 : vector<1x256xf32>
    %471 = vector.extract_strided_slice %442 {offsets = [0, 33], sizes = [1, 256], strides = [1, 1]} : vector<1x292xf32> to vector<1x256xf32>
    %472 = vector.extract_strided_slice %3 {offsets = [0, 0], sizes = [1, 256], strides = [1, 1]} : vector<2x256xf32> to vector<1x256xf32>
    %473 = arith.mulf %471, %472 : vector<1x256xf32>
    %474 = vector.extract_strided_slice %440 {offsets = [0, 34], sizes = [1, 256], strides = [1, 1]} : vector<1x292xf32> to vector<1x256xf32>
    %475 = vector.extract_strided_slice %442 {offsets = [0, 34], sizes = [1, 256], strides = [1, 1]} : vector<1x292xf32> to vector<1x256xf32>
    %476 = vector.extract_strided_slice %440 {offsets = [0, 35], sizes = [1, 256], strides = [1, 1]} : vector<1x292xf32> to vector<1x256xf32>
    %477 = vector.extract_strided_slice %3 {offsets = [1, 0], sizes = [1, 256], strides = [1, 1]} : vector<2x256xf32> to vector<1x256xf32>
    %478 = arith.mulf %476, %477 : vector<1x256xf32>
    %cst_70 = arith.constant 0.000000e+00 : f32
    %479 = vector.broadcast %cst_70 : f32 to vector<8x256xf32>
    %480 = vector.extract_strided_slice %0 {offsets = [0, 0], sizes = [8, 1], strides = [1, 1]} : vector<8x9xf32> to vector<8x1xf32>
    %481 = vector.broadcast %480 : vector<8x1xf32> to vector<8x256xf32>
    %482 = vector.broadcast %449 : vector<1x256xf32> to vector<8x256xf32>
    %483 = arith.mulf %481, %482 : vector<8x256xf32>
    %484 = arith.addf %479, %483 : vector<8x256xf32>
    %485 = vector.extract_strided_slice %0 {offsets = [0, 1], sizes = [8, 1], strides = [1, 1]} : vector<8x9xf32> to vector<8x1xf32>
    %486 = vector.broadcast %485 : vector<8x1xf32> to vector<8x256xf32>
    %487 = vector.broadcast %450 : vector<1x256xf32> to vector<8x256xf32>
    %488 = arith.mulf %486, %487 : vector<8x256xf32>
    %489 = arith.addf %484, %488 : vector<8x256xf32>
    %490 = vector.extract_strided_slice %0 {offsets = [0, 2], sizes = [8, 1], strides = [1, 1]} : vector<8x9xf32> to vector<8x1xf32>
    %491 = vector.broadcast %490 : vector<8x1xf32> to vector<8x256xf32>
    %492 = vector.broadcast %451 : vector<1x256xf32> to vector<8x256xf32>
    %493 = arith.mulf %491, %492 : vector<8x256xf32>
    %494 = arith.addf %489, %493 : vector<8x256xf32>
    %495 = vector.extract_strided_slice %0 {offsets = [0, 3], sizes = [8, 1], strides = [1, 1]} : vector<8x9xf32> to vector<8x1xf32>
    %496 = vector.broadcast %495 : vector<8x1xf32> to vector<8x256xf32>
    %497 = vector.broadcast %457 : vector<1x256xf32> to vector<8x256xf32>
    %498 = arith.mulf %496, %497 : vector<8x256xf32>
    %499 = arith.addf %494, %498 : vector<8x256xf32>
    %500 = vector.extract_strided_slice %0 {offsets = [0, 4], sizes = [8, 1], strides = [1, 1]} : vector<8x9xf32> to vector<8x1xf32>
    %501 = vector.broadcast %500 : vector<8x1xf32> to vector<8x256xf32>
    %502 = vector.broadcast %458 : vector<1x256xf32> to vector<8x256xf32>
    %503 = arith.mulf %501, %502 : vector<8x256xf32>
    %504 = arith.addf %499, %503 : vector<8x256xf32>
    %505 = vector.extract_strided_slice %0 {offsets = [0, 5], sizes = [8, 1], strides = [1, 1]} : vector<8x9xf32> to vector<8x1xf32>
    %506 = vector.broadcast %505 : vector<8x1xf32> to vector<8x256xf32>
    %507 = vector.broadcast %459 : vector<1x256xf32> to vector<8x256xf32>
    %508 = arith.mulf %506, %507 : vector<8x256xf32>
    %509 = arith.addf %504, %508 : vector<8x256xf32>
    %510 = vector.extract_strided_slice %0 {offsets = [0, 6], sizes = [8, 1], strides = [1, 1]} : vector<8x9xf32> to vector<8x1xf32>
    %511 = vector.broadcast %510 : vector<8x1xf32> to vector<8x256xf32>
    %512 = vector.broadcast %465 : vector<1x256xf32> to vector<8x256xf32>
    %513 = arith.mulf %511, %512 : vector<8x256xf32>
    %514 = arith.addf %509, %513 : vector<8x256xf32>
    %515 = vector.extract_strided_slice %0 {offsets = [0, 7], sizes = [8, 1], strides = [1, 1]} : vector<8x9xf32> to vector<8x1xf32>
    %516 = vector.broadcast %515 : vector<8x1xf32> to vector<8x256xf32>
    %517 = vector.broadcast %466 : vector<1x256xf32> to vector<8x256xf32>
    %518 = arith.mulf %516, %517 : vector<8x256xf32>
    %519 = arith.addf %514, %518 : vector<8x256xf32>
    %520 = vector.extract_strided_slice %0 {offsets = [0, 8], sizes = [8, 1], strides = [1, 1]} : vector<8x9xf32> to vector<8x1xf32>
    %521 = vector.broadcast %520 : vector<8x1xf32> to vector<8x256xf32>
    %522 = vector.broadcast %467 : vector<1x256xf32> to vector<8x256xf32>
    %523 = arith.mulf %521, %522 : vector<8x256xf32>
    %524 = arith.addf %519, %523 : vector<8x256xf32>
    %525 = vector.broadcast %1 : vector<8x1xf32> to vector<8x256xf32>
    %526 = arith.mulf %524, %525 : vector<8x256xf32>
    %527 = vector.broadcast %2 : vector<8x1xf32> to vector<8x256xf32>
    %528 = arith.addf %526, %527 : vector<8x256xf32>
    %cst_71 = arith.constant 0.000000e+00 : f32
    %529 = vector.broadcast %cst_71 : f32 to vector<8x256xf32>
    %530 = arith.maximumf %528, %529 : vector<8x256xf32>
    %cst_72 = arith.constant 0.000000e+00 : f32
    %531 = vector.broadcast %cst_72 : f32 to vector<8x256xf32>
    %532 = vector.extract_strided_slice %0 {offsets = [0, 0], sizes = [8, 1], strides = [1, 1]} : vector<8x9xf32> to vector<8x1xf32>
    %533 = vector.broadcast %532 : vector<8x1xf32> to vector<8x256xf32>
    %534 = vector.broadcast %450 : vector<1x256xf32> to vector<8x256xf32>
    %535 = arith.mulf %533, %534 : vector<8x256xf32>
    %536 = arith.addf %531, %535 : vector<8x256xf32>
    %537 = vector.extract_strided_slice %0 {offsets = [0, 1], sizes = [8, 1], strides = [1, 1]} : vector<8x9xf32> to vector<8x1xf32>
    %538 = vector.broadcast %537 : vector<8x1xf32> to vector<8x256xf32>
    %539 = vector.broadcast %451 : vector<1x256xf32> to vector<8x256xf32>
    %540 = arith.mulf %538, %539 : vector<8x256xf32>
    %541 = arith.addf %536, %540 : vector<8x256xf32>
    %542 = vector.extract_strided_slice %0 {offsets = [0, 2], sizes = [8, 1], strides = [1, 1]} : vector<8x9xf32> to vector<8x1xf32>
    %543 = vector.broadcast %542 : vector<8x1xf32> to vector<8x256xf32>
    %544 = vector.broadcast %454 : vector<1x256xf32> to vector<8x256xf32>
    %545 = arith.mulf %543, %544 : vector<8x256xf32>
    %546 = arith.addf %541, %545 : vector<8x256xf32>
    %547 = vector.extract_strided_slice %0 {offsets = [0, 3], sizes = [8, 1], strides = [1, 1]} : vector<8x9xf32> to vector<8x1xf32>
    %548 = vector.broadcast %547 : vector<8x1xf32> to vector<8x256xf32>
    %549 = vector.broadcast %458 : vector<1x256xf32> to vector<8x256xf32>
    %550 = arith.mulf %548, %549 : vector<8x256xf32>
    %551 = arith.addf %546, %550 : vector<8x256xf32>
    %552 = vector.extract_strided_slice %0 {offsets = [0, 4], sizes = [8, 1], strides = [1, 1]} : vector<8x9xf32> to vector<8x1xf32>
    %553 = vector.broadcast %552 : vector<8x1xf32> to vector<8x256xf32>
    %554 = vector.broadcast %459 : vector<1x256xf32> to vector<8x256xf32>
    %555 = arith.mulf %553, %554 : vector<8x256xf32>
    %556 = arith.addf %551, %555 : vector<8x256xf32>
    %557 = vector.extract_strided_slice %0 {offsets = [0, 5], sizes = [8, 1], strides = [1, 1]} : vector<8x9xf32> to vector<8x1xf32>
    %558 = vector.broadcast %557 : vector<8x1xf32> to vector<8x256xf32>
    %559 = vector.broadcast %462 : vector<1x256xf32> to vector<8x256xf32>
    %560 = arith.mulf %558, %559 : vector<8x256xf32>
    %561 = arith.addf %556, %560 : vector<8x256xf32>
    %562 = vector.extract_strided_slice %0 {offsets = [0, 6], sizes = [8, 1], strides = [1, 1]} : vector<8x9xf32> to vector<8x1xf32>
    %563 = vector.broadcast %562 : vector<8x1xf32> to vector<8x256xf32>
    %564 = vector.broadcast %466 : vector<1x256xf32> to vector<8x256xf32>
    %565 = arith.mulf %563, %564 : vector<8x256xf32>
    %566 = arith.addf %561, %565 : vector<8x256xf32>
    %567 = vector.extract_strided_slice %0 {offsets = [0, 7], sizes = [8, 1], strides = [1, 1]} : vector<8x9xf32> to vector<8x1xf32>
    %568 = vector.broadcast %567 : vector<8x1xf32> to vector<8x256xf32>
    %569 = vector.broadcast %467 : vector<1x256xf32> to vector<8x256xf32>
    %570 = arith.mulf %568, %569 : vector<8x256xf32>
    %571 = arith.addf %566, %570 : vector<8x256xf32>
    %572 = vector.extract_strided_slice %0 {offsets = [0, 8], sizes = [8, 1], strides = [1, 1]} : vector<8x9xf32> to vector<8x1xf32>
    %573 = vector.broadcast %572 : vector<8x1xf32> to vector<8x256xf32>
    %574 = vector.broadcast %470 : vector<1x256xf32> to vector<8x256xf32>
    %575 = arith.mulf %573, %574 : vector<8x256xf32>
    %576 = arith.addf %571, %575 : vector<8x256xf32>
    %577 = vector.broadcast %1 : vector<8x1xf32> to vector<8x256xf32>
    %578 = arith.mulf %576, %577 : vector<8x256xf32>
    %579 = vector.broadcast %2 : vector<8x1xf32> to vector<8x256xf32>
    %580 = arith.addf %578, %579 : vector<8x256xf32>
    %cst_73 = arith.constant 0.000000e+00 : f32
    %581 = vector.broadcast %cst_73 : f32 to vector<8x256xf32>
    %582 = arith.maximumf %580, %581 : vector<8x256xf32>
    %583 = arith.maximumf %530, %582 : vector<8x256xf32>
    %cst_74 = arith.constant 0.000000e+00 : f32
    %584 = vector.broadcast %cst_74 : f32 to vector<8x256xf32>
    %585 = vector.extract_strided_slice %0 {offsets = [0, 0], sizes = [8, 1], strides = [1, 1]} : vector<8x9xf32> to vector<8x1xf32>
    %586 = vector.broadcast %585 : vector<8x1xf32> to vector<8x256xf32>
    %587 = vector.broadcast %457 : vector<1x256xf32> to vector<8x256xf32>
    %588 = arith.mulf %586, %587 : vector<8x256xf32>
    %589 = arith.addf %584, %588 : vector<8x256xf32>
    %590 = vector.extract_strided_slice %0 {offsets = [0, 1], sizes = [8, 1], strides = [1, 1]} : vector<8x9xf32> to vector<8x1xf32>
    %591 = vector.broadcast %590 : vector<8x1xf32> to vector<8x256xf32>
    %592 = vector.broadcast %458 : vector<1x256xf32> to vector<8x256xf32>
    %593 = arith.mulf %591, %592 : vector<8x256xf32>
    %594 = arith.addf %589, %593 : vector<8x256xf32>
    %595 = vector.extract_strided_slice %0 {offsets = [0, 2], sizes = [8, 1], strides = [1, 1]} : vector<8x9xf32> to vector<8x1xf32>
    %596 = vector.broadcast %595 : vector<8x1xf32> to vector<8x256xf32>
    %597 = vector.broadcast %459 : vector<1x256xf32> to vector<8x256xf32>
    %598 = arith.mulf %596, %597 : vector<8x256xf32>
    %599 = arith.addf %594, %598 : vector<8x256xf32>
    %600 = vector.extract_strided_slice %0 {offsets = [0, 3], sizes = [8, 1], strides = [1, 1]} : vector<8x9xf32> to vector<8x1xf32>
    %601 = vector.broadcast %600 : vector<8x1xf32> to vector<8x256xf32>
    %602 = vector.broadcast %465 : vector<1x256xf32> to vector<8x256xf32>
    %603 = arith.mulf %601, %602 : vector<8x256xf32>
    %604 = arith.addf %599, %603 : vector<8x256xf32>
    %605 = vector.extract_strided_slice %0 {offsets = [0, 4], sizes = [8, 1], strides = [1, 1]} : vector<8x9xf32> to vector<8x1xf32>
    %606 = vector.broadcast %605 : vector<8x1xf32> to vector<8x256xf32>
    %607 = vector.broadcast %466 : vector<1x256xf32> to vector<8x256xf32>
    %608 = arith.mulf %606, %607 : vector<8x256xf32>
    %609 = arith.addf %604, %608 : vector<8x256xf32>
    %610 = vector.extract_strided_slice %0 {offsets = [0, 5], sizes = [8, 1], strides = [1, 1]} : vector<8x9xf32> to vector<8x1xf32>
    %611 = vector.broadcast %610 : vector<8x1xf32> to vector<8x256xf32>
    %612 = vector.broadcast %467 : vector<1x256xf32> to vector<8x256xf32>
    %613 = arith.mulf %611, %612 : vector<8x256xf32>
    %614 = arith.addf %609, %613 : vector<8x256xf32>
    %615 = vector.extract_strided_slice %0 {offsets = [0, 6], sizes = [8, 1], strides = [1, 1]} : vector<8x9xf32> to vector<8x1xf32>
    %616 = vector.broadcast %615 : vector<8x1xf32> to vector<8x256xf32>
    %617 = vector.broadcast %473 : vector<1x256xf32> to vector<8x256xf32>
    %618 = arith.mulf %616, %617 : vector<8x256xf32>
    %619 = arith.addf %614, %618 : vector<8x256xf32>
    %620 = vector.extract_strided_slice %0 {offsets = [0, 7], sizes = [8, 1], strides = [1, 1]} : vector<8x9xf32> to vector<8x1xf32>
    %621 = vector.broadcast %620 : vector<8x1xf32> to vector<8x256xf32>
    %622 = vector.broadcast %474 : vector<1x256xf32> to vector<8x256xf32>
    %623 = arith.mulf %621, %622 : vector<8x256xf32>
    %624 = arith.addf %619, %623 : vector<8x256xf32>
    %625 = vector.extract_strided_slice %0 {offsets = [0, 8], sizes = [8, 1], strides = [1, 1]} : vector<8x9xf32> to vector<8x1xf32>
    %626 = vector.broadcast %625 : vector<8x1xf32> to vector<8x256xf32>
    %627 = vector.broadcast %475 : vector<1x256xf32> to vector<8x256xf32>
    %628 = arith.mulf %626, %627 : vector<8x256xf32>
    %629 = arith.addf %624, %628 : vector<8x256xf32>
    %630 = vector.broadcast %1 : vector<8x1xf32> to vector<8x256xf32>
    %631 = arith.mulf %629, %630 : vector<8x256xf32>
    %632 = vector.broadcast %2 : vector<8x1xf32> to vector<8x256xf32>
    %633 = arith.addf %631, %632 : vector<8x256xf32>
    %cst_75 = arith.constant 0.000000e+00 : f32
    %634 = vector.broadcast %cst_75 : f32 to vector<8x256xf32>
    %635 = arith.maximumf %633, %634 : vector<8x256xf32>
    %636 = arith.maximumf %583, %635 : vector<8x256xf32>
    %cst_76 = arith.constant 0.000000e+00 : f32
    %637 = vector.broadcast %cst_76 : f32 to vector<8x256xf32>
    %638 = vector.extract_strided_slice %0 {offsets = [0, 0], sizes = [8, 1], strides = [1, 1]} : vector<8x9xf32> to vector<8x1xf32>
    %639 = vector.broadcast %638 : vector<8x1xf32> to vector<8x256xf32>
    %640 = vector.broadcast %458 : vector<1x256xf32> to vector<8x256xf32>
    %641 = arith.mulf %639, %640 : vector<8x256xf32>
    %642 = arith.addf %637, %641 : vector<8x256xf32>
    %643 = vector.extract_strided_slice %0 {offsets = [0, 1], sizes = [8, 1], strides = [1, 1]} : vector<8x9xf32> to vector<8x1xf32>
    %644 = vector.broadcast %643 : vector<8x1xf32> to vector<8x256xf32>
    %645 = vector.broadcast %459 : vector<1x256xf32> to vector<8x256xf32>
    %646 = arith.mulf %644, %645 : vector<8x256xf32>
    %647 = arith.addf %642, %646 : vector<8x256xf32>
    %648 = vector.extract_strided_slice %0 {offsets = [0, 2], sizes = [8, 1], strides = [1, 1]} : vector<8x9xf32> to vector<8x1xf32>
    %649 = vector.broadcast %648 : vector<8x1xf32> to vector<8x256xf32>
    %650 = vector.broadcast %462 : vector<1x256xf32> to vector<8x256xf32>
    %651 = arith.mulf %649, %650 : vector<8x256xf32>
    %652 = arith.addf %647, %651 : vector<8x256xf32>
    %653 = vector.extract_strided_slice %0 {offsets = [0, 3], sizes = [8, 1], strides = [1, 1]} : vector<8x9xf32> to vector<8x1xf32>
    %654 = vector.broadcast %653 : vector<8x1xf32> to vector<8x256xf32>
    %655 = vector.broadcast %466 : vector<1x256xf32> to vector<8x256xf32>
    %656 = arith.mulf %654, %655 : vector<8x256xf32>
    %657 = arith.addf %652, %656 : vector<8x256xf32>
    %658 = vector.extract_strided_slice %0 {offsets = [0, 4], sizes = [8, 1], strides = [1, 1]} : vector<8x9xf32> to vector<8x1xf32>
    %659 = vector.broadcast %658 : vector<8x1xf32> to vector<8x256xf32>
    %660 = vector.broadcast %467 : vector<1x256xf32> to vector<8x256xf32>
    %661 = arith.mulf %659, %660 : vector<8x256xf32>
    %662 = arith.addf %657, %661 : vector<8x256xf32>
    %663 = vector.extract_strided_slice %0 {offsets = [0, 5], sizes = [8, 1], strides = [1, 1]} : vector<8x9xf32> to vector<8x1xf32>
    %664 = vector.broadcast %663 : vector<8x1xf32> to vector<8x256xf32>
    %665 = vector.broadcast %470 : vector<1x256xf32> to vector<8x256xf32>
    %666 = arith.mulf %664, %665 : vector<8x256xf32>
    %667 = arith.addf %662, %666 : vector<8x256xf32>
    %668 = vector.extract_strided_slice %0 {offsets = [0, 6], sizes = [8, 1], strides = [1, 1]} : vector<8x9xf32> to vector<8x1xf32>
    %669 = vector.broadcast %668 : vector<8x1xf32> to vector<8x256xf32>
    %670 = vector.broadcast %474 : vector<1x256xf32> to vector<8x256xf32>
    %671 = arith.mulf %669, %670 : vector<8x256xf32>
    %672 = arith.addf %667, %671 : vector<8x256xf32>
    %673 = vector.extract_strided_slice %0 {offsets = [0, 7], sizes = [8, 1], strides = [1, 1]} : vector<8x9xf32> to vector<8x1xf32>
    %674 = vector.broadcast %673 : vector<8x1xf32> to vector<8x256xf32>
    %675 = vector.broadcast %475 : vector<1x256xf32> to vector<8x256xf32>
    %676 = arith.mulf %674, %675 : vector<8x256xf32>
    %677 = arith.addf %672, %676 : vector<8x256xf32>
    %678 = vector.extract_strided_slice %0 {offsets = [0, 8], sizes = [8, 1], strides = [1, 1]} : vector<8x9xf32> to vector<8x1xf32>
    %679 = vector.broadcast %678 : vector<8x1xf32> to vector<8x256xf32>
    %680 = vector.broadcast %478 : vector<1x256xf32> to vector<8x256xf32>
    %681 = arith.mulf %679, %680 : vector<8x256xf32>
    %682 = arith.addf %677, %681 : vector<8x256xf32>
    %683 = vector.broadcast %1 : vector<8x1xf32> to vector<8x256xf32>
    %684 = arith.mulf %682, %683 : vector<8x256xf32>
    %685 = vector.broadcast %2 : vector<8x1xf32> to vector<8x256xf32>
    %686 = arith.addf %684, %685 : vector<8x256xf32>
    %cst_77 = arith.constant 0.000000e+00 : f32
    %687 = vector.broadcast %cst_77 : f32 to vector<8x256xf32>
    %688 = arith.maximumf %686, %687 : vector<8x256xf32>
    %689 = arith.maximumf %636, %688 : vector<8x256xf32>
    %c0_78 = arith.constant 0 : index
    %c0_79 = arith.constant 0 : index
    %690 = vector.load %arg4[%c0_78, %c0_79] : memref<16x72xf32, #tpu.memory_space<vmem>>, vector<16x72xf32>
    %c0_80 = arith.constant 0 : index
    %c0_81 = arith.constant 0 : index
    %691 = vector.load %arg5[%c0_80, %c0_81] : memref<16x1xf32, #tpu.memory_space<vmem>>, vector<16x1xf32>
    %c0_82 = arith.constant 0 : index
    %c0_83 = arith.constant 0 : index
    %692 = vector.load %arg6[%c0_82, %c0_83] : memref<16x1xf32, #tpu.memory_space<vmem>>, vector<16x1xf32>
    %c0_84 = arith.constant 0 : index
    %c0_85 = arith.constant 0 : index
    %693 = vector.load %arg16[%c0_84, %c0_85] : memref<256x64xf32, #tpu.memory_space<vmem>>, vector<256x64xf32>
    %cst_86 = arith.constant 0.000000e+00 : f32
    %694 = vector.broadcast %cst_86 : f32 to vector<8x17xf32>
    %695 = tpu.concatenate %694, %689, %694 in 1 : vector<8x17xf32>, vector<8x256xf32>, vector<8x17xf32> -> vector<8x290xf32>
    %696 = vector.extract_strided_slice %695 {offsets = [0, 0], sizes = [8, 256], strides = [1, 1]} : vector<8x290xf32> to vector<8x256xf32>
    %697 = vector.extract_strided_slice %3 {offsets = [0, 0], sizes = [1, 256], strides = [1, 1]} : vector<2x256xf32> to vector<1x256xf32>
    %698 = vector.broadcast %697 : vector<1x256xf32> to vector<8x256xf32>
    %699 = arith.mulf %696, %698 : vector<8x256xf32>
    %700 = vector.extract_strided_slice %695 {offsets = [0, 1], sizes = [8, 256], strides = [1, 1]} : vector<8x290xf32> to vector<8x256xf32>
    %701 = vector.extract_strided_slice %695 {offsets = [0, 2], sizes = [8, 256], strides = [1, 1]} : vector<8x290xf32> to vector<8x256xf32>
    %702 = vector.extract_strided_slice %3 {offsets = [1, 0], sizes = [1, 256], strides = [1, 1]} : vector<2x256xf32> to vector<1x256xf32>
    %703 = vector.broadcast %702 : vector<1x256xf32> to vector<8x256xf32>
    %704 = arith.mulf %701, %703 : vector<8x256xf32>
    %705 = vector.extract_strided_slice %695 {offsets = [0, 16], sizes = [8, 256], strides = [1, 1]} : vector<8x290xf32> to vector<8x256xf32>
    %706 = vector.extract_strided_slice %3 {offsets = [0, 0], sizes = [1, 256], strides = [1, 1]} : vector<2x256xf32> to vector<1x256xf32>
    %707 = vector.broadcast %706 : vector<1x256xf32> to vector<8x256xf32>
    %708 = arith.mulf %705, %707 : vector<8x256xf32>
    %709 = vector.extract_strided_slice %695 {offsets = [0, 17], sizes = [8, 256], strides = [1, 1]} : vector<8x290xf32> to vector<8x256xf32>
    %710 = vector.extract_strided_slice %695 {offsets = [0, 18], sizes = [8, 256], strides = [1, 1]} : vector<8x290xf32> to vector<8x256xf32>
    %711 = vector.extract_strided_slice %3 {offsets = [1, 0], sizes = [1, 256], strides = [1, 1]} : vector<2x256xf32> to vector<1x256xf32>
    %712 = vector.broadcast %711 : vector<1x256xf32> to vector<8x256xf32>
    %713 = arith.mulf %710, %712 : vector<8x256xf32>
    %714 = vector.extract_strided_slice %695 {offsets = [0, 32], sizes = [8, 256], strides = [1, 1]} : vector<8x290xf32> to vector<8x256xf32>
    %715 = vector.extract_strided_slice %3 {offsets = [0, 0], sizes = [1, 256], strides = [1, 1]} : vector<2x256xf32> to vector<1x256xf32>
    %716 = vector.broadcast %715 : vector<1x256xf32> to vector<8x256xf32>
    %717 = arith.mulf %714, %716 : vector<8x256xf32>
    %718 = vector.extract_strided_slice %695 {offsets = [0, 33], sizes = [8, 256], strides = [1, 1]} : vector<8x290xf32> to vector<8x256xf32>
    %719 = vector.extract_strided_slice %695 {offsets = [0, 34], sizes = [8, 256], strides = [1, 1]} : vector<8x290xf32> to vector<8x256xf32>
    %720 = vector.extract_strided_slice %3 {offsets = [1, 0], sizes = [1, 256], strides = [1, 1]} : vector<2x256xf32> to vector<1x256xf32>
    %721 = vector.broadcast %720 : vector<1x256xf32> to vector<8x256xf32>
    %722 = arith.mulf %719, %721 : vector<8x256xf32>
    %723 = tpu.concatenate %699, %700, %704, %708, %709, %713, %717, %718, %722 in 0 : vector<8x256xf32>, vector<8x256xf32>, vector<8x256xf32>, vector<8x256xf32>, vector<8x256xf32>, vector<8x256xf32>, vector<8x256xf32>, vector<8x256xf32>, vector<8x256xf32> -> vector<72x256xf32>
    %cst_87 = arith.constant dense<0.000000e+00> : vector<16x256xf32>
    %724 = tpu.matmul %690, %723, %cst_87 {dimension_numbers = #tpu.dot_dimension_numbers<[1], [0], [0], [1], [0, 0, 1, 1], [], []>} : vector<16x72xf32>, vector<72x256xf32>, vector<16x256xf32> -> vector<16x256xf32>
    %725 = vector.broadcast %691 : vector<16x1xf32> to vector<16x256xf32>
    %726 = arith.mulf %724, %725 : vector<16x256xf32>
    %727 = vector.broadcast %692 : vector<16x1xf32> to vector<16x256xf32>
    %728 = arith.addf %726, %727 : vector<16x256xf32>
    %cst_88 = arith.constant 0.000000e+00 : f32
    %729 = vector.broadcast %cst_88 : f32 to vector<16x256xf32>
    %730 = arith.maximumf %728, %729 : vector<16x256xf32>
    %cst_89 = arith.constant 0.000000e+00 : f32
    %731 = vector.broadcast %cst_89 : f32 to vector<16x18xf32>
    %732 = tpu.concatenate %730, %731 in 1 : vector<16x256xf32>, vector<16x18xf32> -> vector<16x274xf32>
    %733 = vector.extract_strided_slice %732 {offsets = [0, 1], sizes = [16, 256], strides = [1, 1]} : vector<16x274xf32> to vector<16x256xf32>
    %734 = arith.maximumf %730, %733 : vector<16x256xf32>
    %735 = vector.extract_strided_slice %732 {offsets = [0, 16], sizes = [16, 256], strides = [1, 1]} : vector<16x274xf32> to vector<16x256xf32>
    %736 = arith.maximumf %734, %735 : vector<16x256xf32>
    %737 = vector.extract_strided_slice %732 {offsets = [0, 17], sizes = [16, 256], strides = [1, 1]} : vector<16x274xf32> to vector<16x256xf32>
    %738 = arith.maximumf %736, %737 : vector<16x256xf32>
    %cst_90 = arith.constant dense<0.000000e+00> : vector<16x64xf32>
    %739 = tpu.matmul %738, %693, %cst_90 {dimension_numbers = #tpu.dot_dimension_numbers<[1], [0], [0], [1], [0, 0, 1, 1], [], []>} : vector<16x256xf32>, vector<256x64xf32>, vector<16x64xf32> -> vector<16x64xf32>
    %c0_91 = arith.constant 0 : index
    %c0_92 = arith.constant 0 : index
    %740 = vector.load %arg7[%c0_91, %c0_92] : memref<16x144xf32, #tpu.memory_space<vmem>>, vector<16x144xf32>
    %c0_93 = arith.constant 0 : index
    %c0_94 = arith.constant 0 : index
    %741 = vector.load %arg8[%c0_93, %c0_94] : memref<16x1xf32, #tpu.memory_space<vmem>>, vector<16x1xf32>
    %c0_95 = arith.constant 0 : index
    %c0_96 = arith.constant 0 : index
    %742 = vector.load %arg9[%c0_95, %c0_96] : memref<16x1xf32, #tpu.memory_space<vmem>>, vector<16x1xf32>
    %c0_97 = arith.constant 0 : index
    %c0_98 = arith.constant 0 : index
    %743 = vector.load %arg14[%c0_97, %c0_98] : memref<2x64xf32, #tpu.memory_space<vmem>>, vector<2x64xf32>
    %c0_99 = arith.constant 0 : index
    %c0_100 = arith.constant 0 : index
    %744 = vector.load %arg17[%c0_99, %c0_100] : memref<64x16xf32, #tpu.memory_space<vmem>>, vector<64x16xf32>
    %cst_101 = arith.constant 0.000000e+00 : f32
    %745 = vector.broadcast %cst_101 : f32 to vector<16x9xf32>
    %746 = tpu.concatenate %745, %739, %745 in 1 : vector<16x9xf32>, vector<16x64xf32>, vector<16x9xf32> -> vector<16x82xf32>
    %747 = vector.extract_strided_slice %746 {offsets = [0, 0], sizes = [16, 64], strides = [1, 1]} : vector<16x82xf32> to vector<16x64xf32>
    %748 = vector.extract_strided_slice %743 {offsets = [0, 0], sizes = [1, 64], strides = [1, 1]} : vector<2x64xf32> to vector<1x64xf32>
    %749 = vector.broadcast %748 : vector<1x64xf32> to vector<16x64xf32>
    %750 = arith.mulf %747, %749 : vector<16x64xf32>
    %751 = vector.extract_strided_slice %746 {offsets = [0, 1], sizes = [16, 64], strides = [1, 1]} : vector<16x82xf32> to vector<16x64xf32>
    %752 = vector.extract_strided_slice %746 {offsets = [0, 2], sizes = [16, 64], strides = [1, 1]} : vector<16x82xf32> to vector<16x64xf32>
    %753 = vector.extract_strided_slice %743 {offsets = [1, 0], sizes = [1, 64], strides = [1, 1]} : vector<2x64xf32> to vector<1x64xf32>
    %754 = vector.broadcast %753 : vector<1x64xf32> to vector<16x64xf32>
    %755 = arith.mulf %752, %754 : vector<16x64xf32>
    %756 = vector.extract_strided_slice %746 {offsets = [0, 8], sizes = [16, 64], strides = [1, 1]} : vector<16x82xf32> to vector<16x64xf32>
    %757 = vector.extract_strided_slice %743 {offsets = [0, 0], sizes = [1, 64], strides = [1, 1]} : vector<2x64xf32> to vector<1x64xf32>
    %758 = vector.broadcast %757 : vector<1x64xf32> to vector<16x64xf32>
    %759 = arith.mulf %756, %758 : vector<16x64xf32>
    %760 = vector.extract_strided_slice %746 {offsets = [0, 9], sizes = [16, 64], strides = [1, 1]} : vector<16x82xf32> to vector<16x64xf32>
    %761 = vector.extract_strided_slice %746 {offsets = [0, 10], sizes = [16, 64], strides = [1, 1]} : vector<16x82xf32> to vector<16x64xf32>
    %762 = vector.extract_strided_slice %743 {offsets = [1, 0], sizes = [1, 64], strides = [1, 1]} : vector<2x64xf32> to vector<1x64xf32>
    %763 = vector.broadcast %762 : vector<1x64xf32> to vector<16x64xf32>
    %764 = arith.mulf %761, %763 : vector<16x64xf32>
    %765 = vector.extract_strided_slice %746 {offsets = [0, 16], sizes = [16, 64], strides = [1, 1]} : vector<16x82xf32> to vector<16x64xf32>
    %766 = vector.extract_strided_slice %743 {offsets = [0, 0], sizes = [1, 64], strides = [1, 1]} : vector<2x64xf32> to vector<1x64xf32>
    %767 = vector.broadcast %766 : vector<1x64xf32> to vector<16x64xf32>
    %768 = arith.mulf %765, %767 : vector<16x64xf32>
    %769 = vector.extract_strided_slice %746 {offsets = [0, 17], sizes = [16, 64], strides = [1, 1]} : vector<16x82xf32> to vector<16x64xf32>
    %770 = vector.extract_strided_slice %746 {offsets = [0, 18], sizes = [16, 64], strides = [1, 1]} : vector<16x82xf32> to vector<16x64xf32>
    %771 = vector.extract_strided_slice %743 {offsets = [1, 0], sizes = [1, 64], strides = [1, 1]} : vector<2x64xf32> to vector<1x64xf32>
    %772 = vector.broadcast %771 : vector<1x64xf32> to vector<16x64xf32>
    %773 = arith.mulf %770, %772 : vector<16x64xf32>
    %774 = tpu.concatenate %750, %751, %755, %759, %760, %764, %768, %769, %773 in 0 : vector<16x64xf32>, vector<16x64xf32>, vector<16x64xf32>, vector<16x64xf32>, vector<16x64xf32>, vector<16x64xf32>, vector<16x64xf32>, vector<16x64xf32>, vector<16x64xf32> -> vector<144x64xf32>
    %cst_102 = arith.constant dense<0.000000e+00> : vector<16x64xf32>
    %775 = tpu.matmul %740, %774, %cst_102 {dimension_numbers = #tpu.dot_dimension_numbers<[1], [0], [0], [1], [0, 0, 1, 1], [], []>} : vector<16x144xf32>, vector<144x64xf32>, vector<16x64xf32> -> vector<16x64xf32>
    %776 = vector.broadcast %741 : vector<16x1xf32> to vector<16x64xf32>
    %777 = arith.mulf %775, %776 : vector<16x64xf32>
    %778 = vector.broadcast %742 : vector<16x1xf32> to vector<16x64xf32>
    %779 = arith.addf %777, %778 : vector<16x64xf32>
    %cst_103 = arith.constant 0.000000e+00 : f32
    %780 = vector.broadcast %cst_103 : f32 to vector<16x64xf32>
    %781 = arith.maximumf %779, %780 : vector<16x64xf32>
    %cst_104 = arith.constant 0.000000e+00 : f32
    %782 = vector.broadcast %cst_104 : f32 to vector<16x10xf32>
    %783 = tpu.concatenate %781, %782 in 1 : vector<16x64xf32>, vector<16x10xf32> -> vector<16x74xf32>
    %784 = vector.extract_strided_slice %783 {offsets = [0, 1], sizes = [16, 64], strides = [1, 1]} : vector<16x74xf32> to vector<16x64xf32>
    %785 = arith.maximumf %781, %784 : vector<16x64xf32>
    %786 = vector.extract_strided_slice %783 {offsets = [0, 8], sizes = [16, 64], strides = [1, 1]} : vector<16x74xf32> to vector<16x64xf32>
    %787 = arith.maximumf %785, %786 : vector<16x64xf32>
    %788 = vector.extract_strided_slice %783 {offsets = [0, 9], sizes = [16, 64], strides = [1, 1]} : vector<16x74xf32> to vector<16x64xf32>
    %789 = arith.maximumf %787, %788 : vector<16x64xf32>
    %cst_105 = arith.constant dense<0.000000e+00> : vector<16x16xf32>
    %790 = tpu.matmul %789, %744, %cst_105 {dimension_numbers = #tpu.dot_dimension_numbers<[1], [0], [0], [1], [0, 0, 1, 1], [], []>} : vector<16x64xf32>, vector<64x16xf32>, vector<16x16xf32> -> vector<16x16xf32>
    %c0_106 = arith.constant 0 : index
    %c0_107 = arith.constant 0 : index
    %791 = vector.load %arg10[%c0_106, %c0_107] : memref<16x144xf32, #tpu.memory_space<vmem>>, vector<16x144xf32>
    %c0_108 = arith.constant 0 : index
    %c0_109 = arith.constant 0 : index
    %792 = vector.load %arg11[%c0_108, %c0_109] : memref<16x1xf32, #tpu.memory_space<vmem>>, vector<16x1xf32>
    %c0_110 = arith.constant 0 : index
    %c0_111 = arith.constant 0 : index
    %793 = vector.load %arg12[%c0_110, %c0_111] : memref<16x1xf32, #tpu.memory_space<vmem>>, vector<16x1xf32>
    %c0_112 = arith.constant 0 : index
    %c0_113 = arith.constant 0 : index
    %794 = vector.load %arg15[%c0_112, %c0_113] : memref<2x16xf32, #tpu.memory_space<vmem>>, vector<2x16xf32>
    %c0_114 = arith.constant 0 : index
    %c0_115 = arith.constant 0 : index
    %795 = vector.load %arg18[%c0_114, %c0_115] : memref<16x4xf32, #tpu.memory_space<vmem>>, vector<16x4xf32>
    %cst_116 = arith.constant 0.000000e+00 : f32
    %796 = vector.broadcast %cst_116 : f32 to vector<16x5xf32>
    %797 = tpu.concatenate %796, %790, %796 in 1 : vector<16x5xf32>, vector<16x16xf32>, vector<16x5xf32> -> vector<16x26xf32>
    %798 = vector.extract_strided_slice %797 {offsets = [0, 0], sizes = [16, 16], strides = [1, 1]} : vector<16x26xf32> to vector<16x16xf32>
    %799 = vector.extract_strided_slice %794 {offsets = [0, 0], sizes = [1, 16], strides = [1, 1]} : vector<2x16xf32> to vector<1x16xf32>
    %800 = vector.broadcast %799 : vector<1x16xf32> to vector<16x16xf32>
    %801 = arith.mulf %798, %800 : vector<16x16xf32>
    %802 = vector.extract_strided_slice %797 {offsets = [0, 1], sizes = [16, 16], strides = [1, 1]} : vector<16x26xf32> to vector<16x16xf32>
    %803 = vector.extract_strided_slice %797 {offsets = [0, 2], sizes = [16, 16], strides = [1, 1]} : vector<16x26xf32> to vector<16x16xf32>
    %804 = vector.extract_strided_slice %794 {offsets = [1, 0], sizes = [1, 16], strides = [1, 1]} : vector<2x16xf32> to vector<1x16xf32>
    %805 = vector.broadcast %804 : vector<1x16xf32> to vector<16x16xf32>
    %806 = arith.mulf %803, %805 : vector<16x16xf32>
    %807 = vector.extract_strided_slice %797 {offsets = [0, 4], sizes = [16, 16], strides = [1, 1]} : vector<16x26xf32> to vector<16x16xf32>
    %808 = vector.extract_strided_slice %794 {offsets = [0, 0], sizes = [1, 16], strides = [1, 1]} : vector<2x16xf32> to vector<1x16xf32>
    %809 = vector.broadcast %808 : vector<1x16xf32> to vector<16x16xf32>
    %810 = arith.mulf %807, %809 : vector<16x16xf32>
    %811 = vector.extract_strided_slice %797 {offsets = [0, 5], sizes = [16, 16], strides = [1, 1]} : vector<16x26xf32> to vector<16x16xf32>
    %812 = vector.extract_strided_slice %797 {offsets = [0, 6], sizes = [16, 16], strides = [1, 1]} : vector<16x26xf32> to vector<16x16xf32>
    %813 = vector.extract_strided_slice %794 {offsets = [1, 0], sizes = [1, 16], strides = [1, 1]} : vector<2x16xf32> to vector<1x16xf32>
    %814 = vector.broadcast %813 : vector<1x16xf32> to vector<16x16xf32>
    %815 = arith.mulf %812, %814 : vector<16x16xf32>
    %816 = vector.extract_strided_slice %797 {offsets = [0, 8], sizes = [16, 16], strides = [1, 1]} : vector<16x26xf32> to vector<16x16xf32>
    %817 = vector.extract_strided_slice %794 {offsets = [0, 0], sizes = [1, 16], strides = [1, 1]} : vector<2x16xf32> to vector<1x16xf32>
    %818 = vector.broadcast %817 : vector<1x16xf32> to vector<16x16xf32>
    %819 = arith.mulf %816, %818 : vector<16x16xf32>
    %820 = vector.extract_strided_slice %797 {offsets = [0, 9], sizes = [16, 16], strides = [1, 1]} : vector<16x26xf32> to vector<16x16xf32>
    %821 = vector.extract_strided_slice %797 {offsets = [0, 10], sizes = [16, 16], strides = [1, 1]} : vector<16x26xf32> to vector<16x16xf32>
    %822 = vector.extract_strided_slice %794 {offsets = [1, 0], sizes = [1, 16], strides = [1, 1]} : vector<2x16xf32> to vector<1x16xf32>
    %823 = vector.broadcast %822 : vector<1x16xf32> to vector<16x16xf32>
    %824 = arith.mulf %821, %823 : vector<16x16xf32>
    %825 = tpu.concatenate %801, %802, %806, %810, %811, %815, %819, %820, %824 in 0 : vector<16x16xf32>, vector<16x16xf32>, vector<16x16xf32>, vector<16x16xf32>, vector<16x16xf32>, vector<16x16xf32>, vector<16x16xf32>, vector<16x16xf32>, vector<16x16xf32> -> vector<144x16xf32>
    %cst_117 = arith.constant dense<0.000000e+00> : vector<16x16xf32>
    %826 = tpu.matmul %791, %825, %cst_117 {dimension_numbers = #tpu.dot_dimension_numbers<[1], [0], [0], [1], [0, 0, 1, 1], [], []>} : vector<16x144xf32>, vector<144x16xf32>, vector<16x16xf32> -> vector<16x16xf32>
    %827 = vector.broadcast %792 : vector<16x1xf32> to vector<16x16xf32>
    %828 = arith.mulf %826, %827 : vector<16x16xf32>
    %829 = vector.broadcast %793 : vector<16x1xf32> to vector<16x16xf32>
    %830 = arith.addf %828, %829 : vector<16x16xf32>
    %cst_118 = arith.constant 0.000000e+00 : f32
    %831 = vector.broadcast %cst_118 : f32 to vector<16x16xf32>
    %832 = arith.maximumf %830, %831 : vector<16x16xf32>
    %cst_119 = arith.constant 0.000000e+00 : f32
    %833 = vector.broadcast %cst_119 : f32 to vector<16x6xf32>
    %834 = tpu.concatenate %832, %833 in 1 : vector<16x16xf32>, vector<16x6xf32> -> vector<16x22xf32>
    %835 = vector.extract_strided_slice %834 {offsets = [0, 1], sizes = [16, 16], strides = [1, 1]} : vector<16x22xf32> to vector<16x16xf32>
    %836 = arith.maximumf %832, %835 : vector<16x16xf32>
    %837 = vector.extract_strided_slice %834 {offsets = [0, 4], sizes = [16, 16], strides = [1, 1]} : vector<16x22xf32> to vector<16x16xf32>
    %838 = arith.maximumf %836, %837 : vector<16x16xf32>
    %839 = vector.extract_strided_slice %834 {offsets = [0, 5], sizes = [16, 16], strides = [1, 1]} : vector<16x22xf32> to vector<16x16xf32>
    %840 = arith.maximumf %838, %839 : vector<16x16xf32>
    %cst_120 = arith.constant dense<0.000000e+00> : vector<16x4xf32>
    %841 = tpu.matmul %840, %795, %cst_120 {dimension_numbers = #tpu.dot_dimension_numbers<[1], [0], [0], [1], [0, 0, 1, 1], [], []>} : vector<16x16xf32>, vector<16x4xf32>, vector<16x4xf32> -> vector<16x4xf32>
    %cst_121 = arith.constant 0.000000e+00 : f32
    %842 = vector.broadcast %cst_121 : f32 to vector<16x6xf32>
    %843 = vector.extract_strided_slice %841 {offsets = [0, 0], sizes = [16, 1], strides = [1, 1]} : vector<16x4xf32> to vector<16x1xf32>
    %844 = vector.extract_strided_slice %4 {offsets = [0, 0], sizes = [16, 6], strides = [1, 1]} : vector<16x24xf32> to vector<16x6xf32>
    %845 = vector.broadcast %843 : vector<16x1xf32> to vector<16x6xf32>
    %846 = arith.mulf %845, %844 : vector<16x6xf32>
    %847 = arith.addf %842, %846 : vector<16x6xf32>
    %848 = vector.extract_strided_slice %841 {offsets = [0, 1], sizes = [16, 1], strides = [1, 1]} : vector<16x4xf32> to vector<16x1xf32>
    %849 = vector.extract_strided_slice %4 {offsets = [0, 6], sizes = [16, 6], strides = [1, 1]} : vector<16x24xf32> to vector<16x6xf32>
    %850 = vector.broadcast %848 : vector<16x1xf32> to vector<16x6xf32>
    %851 = arith.mulf %850, %849 : vector<16x6xf32>
    %852 = arith.addf %847, %851 : vector<16x6xf32>
    %853 = vector.extract_strided_slice %841 {offsets = [0, 2], sizes = [16, 1], strides = [1, 1]} : vector<16x4xf32> to vector<16x1xf32>
    %854 = vector.extract_strided_slice %4 {offsets = [0, 12], sizes = [16, 6], strides = [1, 1]} : vector<16x24xf32> to vector<16x6xf32>
    %855 = vector.broadcast %853 : vector<16x1xf32> to vector<16x6xf32>
    %856 = arith.mulf %855, %854 : vector<16x6xf32>
    %857 = arith.addf %852, %856 : vector<16x6xf32>
    %858 = vector.extract_strided_slice %841 {offsets = [0, 3], sizes = [16, 1], strides = [1, 1]} : vector<16x4xf32> to vector<16x1xf32>
    %859 = vector.extract_strided_slice %4 {offsets = [0, 18], sizes = [16, 6], strides = [1, 1]} : vector<16x24xf32> to vector<16x6xf32>
    %860 = vector.broadcast %858 : vector<16x1xf32> to vector<16x6xf32>
    %861 = arith.mulf %860, %859 : vector<16x6xf32>
    %862 = arith.addf %857, %861 : vector<16x6xf32>
    %cst_122 = arith.constant dense<0.000000e+00> : vector<6xf32>
    %863 = vector.multi_reduction <add>, %862, %cst_122 [0] : vector<16x6xf32> to vector<6xf32>
    %864 = vector.shape_cast %863 : vector<6xf32> to vector<1x6xf32>
    %865 = arith.addf %864, %5 : vector<1x6xf32>
    %866 = tpu.concatenate %435, %865 in 0 : vector<1x6xf32>, vector<1x6xf32> -> vector<2x6xf32>
    %c0_123 = arith.constant 0 : index
    %c0_124 = arith.constant 0 : index
    %867 = vector.load %arg21[%c0_123, %c0_124] : memref<2x6xf32, #tpu.memory_space<vmem>>, vector<2x6xf32>
    tpu.vector_store %arg21[%c0_123, %c0_124], %866 {strides = array<i32>} : memref<2x6xf32, #tpu.memory_space<vmem>>, vector<2x6xf32>,
    return
  }
}

</mosaic_0001>

<llo_original>
// kernel: base_cnn_forward.1
$region0: #{base_cnn_forward.1}
  #allocation0 [shape = 'u32[]', space=smem, size = 0x4, offset = 0x4, fixed_abs, tag = 'smem constant byte address 0x4 - core index']
  #allocation1 [shape = 'u32[144,128]{1,0:T(1,128)}', space=vmem, size = 0x12000, scoped, tag = 'internal scratch']
  %s0 = inlined_call_operand.vmem [shape: f32[2,4,256], index: 0, kind: input, shape index: {}]
  %s1 = inlined_call_operand.vmem [shape: f32[8,9], index: 1, kind: input, shape index: {}]
  %s2 = inlined_call_operand.vmem [shape: f32[8,1], index: 2, kind: input, shape index: {}]
  %s3 = inlined_call_operand.vmem [shape: f32[8,1], index: 3, kind: input, shape index: {}]
  %s4 = inlined_call_operand.vmem [shape: f32[16,72], index: 4, kind: input, shape index: {}]
  %s5 = inlined_call_operand.vmem [shape: f32[16,1], index: 5, kind: input, shape index: {}]
  %s6 = inlined_call_operand.vmem [shape: f32[16,1], index: 6, kind: input, shape index: {}]
  %s7 = inlined_call_operand.vmem [shape: f32[16,144], index: 7, kind: input, shape index: {}]
  %s8 = inlined_call_operand.vmem [shape: f32[16,1], index: 8, kind: input, shape index: {}]
  %s9 = inlined_call_operand.vmem [shape: f32[16,1], index: 9, kind: input, shape index: {}]
  %s10 = inlined_call_operand.vmem [shape: f32[16,144], index: 10, kind: input, shape index: {}]
  %s11 = inlined_call_operand.vmem [shape: f32[16,1], index: 11, kind: input, shape index: {}]
  %s12 = inlined_call_operand.vmem [shape: f32[16,1], index: 12, kind: input, shape index: {}]
  %s13 = inlined_call_operand.vmem [shape: f32[2,256], index: 13, kind: input, shape index: {}]
  %s14 = inlined_call_operand.vmem [shape: f32[2,64], index: 14, kind: input, shape index: {}]
  %s15 = inlined_call_operand.vmem [shape: f32[2,16], index: 15, kind: input, shape index: {}]
  %s16 = inlined_call_operand.vmem [shape: f32[256,64], index: 16, kind: input, shape index: {}]
  %s17 = inlined_call_operand.vmem [shape: f32[64,16], index: 17, kind: input, shape index: {}]
  %s18 = inlined_call_operand.vmem [shape: f32[16,4], index: 18, kind: input, shape index: {}]
  %s19 = inlined_call_operand.vmem [shape: f32[16,24], index: 19, kind: input, shape index: {}]
  %s20 = inlined_call_operand.vmem [shape: f32[1,6], index: 20, kind: input, shape index: {}]
  %s21 = inlined_call_operand.hbm [shape: f32[2,6], index: 21, kind: output, shape index: {}]
  %s22 = sld [smem:[#allocation0]]
  $region94: #{base_cnn_forward.1} parent=0
    _
  %s24 = ssub.s32 1, %s22
  %s25 = scalar_select 0, %s24, %s22
  $region1: #{base_cnn_forward.1} parent=0
    #allocation2 [shape = 'u8[1024]{0}', space=vmem, size = 0x400, scoped, tag = 'output window, operand 0, single buffered']
    #allocation3 [shape = 's32[1]{0}', space=sflag, size = 0x4, scoped, tag = 'scoped memory for base_cnn_forward.1']
    %26 = vsyncpa [#allocation3], 0
    // Predicated region
    $region2: #{base_cnn_forward.1} parent=1 // pred_check
      _
    $region3: #{base_cnn_forward.1} parent=1 // pred_check_branch
      %28 = sbr.rel (0) target = $region5
    $region4: #{base_cnn_forward.1} parent=1 // pred_region
      _
    $region5: #{base_cnn_forward.1} parent=1 // pred_fallthru
      _
    // Predicated region
    $region6: #{base_cnn_forward.1} parent=1 // pred_check
      _
    $region7: #{base_cnn_forward.1} parent=1 // pred_check_branch
      %30 = sbr.rel (0) target = $region9
    $region8: #{base_cnn_forward.1} parent=1 // pred_region
      _
    $region9: #{base_cnn_forward.1} parent=1 // pred_fallthru
      _
    // Predicated region
    $region10: #{base_cnn_forward.1} parent=1 // pred_check
      _
    $region11: #{base_cnn_forward.1} parent=1 // pred_check_branch
      %32 = sbr.rel (0) target = $region13
    $region12: #{base_cnn_forward.1} parent=1 // pred_region
      _
    $region13: #{base_cnn_forward.1} parent=1 // pred_fallthru
      _
    // Predicated region
    $region14: #{base_cnn_forward.1} parent=1 // pred_check
      _
    $region15: #{base_cnn_forward.1} parent=1 // pred_check_branch
      %34 = sbr.rel (0) target = $region17
    $region16: #{base_cnn_forward.1} parent=1 // pred_region
      _
    $region17: #{base_cnn_forward.1} parent=1 // pred_fallthru
      _
    // Predicated region
    $region18: #{base_cnn_forward.1} parent=1 // pred_check
      _
    $region19: #{base_cnn_forward.1} parent=1 // pred_check_branch
      %36 = sbr.rel (0) target = $region21
    $region20: #{base_cnn_forward.1} parent=1 // pred_region
      _
    $region21: #{base_cnn_forward.1} parent=1 // pred_fallthru
      _
    // Predicated region
    $region22: #{base_cnn_forward.1} parent=1 // pred_check
      _
    $region23: #{base_cnn_forward.1} parent=1 // pred_check_branch
      %38 = sbr.rel (0) target = $region25
    $region24: #{base_cnn_forward.1} parent=1 // pred_region
      _
    $region25: #{base_cnn_forward.1} parent=1 // pred_fallthru
      _
    // Predicated region
    $region26: #{base_cnn_forward.1} parent=1 // pred_check
      _
    $region27: #{base_cnn_forward.1} parent=1 // pred_check_branch
      %40 = sbr.rel (0) target = $region29
    $region28: #{base_cnn_forward.1} parent=1 // pred_region
      _
    $region29: #{base_cnn_forward.1} parent=1 // pred_fallthru
      _
    // Predicated region
    $region30: #{base_cnn_forward.1} parent=1 // pred_check
      _
    $region31: #{base_cnn_forward.1} parent=1 // pred_check_branch
      %42 = sbr.rel (0) target = $region33
    $region32: #{base_cnn_forward.1} parent=1 // pred_region
      _
    $region33: #{base_cnn_forward.1} parent=1 // pred_fallthru
      _
    // Predicated region
    $region34: #{base_cnn_forward.1} parent=1 // pred_check
      _
    $region35: #{base_cnn_forward.1} parent=1 // pred_check_branch
      %44 = sbr.rel (0) target = $region37
    $region36: #{base_cnn_forward.1} parent=1 // pred_region
      _
    $region37: #{base_cnn_forward.1} parent=1 // pred_fallthru
      _
    // Predicated region
    $region38: #{base_cnn_forward.1} parent=1 // pred_check
      _
    $region39: #{base_cnn_forward.1} parent=1 // pred_check_branch
      %46 = sbr.rel (0) target = $region41
    $region40: #{base_cnn_forward.1} parent=1 // pred_region
      _
    $region41: #{base_cnn_forward.1} parent=1 // pred_fallthru
      _
    // Predicated region
    $region42: #{base_cnn_forward.1} parent=1 // pred_check
      _
    $region43: #{base_cnn_forward.1} parent=1 // pred_check_branch
      %48 = sbr.rel (0) target = $region45
    $region44: #{base_cnn_forward.1} parent=1 // pred_region
      _
    $region45: #{base_cnn_forward.1} parent=1 // pred_fallthru
      _
    // Predicated region
    $region46: #{base_cnn_forward.1} parent=1 // pred_check
      _
    $region47: #{base_cnn_forward.1} parent=1 // pred_check_branch
      %50 = sbr.rel (0) target = $region49
    $region48: #{base_cnn_forward.1} parent=1 // pred_region
      _
    $region49: #{base_cnn_forward.1} parent=1 // pred_fallthru
      _
    // Predicated region
    $region50: #{base_cnn_forward.1} parent=1 // pred_check
      _
    $region51: #{base_cnn_forward.1} parent=1 // pred_check_branch
      %52 = sbr.rel (0) target = $region53
    $region52: #{base_cnn_forward.1} parent=1 // pred_region
      _
    $region53: #{base_cnn_forward.1} parent=1 // pred_fallthru
      _
    // Predicated region
    $region54: #{base_cnn_forward.1} parent=1 // pred_check
      _
    $region55: #{base_cnn_forward.1} parent=1 // pred_check_branch
      %54 = sbr.rel (0) target = $region57
    $region56: #{base_cnn_forward.1} parent=1 // pred_region
      _
    $region57: #{base_cnn_forward.1} parent=1 // pred_fallthru
      _
    // Predicated region
    $region58: #{base_cnn_forward.1} parent=1 // pred_check
      _
    $region59: #{base_cnn_forward.1} parent=1 // pred_check_branch
      %56 = sbr.rel (0) target = $region61
    $region60: #{base_cnn_forward.1} parent=1 // pred_region
      _
    $region61: #{base_cnn_forward.1} parent=1 // pred_fallthru
      _
    // Predicated region
    $region62: #{base_cnn_forward.1} parent=1 // pred_check
      _
    $region63: #{base_cnn_forward.1} parent=1 // pred_check_branch
      %58 = sbr.rel (0) target = $region65
    $region64: #{base_cnn_forward.1} parent=1 // pred_region
      _
    $region65: #{base_cnn_forward.1} parent=1 // pred_fallthru
      _
    // Predicated region
    $region66: #{base_cnn_forward.1} parent=1 // pred_check
      _
    $region67: #{base_cnn_forward.1} parent=1 // pred_check_branch
      %60 = sbr.rel (0) target = $region69
    $region68: #{base_cnn_forward.1} parent=1 // pred_region
      _
    $region69: #{base_cnn_forward.1} parent=1 // pred_fallthru
      _
    // Predicated region
    $region70: #{base_cnn_forward.1} parent=1 // pred_check
      _
    $region71: #{base_cnn_forward.1} parent=1 // pred_check_branch
      %62 = sbr.rel (0) target = $region73
    $region72: #{base_cnn_forward.1} parent=1 // pred_region
      _
    $region73: #{base_cnn_forward.1} parent=1 // pred_fallthru
      _
    // Predicated region
    $region74: #{base_cnn_forward.1} parent=1 // pred_check
      _
    $region75: #{base_cnn_forward.1} parent=1 // pred_check_branch
      %64 = sbr.rel (0) target = $region77
    $region76: #{base_cnn_forward.1} parent=1 // pred_region
      _
    $region77: #{base_cnn_forward.1} parent=1 // pred_fallthru
      _
    // Predicated region
    $region78: #{base_cnn_forward.1} parent=1 // pred_check
      _
    $region79: #{base_cnn_forward.1} parent=1 // pred_check_branch
      %66 = sbr.rel (0) target = $region81
    $region80: #{base_cnn_forward.1} parent=1 // pred_region
      _
    $region81: #{base_cnn_forward.1} parent=1 // pred_fallthru
      _
    // Predicated region
    $region82: #{base_cnn_forward.1} parent=1 // pred_check
      _
    $region83: #{base_cnn_forward.1} parent=1 // pred_check_branch
      %68 = sbr.rel (0) target = $region85
    $region84: #{base_cnn_forward.1} parent=1 // pred_region
      _
    $region85: #{base_cnn_forward.1} parent=1 // pred_fallthru
      _
    %v69 = vld [vmem:[%s1] sm:$0xff]
    %v70 = vld [vmem:[%s2] sm:$0xff]
    %v71 = vld [vmem:[%s3] sm:$0xff]
    %v72 = vld [vmem:[%s13] sm:$0xf]
    %v73 = vld [vmem:[%s19] sm:$0xff]
    %v74 = vld [vmem:[%s19 + $0x8] sm:$0xff]
    %v75 = vld [vmem:[%s20] sm:$0x1]
    %v76 = vld [vmem:[%s0] sm:$0xff]
    %v78 = vlaneseq
    %v79 = vshrl.u32 %v78, 7
    %v80 = vsub.s32 0, %v79
    %v81 = vrot.slane %v76, %v80
    %v82 = vlaneseq
    %v83 = vshrl.u32 %v82, 7
    %v84 = vsub.s32 4, %v83
    %v85 = vrot.slane %v76, %v84
    %86 = vrot.lane.b32.xlu0 %v81, 18
    %v87 = vpop.permute.xlu0 %86
    %88 = vrot.lane.b32.xlu0 %v85, 18
    %v89 = vpop.permute.xlu0 %88
    %vm90 = vcmask 146432
    %v91 = vsel %vm90, %v87, %v89
    %v95 = vsel %vm90, 0.0, %v87
    %v96 = vsel %vm90, %v89, 0.0
    %v97 = vlaneseq
    %v98 = vshrl.u32 %v97, 7
    %v99 = vsub.s32 1, %v98
    %v100 = vrot.slane %v76, %v99
    %v101 = vlaneseq
    %v102 = vshrl.u32 %v101, 7
    %v103 = vsub.s32 5, %v102
    %v104 = vrot.slane %v76, %v103
    %105 = vrot.lane.b32.xlu0 %v100, 18
    %v106 = vpop.permute.xlu0 %105
    %107 = vrot.lane.b32.xlu0 %v104, 18
    %v108 = vpop.permute.xlu0 %107
    %v109 = vsel %vm90, %v106, %v108
    %v113 = vsel %vm90, 0.0, %v106
    %v114 = vsel %vm90, %v108, 0.0
    %v115 = vlaneseq
    %v116 = vshrl.u32 %v115, 7
    %v117 = vsub.s32 2, %v116
    %v118 = vrot.slane %v76, %v117
    %v119 = vlaneseq
    %v120 = vshrl.u32 %v119, 7
    %v121 = vsub.s32 6, %v120
    %v122 = vrot.slane %v76, %v121
    %123 = vrot.lane.b32.xlu0 %v118, 18
    %v124 = vpop.permute.xlu0 %123
    %125 = vrot.lane.b32.xlu0 %v122, 18
    %v126 = vpop.permute.xlu0 %125
    %v127 = vsel %vm90, %v124, %v126
    %v131 = vsel %vm90, 0.0, %v124
    %v132 = vsel %vm90, %v126, 0.0
    %v133 = vlaneseq
    %v134 = vshrl.u32 %v133, 7
    %v135 = vsub.s32 3, %v134
    %v136 = vrot.slane %v76, %v135
    %v137 = vlaneseq
    %v138 = vshrl.u32 %v137, 7
    %v139 = vsub.s32 7, %v138
    %v140 = vrot.slane %v76, %v139
    %141 = vrot.lane.b32.xlu0 %v136, 18
    %v142 = vpop.permute.xlu0 %141
    %143 = vrot.lane.b32.xlu0 %v140, 18
    %v144 = vpop.permute.xlu0 %143
    %v145 = vsel %vm90, %v142, %v144
    %v149 = vsel %vm90, 0.0, %v142
    %v150 = vsel %vm90, %v144, 0.0
    %v152 = vlaneseq
    %v153 = vshrl.u32 %v152, 7
    %v154 = vsub.s32 0, %v153
    %v155 = vrot.slane %v72, %v154
    %v156 = vlaneseq
    %v157 = vshrl.u32 %v156, 7
    %v158 = vsub.s32 2, %v157
    %v159 = vrot.slane %v72, %v158
    %160 = vrot.lane.b32.xlu0 %v155, 1
    %v161 = vpop.permute.xlu0 %160
    %162 = vrot.lane.b32.xlu0 %v159, 1
    %v163 = vpop.permute.xlu0 %162
    %vm164 = vcmask 7168
    %v165 = vsel %vm164, %v161, %v163
    %v169 = vmul.f32 %v149, %v161
    %v170 = vmul.f32 %v145, %v165
    %v171 = vmul.f32 %v150, %v163
    %v172 = vlaneseq
    %v173 = vshrl.u32 %v172, 7
    %v174 = vsub.s32 1, %v173
    %v175 = vrot.slane %v72, %v174
    %v176 = vlaneseq
    %v177 = vshrl.u32 %v176, 7
    %v178 = vsub.s32 3, %v177
    %v179 = vrot.slane %v72, %v178
    %180 = vrot.lane.b32.xlu0 %v175, 3
    %v181 = vpop.permute.xlu0 %180
    %182 = vrot.lane.b32.xlu0 %v179, 3
    %v183 = vpop.permute.xlu0 %182
    %vm184 = vcmask 23552
    %v185 = vsel %vm184, %v181, %v183
    %v189 = vmul.f32 %v131, %v181
    %v190 = vmul.f32 %v127, %v185
    %v191 = vmul.f32 %v132, %v183
    %192 = vrot.lane.b32.xlu0 %v155, 17
    %v193 = vpop.permute.xlu0 %192
    %194 = vrot.lane.b32.xlu0 %v159, 17
    %v195 = vpop.permute.xlu0 %194
    %vm196 = vcmask 138240
    %v197 = vsel %vm196, %v193, %v195
    %v201 = vmul.f32 %v113, %v193
    %v202 = vmul.f32 %v109, %v197
    %v203 = vmul.f32 %v114, %v195
    %204 = vrot.lane.b32.xlu0 %v175, 19
    %v205 = vpop.permute.xlu0 %204
    %206 = vrot.lane.b32.xlu0 %v179, 19
    %v207 = vpop.permute.xlu0 %206
    %vm208 = vcmask 154624
    %v209 = vsel %vm208, %v205, %v207
    %v213 = vmul.f32 %v95, %v205
    %v214 = vmul.f32 %v91, %v209
    %v215 = vmul.f32 %v96, %v207
    %v216 = vmul.f32 %v149, %v193
    %v217 = vmul.f32 %v145, %v197
    %v218 = vmul.f32 %v150, %v195
    %v219 = vmul.f32 %v131, %v205
    %v220 = vmul.f32 %v127, %v209
    %v221 = vmul.f32 %v132, %v207
    %222 = vrot.lane.b32.xlu0 %v155, 33
    %v223 = vpop.permute.xlu0 %222
    %224 = vrot.lane.b32.xlu0 %v159, 33
    %v225 = vpop.permute.xlu0 %224
    %vm226 = vcmask 269312
    %v227 = vsel %vm226, %v223, %v225
    %v231 = vmul.f32 %v113, %v223
    %v232 = vmul.f32 %v109, %v227
    %v233 = vmul.f32 %v114, %v225
    %234 = vrot.lane.b32.xlu0 %v175, 35
    %v235 = vpop.permute.xlu0 %234
    %236 = vrot.lane.b32.xlu0 %v179, 35
    %v237 = vpop.permute.xlu0 %236
    %vm238 = vcmask 285696
    %v239 = vsel %vm238, %v235, %v237
    %v243 = vmul.f32 %v95, %v235
    %v244 = vmul.f32 %v91, %v239
    %v245 = vmul.f32 %v96, %v237
    %247 = vset.pattern.permute.xlu0 0
    %248 = vperm.xlu0 %247, %v69
    %v249 = vpop.permute.xlu0 %248
    %v251 = vlaneseq
    %v252 = vshrl.u32 %v251, 7
    %v253 = vsub.s32 0, %v252
    %v254 = vrot.slane %v169, %v253
    %v255 = vlaneseq
    %v256 = vshrl.u32 %v255, 7
    %v257 = vsub.s32 0, %v256
    %v258 = vrot.slane %v170, %v257
    %v259 = vlaneseq
    %v260 = vshrl.u32 %v259, 7
    %v261 = vsub.s32 0, %v260
    %v262 = vrot.slane %v171, %v261
    %v263 = vmul.f32 %v249, %v254
    %v264 = vmul.f32 %v249, %v258
    %v265 = vmul.f32 %v249, %v262
    %v266 = vadd.f32 %v263, 0.0
    %v267 = vadd.f32 %v264, 0.0
    %v268 = vadd.f32 %v265, 0.0
    %269 = vset.pattern.permute.xlu0 1
    %270 = vperm.xlu0 %269, %v69
    %v271 = vpop.permute.xlu0 %270
    %v273 = vlaneseq
    %v274 = vshrl.u32 %v273, 7
    %v275 = vsub.s32 0, %v274
    %v276 = vrot.slane %v131, %v275
    %v277 = vlaneseq
    %v278 = vshrl.u32 %v277, 7
    %v279 = vsub.s32 0, %v278
    %v280 = vrot.slane %v127, %v279
    %v281 = vlaneseq
    %v282 = vshrl.u32 %v281, 7
    %v283 = vsub.s32 0, %v282
    %v284 = vrot.slane %v132, %v283
    %v285 = vmul.f32 %v271, %v276
    %v286 = vmul.f32 %v271, %v280
    %v287 = vmul.f32 %v271, %v284
    %291 = vrot.lane.b32.xlu0 %v285, 127
    %v292 = vpop.permute.xlu0 %291
    %293 = vrot.lane.b32.xlu0 %v286, 127
    %v294 = vpop.permute.xlu0 %293
    %295 = vrot.lane.b32.xlu0 %v287, 127
    %v296 = vpop.permute.xlu0 %295
    %vm297 = vcmask 1039360
    %v298 = vsel %vm297, %v292, %v294
    %v299 = vsel %vm297, %v294, %v296
    %v303 = vadd.f32 %v266, %v298
    %v304 = vadd.f32 %v267, %v299
    %v305 = vadd.f32 %v268, %v296
    %306 = vset.pattern.permute.xlu0 2
    %307 = vperm.xlu0 %306, %v69
    %v308 = vpop.permute.xlu0 %307
    %v310 = vlaneseq
    %v311 = vshrl.u32 %v310, 7
    %v312 = vsub.s32 0, %v311
    %v313 = vrot.slane %v149, %v312
    %v314 = vlaneseq
    %v315 = vshrl.u32 %v314, 7
    %v316 = vsub.s32 0, %v315
    %v317 = vrot.slane %v145, %v316
    %v318 = vlaneseq
    %v319 = vshrl.u32 %v318, 7
    %v320 = vsub.s32 0, %v319
    %v321 = vrot.slane %v150, %v320
    %v322 = vmul.f32 %v308, %v313
    %v323 = vmul.f32 %v308, %v317
    %v324 = vmul.f32 %v308, %v321
    %328 = vrot.lane.b32.xlu0 %v322, 127
    %v329 = vpop.permute.xlu0 %328
    %330 = vrot.lane.b32.xlu0 %v323, 127
    %v331 = vpop.permute.xlu0 %330
    %332 = vrot.lane.b32.xlu0 %v324, 127
    %v333 = vpop.permute.xlu0 %332
    %v334 = vsel %vm297, %v329, %v331
    %v335 = vsel %vm297, %v331, %v333
    %v339 = vadd.f32 %v303, %v334
    %v340 = vadd.f32 %v304, %v335
    %v341 = vadd.f32 %v305, %v333
    %342 = vset.pattern.permute.xlu0 3
    %343 = vperm.xlu0 %342, %v69
    %v344 = vpop.permute.xlu0 %343
    %v346 = vlaneseq
    %v347 = vshrl.u32 %v346, 7
    %v348 = vsub.s32 0, %v347
    %v349 = vrot.slane %v201, %v348
    %v350 = vlaneseq
    %v351 = vshrl.u32 %v350, 7
    %v352 = vsub.s32 0, %v351
    %v353 = vrot.slane %v202, %v352
    %v354 = vlaneseq
    %v355 = vshrl.u32 %v354, 7
    %v356 = vsub.s32 0, %v355
    %v357 = vrot.slane %v203, %v356
    %v358 = vmul.f32 %v344, %v349
    %v359 = vmul.f32 %v344, %v353
    %v360 = vmul.f32 %v344, %v357
    %364 = vrot.lane.b32.xlu0 %v358, 112
    %v365 = vpop.permute.xlu0 %364
    %366 = vrot.lane.b32.xlu0 %v359, 112
    %v367 = vpop.permute.xlu0 %366
    %368 = vrot.lane.b32.xlu0 %v360, 112
    %v369 = vpop.permute.xlu0 %368
    %vm370 = vcmask 916480
    %v371 = vsel %vm370, %v365, %v367
    %v372 = vsel %vm370, %v367, %v369
    %v376 = vadd.f32 %v339, %v371
    %v377 = vadd.f32 %v340, %v372
    %v378 = vadd.f32 %v341, %v369
    %379 = vset.pattern.permute.xlu0 4
    %380 = vperm.xlu0 %379, %v69
    %v381 = vpop.permute.xlu0 %380
    %v383 = vlaneseq
    %v384 = vshrl.u32 %v383, 7
    %v385 = vsub.s32 0, %v384
    %v386 = vrot.slane %v95, %v385
    %v387 = vlaneseq
    %v388 = vshrl.u32 %v387, 7
    %v389 = vsub.s32 0, %v388
    %v390 = vrot.slane %v91, %v389
    %v391 = vlaneseq
    %v392 = vshrl.u32 %v391, 7
    %v393 = vsub.s32 0, %v392
    %v394 = vrot.slane %v96, %v393
    %v395 = vmul.f32 %v381, %v386
    %v396 = vmul.f32 %v381, %v390
    %v397 = vmul.f32 %v381, %v394
    %401 = vrot.lane.b32.xlu0 %v395, 111
    %v402 = vpop.permute.xlu0 %401
    %403 = vrot.lane.b32.xlu0 %v396, 111
    %v404 = vpop.permute.xlu0 %403
    %405 = vrot.lane.b32.xlu0 %v397, 111
    %v406 = vpop.permute.xlu0 %405
    %vm407 = vcmask 908288
    %v408 = vsel %vm407, %v402, %v404
    %v409 = vsel %vm407, %v404, %v406
    %v413 = vadd.f32 %v376, %v408
    %v414 = vadd.f32 %v377, %v409
    %v415 = vadd.f32 %v378, %v406
    %416 = vset.pattern.permute.xlu0 5
    %417 = vperm.xlu0 %416, %v69
    %v418 = vpop.permute.xlu0 %417
    %v420 = vlaneseq
    %v421 = vshrl.u32 %v420, 7
    %v422 = vsub.s32 0, %v421
    %v423 = vrot.slane %v113, %v422
    %v424 = vlaneseq
    %v425 = vshrl.u32 %v424, 7
    %v426 = vsub.s32 0, %v425
    %v427 = vrot.slane %v109, %v426
    %v428 = vlaneseq
    %v429 = vshrl.u32 %v428, 7
    %v430 = vsub.s32 0, %v429
    %v431 = vrot.slane %v114, %v430
    %v432 = vmul.f32 %v418, %v423
    %v433 = vmul.f32 %v418, %v427
    %v434 = vmul.f32 %v418, %v431
    %438 = vrot.lane.b32.xlu0 %v432, 111
    %v439 = vpop.permute.xlu0 %438
    %440 = vrot.lane.b32.xlu0 %v433, 111
    %v441 = vpop.permute.xlu0 %440
    %442 = vrot.lane.b32.xlu0 %v434, 111
    %v443 = vpop.permute.xlu0 %442
    %v444 = vsel %vm407, %v439, %v441
    %v445 = vsel %vm407, %v441, %v443
    %v449 = vadd.f32 %v413, %v444
    %v450 = vadd.f32 %v414, %v445
    %v451 = vadd.f32 %v415, %v443
    %452 = vset.pattern.permute.xlu0 6
    %453 = vperm.xlu0 %452, %v69
    %v454 = vpop.permute.xlu0 %453
    %v456 = vlaneseq
    %v457 = vshrl.u32 %v456, 7
    %v458 = vsub.s32 0, %v457
    %v459 = vrot.slane %v216, %v458
    %v460 = vlaneseq
    %v461 = vshrl.u32 %v460, 7
    %v462 = vsub.s32 0, %v461
    %v463 = vrot.slane %v217, %v462
    %v464 = vlaneseq
    %v465 = vshrl.u32 %v464, 7
    %v466 = vsub.s32 0, %v465
    %v467 = vrot.slane %v218, %v466
    %v468 = vmul.f32 %v454, %v459
    %v469 = vmul.f32 %v454, %v463
    %v470 = vmul.f32 %v454, %v467
    %474 = vrot.lane.b32.xlu0 %v468, 112
    %v475 = vpop.permute.xlu0 %474
    %476 = vrot.lane.b32.xlu0 %v469, 112
    %v477 = vpop.permute.xlu0 %476
    %478 = vrot.lane.b32.xlu0 %v470, 112
    %v479 = vpop.permute.xlu0 %478
    %v480 = vsel %vm370, %v475, %v477
    %v481 = vsel %vm370, %v477, %v479
    %v485 = vadd.f32 %v449, %v480
    %v486 = vadd.f32 %v450, %v481
    %v487 = vadd.f32 %v451, %v479
    %488 = vset.pattern.permute.xlu0 7
    %489 = vperm.xlu0 %488, %v69
    %v490 = vpop.permute.xlu0 %489
    %v492 = vmul.f32 %v490, %v276
    %v493 = vmul.f32 %v490, %v280
    %v494 = vmul.f32 %v490, %v284
    %498 = vrot.lane.b32.xlu0 %v492, 111
    %v499 = vpop.permute.xlu0 %498
    %500 = vrot.lane.b32.xlu0 %v493, 111
    %v501 = vpop.permute.xlu0 %500
    %502 = vrot.lane.b32.xlu0 %v494, 111
    %v503 = vpop.permute.xlu0 %502
    %v504 = vsel %vm407, %v499, %v501
    %v505 = vsel %vm407, %v501, %v503
    %v509 = vadd.f32 %v485, %v504
    %v510 = vadd.f32 %v486, %v505
    %v511 = vadd.f32 %v487, %v503
    %512 = vset.pattern.permute.xlu0 8
    %513 = vperm.xlu0 %512, %v69
    %v514 = vpop.permute.xlu0 %513
    %v516 = vmul.f32 %v514, %v313
    %v517 = vmul.f32 %v514, %v317
    %v518 = vmul.f32 %v514, %v321
    %522 = vrot.lane.b32.xlu0 %v516, 111
    %v523 = vpop.permute.xlu0 %522
    %524 = vrot.lane.b32.xlu0 %v517, 111
    %v525 = vpop.permute.xlu0 %524
    %526 = vrot.lane.b32.xlu0 %v518, 111
    %v527 = vpop.permute.xlu0 %526
    %v528 = vsel %vm407, %v523, %v525
    %v529 = vsel %vm407, %v525, %v527
    %v533 = vadd.f32 %v509, %v528
    %v534 = vadd.f32 %v510, %v529
    %v535 = vadd.f32 %v511, %v527
    %537 = vset.pattern.permute.xlu0 0
    %538 = vperm.xlu0 %537, %v70
    %v539 = vpop.permute.xlu0 %538
    %v541 = vmul.f32 %v533, %v539
    %v542 = vmul.f32 %v534, %v539
    %v543 = vmul.f32 %v535, %v539
    %545 = vset.pattern.permute.xlu0 0
    %546 = vperm.xlu0 %545, %v71
    %v547 = vpop.permute.xlu0 %546
    %v549 = vadd.f32 %v541, %v547
    %v550 = vadd.f32 %v542, %v547
    %v551 = vadd.f32 %v543, %v547
    %v552 = vmax.f32 %v549, 0.0
    %v553 = vmax.f32 %v550, 0.0
    %v554 = vmax.f32 %v551, 0.0
    %v555 = vmul.f32 %v249, %v276
    %v556 = vmul.f32 %v249, %v280
    %v557 = vmul.f32 %v249, %v284
    %v558 = vadd.f32 %v555, 0.0
    %v559 = vadd.f32 %v556, 0.0
    %v560 = vadd.f32 %v557, 0.0
    %v561 = vmul.f32 %v271, %v313
    %v562 = vmul.f32 %v271, %v317
    %v563 = vmul.f32 %v271, %v321
    %v564 = vadd.f32 %v558, %v561
    %v565 = vadd.f32 %v559, %v562
    %v566 = vadd.f32 %v560, %v563
    %v567 = vlaneseq
    %v568 = vshrl.u32 %v567, 7
    %v569 = vsub.s32 0, %v568
    %v570 = vrot.slane %v189, %v569
    %v571 = vlaneseq
    %v572 = vshrl.u32 %v571, 7
    %v573 = vsub.s32 0, %v572
    %v574 = vrot.slane %v190, %v573
    %v575 = vlaneseq
    %v576 = vshrl.u32 %v575, 7
    %v577 = vsub.s32 0, %v576
    %v578 = vrot.slane %v191, %v577
    %v579 = vmul.f32 %v308, %v570
    %v580 = vmul.f32 %v308, %v574
    %v581 = vmul.f32 %v308, %v578
    %585 = vrot.lane.b32.xlu0 %v579, 127
    %v586 = vpop.permute.xlu0 %585
    %587 = vrot.lane.b32.xlu0 %v580, 127
    %v588 = vpop.permute.xlu0 %587
    %589 = vrot.lane.b32.xlu0 %v581, 127
    %v590 = vpop.permute.xlu0 %589
    %v591 = vsel %vm297, %v586, %v588
    %v592 = vsel %vm297, %v588, %v590
    %v596 = vadd.f32 %v564, %v591
    %v597 = vadd.f32 %v565, %v592
    %v598 = vadd.f32 %v566, %v590
    %v599 = vmul.f32 %v344, %v386
    %v600 = vmul.f32 %v344, %v390
    %v601 = vmul.f32 %v344, %v394
    %605 = vrot.lane.b32.xlu0 %v599, 112
    %v606 = vpop.permute.xlu0 %605
    %607 = vrot.lane.b32.xlu0 %v600, 112
    %v608 = vpop.permute.xlu0 %607
    %609 = vrot.lane.b32.xlu0 %v601, 112
    %v610 = vpop.permute.xlu0 %609
    %v611 = vsel %vm370, %v606, %v608
    %v612 = vsel %vm370, %v608, %v610
    %v616 = vadd.f32 %v596, %v611
    %v617 = vadd.f32 %v597, %v612
    %v618 = vadd.f32 %v598, %v610
    %v619 = vmul.f32 %v381, %v423
    %v620 = vmul.f32 %v381, %v427
    %v621 = vmul.f32 %v381, %v431
    %625 = vrot.lane.b32.xlu0 %v619, 112
    %v626 = vpop.permute.xlu0 %625
    %627 = vrot.lane.b32.xlu0 %v620, 112
    %v628 = vpop.permute.xlu0 %627
    %629 = vrot.lane.b32.xlu0 %v621, 112
    %v630 = vpop.permute.xlu0 %629
    %v631 = vsel %vm370, %v626, %v628
    %v632 = vsel %vm370, %v628, %v630
    %v636 = vadd.f32 %v616, %v631
    %v637 = vadd.f32 %v617, %v632
    %v638 = vadd.f32 %v618, %v630
    %v639 = vlaneseq
    %v640 = vshrl.u32 %v639, 7
    %v641 = vsub.s32 0, %v640
    %v642 = vrot.slane %v213, %v641
    %v643 = vlaneseq
    %v644 = vshrl.u32 %v643, 7
    %v645 = vsub.s32 0, %v644
    %v646 = vrot.slane %v214, %v645
    %v647 = vlaneseq
    %v648 = vshrl.u32 %v647, 7
    %v649 = vsub.s32 0, %v648
    %v650 = vrot.slane %v215, %v649
    %v651 = vmul.f32 %v418, %v642
    %v652 = vmul.f32 %v418, %v646
    %v653 = vmul.f32 %v418, %v650
    %657 = vrot.lane.b32.xlu0 %v651, 111
    %v658 = vpop.permute.xlu0 %657
    %659 = vrot.lane.b32.xlu0 %v652, 111
    %v660 = vpop.permute.xlu0 %659
    %661 = vrot.lane.b32.xlu0 %v653, 111
    %v662 = vpop.permute.xlu0 %661
    %v663 = vsel %vm407, %v658, %v660
    %v664 = vsel %vm407, %v660, %v662
    %v668 = vadd.f32 %v636, %v663
    %v669 = vadd.f32 %v637, %v664
    %v670 = vadd.f32 %v638, %v662
    %v671 = vmul.f32 %v454, %v276
    %v672 = vmul.f32 %v454, %v280
    %v673 = vmul.f32 %v454, %v284
    %677 = vrot.lane.b32.xlu0 %v671, 112
    %v678 = vpop.permute.xlu0 %677
    %679 = vrot.lane.b32.xlu0 %v672, 112
    %v680 = vpop.permute.xlu0 %679
    %681 = vrot.lane.b32.xlu0 %v673, 112
    %v682 = vpop.permute.xlu0 %681
    %v683 = vsel %vm370, %v678, %v680
    %v684 = vsel %vm370, %v680, %v682
    %v688 = vadd.f32 %v668, %v683
    %v689 = vadd.f32 %v669, %v684
    %v690 = vadd.f32 %v670, %v682
    %v691 = vmul.f32 %v490, %v313
    %v692 = vmul.f32 %v490, %v317
    %v693 = vmul.f32 %v490, %v321
    %697 = vrot.lane.b32.xlu0 %v691, 112
    %v698 = vpop.permute.xlu0 %697
    %699 = vrot.lane.b32.xlu0 %v692, 112
    %v700 = vpop.permute.xlu0 %699
    %701 = vrot.lane.b32.xlu0 %v693, 112
    %v702 = vpop.permute.xlu0 %701
    %v703 = vsel %vm370, %v698, %v700
    %v704 = vsel %vm370, %v700, %v702
    %v708 = vadd.f32 %v688, %v703
    %v709 = vadd.f32 %v689, %v704
    %v710 = vadd.f32 %v690, %v702
    %v711 = vlaneseq
    %v712 = vshrl.u32 %v711, 7
    %v713 = vsub.s32 0, %v712
    %v714 = vrot.slane %v219, %v713
    %v715 = vlaneseq
    %v716 = vshrl.u32 %v715, 7
    %v717 = vsub.s32 0, %v716
    %v718 = vrot.slane %v220, %v717
    %v719 = vlaneseq
    %v720 = vshrl.u32 %v719, 7
    %v721 = vsub.s32 0, %v720
    %v722 = vrot.slane %v221, %v721
    %v723 = vmul.f32 %v514, %v714
    %v724 = vmul.f32 %v514, %v718
    %v725 = vmul.f32 %v514, %v722
    %729 = vrot.lane.b32.xlu0 %v723, 111
    %v730 = vpop.permute.xlu0 %729
    %731 = vrot.lane.b32.xlu0 %v724, 111
    %v732 = vpop.permute.xlu0 %731
    %733 = vrot.lane.b32.xlu0 %v725, 111
    %v734 = vpop.permute.xlu0 %733
    %v735 = vsel %vm407, %v730, %v732
    %v736 = vsel %vm407, %v732, %v734
    %v740 = vadd.f32 %v708, %v735
    %v741 = vadd.f32 %v709, %v736
    %v742 = vadd.f32 %v710, %v734
    %v743 = vmul.f32 %v740, %v539
    %v744 = vmul.f32 %v741, %v539
    %v745 = vmul.f32 %v742, %v539
    %v746 = vadd.f32 %v743, %v547
    %v747 = vadd.f32 %v744, %v547
    %v748 = vadd.f32 %v745, %v547
    %v749 = vmax.f32 %v746, 0.0
    %v750 = vmax.f32 %v747, 0.0
    %v751 = vmax.f32 %v748, 0.0
    %755 = vrot.lane.b32.xlu0 %v749, 127
    %v756 = vpop.permute.xlu0 %755
    %757 = vrot.lane.b32.xlu0 %v750, 127
    %v758 = vpop.permute.xlu0 %757
    %759 = vrot.lane.b32.xlu0 %v751, 127
    %v760 = vpop.permute.xlu0 %759
    %v761 = vsel %vm297, %v756, %v758
    %v762 = vsel %vm297, %v758, %v760
    %v766 = vmax.f32 %v552, %v761
    %v767 = vmax.f32 %v553, %v762
    %v768 = vmax.f32 %v554, %v760
    %v769 = vmul.f32 %v249, %v349
    %v770 = vmul.f32 %v249, %v353
    %v771 = vmul.f32 %v249, %v357
    %v772 = vadd.f32 %v769, 0.0
    %v773 = vadd.f32 %v770, 0.0
    %v774 = vadd.f32 %v771, 0.0
    %v775 = vmul.f32 %v271, %v386
    %v776 = vmul.f32 %v271, %v390
    %v777 = vmul.f32 %v271, %v394
    %781 = vrot.lane.b32.xlu0 %v775, 127
    %v782 = vpop.permute.xlu0 %781
    %783 = vrot.lane.b32.xlu0 %v776, 127
    %v784 = vpop.permute.xlu0 %783
    %785 = vrot.lane.b32.xlu0 %v777, 127
    %v786 = vpop.permute.xlu0 %785
    %v787 = vsel %vm297, %v782, %v784
    %v788 = vsel %vm297, %v784, %v786
    %v792 = vadd.f32 %v772, %v787
    %v793 = vadd.f32 %v773, %v788
    %v794 = vadd.f32 %v774, %v786
    %v795 = vmul.f32 %v308, %v423
    %v796 = vmul.f32 %v308, %v427
    %v797 = vmul.f32 %v308, %v431
    %801 = vrot.lane.b32.xlu0 %v795, 127
    %v802 = vpop.permute.xlu0 %801
    %803 = vrot.lane.b32.xlu0 %v796, 127
    %v804 = vpop.permute.xlu0 %803
    %805 = vrot.lane.b32.xlu0 %v797, 127
    %v806 = vpop.permute.xlu0 %805
    %v807 = vsel %vm297, %v802, %v804
    %v808 = vsel %vm297, %v804, %v806
    %v812 = vadd.f32 %v792, %v807
    %v813 = vadd.f32 %v793, %v808
    %v814 = vadd.f32 %v794, %v806
    %v815 = vmul.f32 %v344, %v459
    %v816 = vmul.f32 %v344, %v463
    %v817 = vmul.f32 %v344, %v467
    %v818 = vadd.f32 %v812, %v815
    %v819 = vadd.f32 %v813, %v816
    %v820 = vadd.f32 %v814, %v817
    %v821 = vmul.f32 %v381, %v276
    %v822 = vmul.f32 %v381, %v280
    %v823 = vmul.f32 %v381, %v284
    %827 = vrot.lane.b32.xlu0 %v821, 127
    %v828 = vpop.permute.xlu0 %827
    %829 = vrot.lane.b32.xlu0 %v822, 127
    %v830 = vpop.permute.xlu0 %829
    %831 = vrot.lane.b32.xlu0 %v823, 127
    %v832 = vpop.permute.xlu0 %831
    %v833 = vsel %vm297, %v828, %v830
    %v834 = vsel %vm297, %v830, %v832
    %v838 = vadd.f32 %v818, %v833
    %v839 = vadd.f32 %v819, %v834
    %v840 = vadd.f32 %v820, %v832
    %v841 = vmul.f32 %v418, %v313
    %v842 = vmul.f32 %v418, %v317
    %v843 = vmul.f32 %v418, %v321
    %847 = vrot.lane.b32.xlu0 %v841, 127
    %v848 = vpop.permute.xlu0 %847
    %849 = vrot.lane.b32.xlu0 %v842, 127
    %v850 = vpop.permute.xlu0 %849
    %851 = vrot.lane.b32.xlu0 %v843, 127
    %v852 = vpop.permute.xlu0 %851
    %v853 = vsel %vm297, %v848, %v850
    %v854 = vsel %vm297, %v850, %v852
    %v858 = vadd.f32 %v838, %v853
    %v859 = vadd.f32 %v839, %v854
    %v860 = vadd.f32 %v840, %v852
    %v861 = vlaneseq
    %v862 = vshrl.u32 %v861, 7
    %v863 = vsub.s32 0, %v862
    %v864 = vrot.slane %v231, %v863
    %v865 = vlaneseq
    %v866 = vshrl.u32 %v865, 7
    %v867 = vsub.s32 0, %v866
    %v868 = vrot.slane %v232, %v867
    %v869 = vlaneseq
    %v870 = vshrl.u32 %v869, 7
    %v871 = vsub.s32 0, %v870
    %v872 = vrot.slane %v233, %v871
    %v873 = vmul.f32 %v454, %v864
    %v874 = vmul.f32 %v454, %v868
    %v875 = vmul.f32 %v454, %v872
    %879 = vrot.lane.b32.xlu0 %v873, 112
    %v880 = vpop.permute.xlu0 %879
    %881 = vrot.lane.b32.xlu0 %v874, 112
    %v882 = vpop.permute.xlu0 %881
    %883 = vrot.lane.b32.xlu0 %v875, 112
    %v884 = vpop.permute.xlu0 %883
    %v885 = vsel %vm370, %v880, %v882
    %v886 = vsel %vm370, %v882, %v884
    %v890 = vadd.f32 %v858, %v885
    %v891 = vadd.f32 %v859, %v886
    %v892 = vadd.f32 %v860, %v884
    %v893 = vmul.f32 %v490, %v386
    %v894 = vmul.f32 %v490, %v390
    %v895 = vmul.f32 %v490, %v394
    %899 = vrot.lane.b32.xlu0 %v893, 111
    %v900 = vpop.permute.xlu0 %899
    %901 = vrot.lane.b32.xlu0 %v894, 111
    %v902 = vpop.permute.xlu0 %901
    %903 = vrot.lane.b32.xlu0 %v895, 111
    %v904 = vpop.permute.xlu0 %903
    %v905 = vsel %vm407, %v900, %v902
    %v906 = vsel %vm407, %v902, %v904
    %v910 = vadd.f32 %v890, %v905
    %v911 = vadd.f32 %v891, %v906
    %v912 = vadd.f32 %v892, %v904
    %v913 = vmul.f32 %v514, %v423
    %v914 = vmul.f32 %v514, %v427
    %v915 = vmul.f32 %v514, %v431
    %919 = vrot.lane.b32.xlu0 %v913, 111
    %v920 = vpop.permute.xlu0 %919
    %921 = vrot.lane.b32.xlu0 %v914, 111
    %v922 = vpop.permute.xlu0 %921
    %923 = vrot.lane.b32.xlu0 %v915, 111
    %v924 = vpop.permute.xlu0 %923
    %v925 = vsel %vm407, %v920, %v922
    %v926 = vsel %vm407, %v922, %v924
    %v930 = vadd.f32 %v910, %v925
    %v931 = vadd.f32 %v911, %v926
    %v932 = vadd.f32 %v912, %v924
    %v933 = vmul.f32 %v930, %v539
    %v934 = vmul.f32 %v931, %v539
    %v935 = vmul.f32 %v932, %v539
    %v936 = vadd.f32 %v933, %v547
    %v937 = vadd.f32 %v934, %v547
    %v938 = vadd.f32 %v935, %v547
    %v939 = vmax.f32 %v936, 0.0
    %v940 = vmax.f32 %v937, 0.0
    %v941 = vmax.f32 %v938, 0.0
    %945 = vrot.lane.b32.xlu0 %v939, 112
    %v946 = vpop.permute.xlu0 %945
    %947 = vrot.lane.b32.xlu0 %v940, 112
    %v948 = vpop.permute.xlu0 %947
    %949 = vrot.lane.b32.xlu0 %v941, 112
    %v950 = vpop.permute.xlu0 %949
    %v951 = vsel %vm370, %v946, %v948
    %v952 = vsel %vm370, %v948, %v950
    %v956 = vmax.f32 %v766, %v951
    %v957 = vmax.f32 %v767, %v952
    %v958 = vmax.f32 %v768, %v950
    %v959 = vmul.f32 %v249, %v386
    %v960 = vmul.f32 %v249, %v390
    %v961 = vmul.f32 %v249, %v394
    %v962 = vadd.f32 %v959, 0.0
    %v963 = vadd.f32 %v960, 0.0
    %v964 = vadd.f32 %v961, 0.0
    %v965 = vmul.f32 %v271, %v423
    %v966 = vmul.f32 %v271, %v427
    %v967 = vmul.f32 %v271, %v431
    %v968 = vadd.f32 %v962, %v965
    %v969 = vadd.f32 %v963, %v966
    %v970 = vadd.f32 %v964, %v967
    %v971 = vmul.f32 %v308, %v642
    %v972 = vmul.f32 %v308, %v646
    %v973 = vmul.f32 %v308, %v650
    %977 = vrot.lane.b32.xlu0 %v971, 127
    %v978 = vpop.permute.xlu0 %977
    %979 = vrot.lane.b32.xlu0 %v972, 127
    %v980 = vpop.permute.xlu0 %979
    %981 = vrot.lane.b32.xlu0 %v973, 127
    %v982 = vpop.permute.xlu0 %981
    %v983 = vsel %vm297, %v978, %v980
    %v984 = vsel %vm297, %v980, %v982
    %v988 = vadd.f32 %v968, %v983
    %v989 = vadd.f32 %v969, %v984
    %v990 = vadd.f32 %v970, %v982
    %v991 = vmul.f32 %v344, %v276
    %v992 = vmul.f32 %v344, %v280
    %v993 = vmul.f32 %v344, %v284
    %v994 = vadd.f32 %v988, %v991
    %v995 = vadd.f32 %v989, %v992
    %v996 = vadd.f32 %v990, %v993
    %v997 = vmul.f32 %v381, %v313
    %v998 = vmul.f32 %v381, %v317
    %v999 = vmul.f32 %v381, %v321
    %v1000 = vadd.f32 %v994, %v997
    %v1001 = vadd.f32 %v995, %v998
    %v1002 = vadd.f32 %v996, %v999
    %v1003 = vmul.f32 %v418, %v714
    %v1004 = vmul.f32 %v418, %v718
    %v1005 = vmul.f32 %v418, %v722
    %1009 = vrot.lane.b32.xlu0 %v1003, 127
    %v1010 = vpop.permute.xlu0 %1009
    %1011 = vrot.lane.b32.xlu0 %v1004, 127
    %v1012 = vpop.permute.xlu0 %1011
    %1013 = vrot.lane.b32.xlu0 %v1005, 127
    %v1014 = vpop.permute.xlu0 %1013
    %v1015 = vsel %vm297, %v1010, %v1012
    %v1016 = vsel %vm297, %v1012, %v1014
    %v1020 = vadd.f32 %v1000, %v1015
    %v1021 = vadd.f32 %v1001, %v1016
    %v1022 = vadd.f32 %v1002, %v1014
    %v1023 = vmul.f32 %v454, %v386
    %v1024 = vmul.f32 %v454, %v390
    %v1025 = vmul.f32 %v454, %v394
    %1029 = vrot.lane.b32.xlu0 %v1023, 112
    %v1030 = vpop.permute.xlu0 %1029
    %1031 = vrot.lane.b32.xlu0 %v1024, 112
    %v1032 = vpop.permute.xlu0 %1031
    %1033 = vrot.lane.b32.xlu0 %v1025, 112
    %v1034 = vpop.permute.xlu0 %1033
    %v1035 = vsel %vm370, %v1030, %v1032
    %v1036 = vsel %vm370, %v1032, %v1034
    %v1040 = vadd.f32 %v1020, %v1035
    %v1041 = vadd.f32 %v1021, %v1036
    %v1042 = vadd.f32 %v1022, %v1034
    %v1043 = vmul.f32 %v490, %v423
    %v1044 = vmul.f32 %v490, %v427
    %v1045 = vmul.f32 %v490, %v431
    %1049 = vrot.lane.b32.xlu0 %v1043, 112
    %v1050 = vpop.permute.xlu0 %1049
    %1051 = vrot.lane.b32.xlu0 %v1044, 112
    %v1052 = vpop.permute.xlu0 %1051
    %1053 = vrot.lane.b32.xlu0 %v1045, 112
    %v1054 = vpop.permute.xlu0 %1053
    %v1055 = vsel %vm370, %v1050, %v1052
    %v1056 = vsel %vm370, %v1052, %v1054
    %v1060 = vadd.f32 %v1040, %v1055
    %v1061 = vadd.f32 %v1041, %v1056
    %v1062 = vadd.f32 %v1042, %v1054
    %v1063 = vlaneseq
    %v1064 = vshrl.u32 %v1063, 7
    %v1065 = vsub.s32 0, %v1064
    %v1066 = vrot.slane %v243, %v1065
    %v1067 = vlaneseq
    %v1068 = vshrl.u32 %v1067, 7
    %v1069 = vsub.s32 0, %v1068
    %v1070 = vrot.slane %v244, %v1069
    %v1071 = vlaneseq
    %v1072 = vshrl.u32 %v1071, 7
    %v1073 = vsub.s32 0, %v1072
    %v1074 = vrot.slane %v245, %v1073
    %v1075 = vmul.f32 %v514, %v1066
    %v1076 = vmul.f32 %v514, %v1070
    %v1077 = vmul.f32 %v514, %v1074
    %1081 = vrot.lane.b32.xlu0 %v1075, 111
    %v1082 = vpop.permute.xlu0 %1081
    %1083 = vrot.lane.b32.xlu0 %v1076, 111
    %v1084 = vpop.permute.xlu0 %1083
    %1085 = vrot.lane.b32.xlu0 %v1077, 111
    %v1086 = vpop.permute.xlu0 %1085
    %v1087 = vsel %vm407, %v1082, %v1084
    %v1088 = vsel %vm407, %v1084, %v1086
    %v1092 = vadd.f32 %v1060, %v1087
    %v1093 = vadd.f32 %v1061, %v1088
    %v1094 = vadd.f32 %v1062, %v1086
    %v1095 = vmul.f32 %v1092, %v539
    %v1096 = vmul.f32 %v1093, %v539
    %v1097 = vmul.f32 %v1094, %v539
    %v1098 = vadd.f32 %v1095, %v547
    %v1099 = vadd.f32 %v1096, %v547
    %v1100 = vadd.f32 %v1097, %v547
    %v1101 = vmax.f32 %v1098, 0.0
    %v1102 = vmax.f32 %v1099, 0.0
    %v1103 = vmax.f32 %v1100, 0.0
    %1107 = vrot.lane.b32.xlu0 %v1101, 111
    %v1108 = vpop.permute.xlu0 %1107
    %1109 = vrot.lane.b32.xlu0 %v1102, 111
    %v1110 = vpop.permute.xlu0 %1109
    %1111 = vrot.lane.b32.xlu0 %v1103, 111
    %v1112 = vpop.permute.xlu0 %1111
    %v1113 = vsel %vm407, %v1108, %v1110
    %v1114 = vsel %vm407, %v1110, %v1112
    %v1118 = vmax.f32 %v956, %v1113
    %v1119 = vmax.f32 %v957, %v1114
    %v1120 = vmax.f32 %v958, %v1112
    %v1121 = vld [vmem:[%s4] sm:$0xff]
    %v1122 = vld [vmem:[%s4 + $0x8] sm:$0xff]
    %v1123 = vld [vmem:[%s5] sm:$0xff]
    %v1124 = vld [vmem:[%s5 + $0x8] sm:$0xff]
    %v1125 = vld [vmem:[%s6] sm:$0xff]
    %v1126 = vld [vmem:[%s6 + $0x8] sm:$0xff]
    %v1127 = vld [vmem:[%s16] sm:$0xff]
    %v1128 = vld [vmem:[%s16 + $0x8] sm:$0xff]
    %v1129 = vld [vmem:[%s16 + $0x10] sm:$0xff]
    %v1130 = vld [vmem:[%s16 + $0x18] sm:$0xff]
    %v1131 = vld [vmem:[%s16 + $0x20] sm:$0xff]
    %v1132 = vld [vmem:[%s16 + $0x28] sm:$0xff]
    %v1133 = vld [vmem:[%s16 + $0x30] sm:$0xff]
    %v1134 = vld [vmem:[%s16 + $0x38] sm:$0xff]
    %v1135 = vld [vmem:[%s16 + $0x40] sm:$0xff]
    %v1136 = vld [vmem:[%s16 + $0x48] sm:$0xff]
    %v1137 = vld [vmem:[%s16 + $0x50] sm:$0xff]
    %v1138 = vld [vmem:[%s16 + $0x58] sm:$0xff]
    %v1139 = vld [vmem:[%s16 + $0x60] sm:$0xff]
    %v1140 = vld [vmem:[%s16 + $0x68] sm:$0xff]
    %v1141 = vld [vmem:[%s16 + $0x70] sm:$0xff]
    %v1142 = vld [vmem:[%s16 + $0x78] sm:$0xff]
    %v1143 = vld [vmem:[%s16 + $0x80] sm:$0xff]
    %v1144 = vld [vmem:[%s16 + $0x88] sm:$0xff]
    %v1145 = vld [vmem:[%s16 + $0x90] sm:$0xff]
    %v1146 = vld [vmem:[%s16 + $0x98] sm:$0xff]
    %v1147 = vld [vmem:[%s16 + $0xa0] sm:$0xff]
    %v1148 = vld [vmem:[%s16 + $0xa8] sm:$0xff]
    %v1149 = vld [vmem:[%s16 + $0xb0] sm:$0xff]
    %v1150 = vld [vmem:[%s16 + $0xb8] sm:$0xff]
    %v1151 = vld [vmem:[%s16 + $0xc0] sm:$0xff]
    %v1152 = vld [vmem:[%s16 + $0xc8] sm:$0xff]
    %v1153 = vld [vmem:[%s16 + $0xd0] sm:$0xff]
    %v1154 = vld [vmem:[%s16 + $0xd8] sm:$0xff]
    %v1155 = vld [vmem:[%s16 + $0xe0] sm:$0xff]
    %v1156 = vld [vmem:[%s16 + $0xe8] sm:$0xff]
    %v1157 = vld [vmem:[%s16 + $0xf0] sm:$0xff]
    %v1158 = vld [vmem:[%s16 + $0xf8] sm:$0xff]
    %1162 = vrot.lane.b32.xlu0 %v1118, 16
    %v1163 = vpop.permute.xlu0 %1162
    %1164 = vrot.lane.b32.xlu0 %v1119, 16
    %v1165 = vpop.permute.xlu0 %1164
    %1166 = vrot.lane.b32.xlu0 %v1120, 16
    %v1167 = vpop.permute.xlu0 %1166
    %vm1168 = vcmask 130048
    %v1169 = vsel %vm1168, %v1163, %v1165
    %v1170 = vsel %vm1168, %v1165, %v1167
    %v1174 = vsel %vm196, 0.0, %v1163
    %v1175 = vsel %vm196, %v1170, 0.0
    %v1178 = vlaneseq
    %v1179 = vshrl.u32 %v1178, 7
    %v1180 = vsub.s32 0, %v1179
    %v1181 = vrot.slane %v155, %v1180
    %v1182 = vlaneseq
    %v1183 = vshrl.u32 %v1182, 7
    %v1184 = vsub.s32 0, %v1183
    %v1185 = vrot.slane %v159, %v1184
    %v1186 = vmul.f32 %v1174, %v1181
    %v1187 = vmul.f32 %v1169, %v1185
    %v1190 = vlaneseq
    %v1191 = vshrl.u32 %v1190, 7
    %v1192 = vsub.s32 1, %v1191
    %v1193 = vrot.slane %v175, %v1192
    %v1194 = vlaneseq
    %v1195 = vshrl.u32 %v1194, 7
    %v1196 = vsub.s32 1, %v1195
    %v1197 = vrot.slane %v179, %v1196
    %1200 = vrot.lane.b32.xlu0 %v1193, 2
    %v1201 = vpop.permute.xlu0 %1200
    %1202 = vrot.lane.b32.xlu0 %v1197, 2
    %v1203 = vpop.permute.xlu0 %1202
    %vm1204 = vcmask 15360
    %v1205 = vsel %vm1204, %v1201, %v1203
    %v1209 = vmul.f32 %v1174, %v1201
    %v1210 = vmul.f32 %v1169, %v1205
    %v1211 = vmul.f32 %v1175, %v1203
    %1214 = vrot.lane.b32.xlu0 %v1181, 16
    %v1215 = vpop.permute.xlu0 %1214
    %1216 = vrot.lane.b32.xlu0 %v1185, 16
    %v1217 = vpop.permute.xlu0 %1216
    %v1218 = vsel %vm1168, %v1215, %v1217
    %v1222 = vmul.f32 %v1174, %v1215
    %v1223 = vmul.f32 %v1169, %v1218
    %v1224 = vmul.f32 %v1175, %v1217
    %1225 = vrot.lane.b32.xlu0 %v1193, 18
    %v1226 = vpop.permute.xlu0 %1225
    %1227 = vrot.lane.b32.xlu0 %v1197, 18
    %v1228 = vpop.permute.xlu0 %1227
    %v1229 = vsel %vm90, %v1226, %v1228
    %v1233 = vmul.f32 %v1174, %v1226
    %v1234 = vmul.f32 %v1169, %v1229
    %v1235 = vmul.f32 %v1175, %v1228
    %1236 = vrot.lane.b32.xlu0 %v1181, 32
    %v1237 = vpop.permute.xlu0 %1236
    %1238 = vrot.lane.b32.xlu0 %v1185, 32
    %v1239 = vpop.permute.xlu0 %1238
    %vm1240 = vcmask 261120
    %v1241 = vsel %vm1240, %v1237, %v1239
    %v1245 = vmul.f32 %v1174, %v1237
    %v1246 = vmul.f32 %v1169, %v1241
    %v1247 = vmul.f32 %v1175, %v1239
    %1248 = vrot.lane.b32.xlu0 %v1193, 34
    %v1249 = vpop.permute.xlu0 %1248
    %1250 = vrot.lane.b32.xlu0 %v1197, 34
    %v1251 = vpop.permute.xlu0 %1250
    %vm1252 = vcmask 277504
    %v1253 = vsel %vm1252, %v1249, %v1251
    %v1257 = vmul.f32 %v1174, %v1249
    %v1258 = vmul.f32 %v1169, %v1253
    %v1259 = vmul.f32 %v1175, %v1251
    %1262 = vrot.lane.b32.xlu0 %v1174, 127
    %v1263 = vpop.permute.xlu0 %1262
    %1264 = vrot.lane.b32.xlu0 %v1169, 127
    %v1265 = vpop.permute.xlu0 %1264
    %1266 = vrot.lane.b32.xlu0 %v1175, 127
    %v1267 = vpop.permute.xlu0 %1266
    %v1268 = vsel %vm297, %v1263, %v1265
    %v1269 = vsel %vm297, %v1265, %v1267
    %1275 = vrot.lane.b32.xlu0 %v1209, 126
    %v1276 = vpop.permute.xlu0 %1275
    %1277 = vrot.lane.b32.xlu0 %v1210, 126
    %v1278 = vpop.permute.xlu0 %1277
    %1279 = vrot.lane.b32.xlu0 %v1211, 126
    %v1280 = vpop.permute.xlu0 %1279
    %vm1281 = vcmask 1031168
    %v1282 = vsel %vm1281, %v1276, %v1278
    %v1283 = vsel %vm1281, %v1278, %v1280
    %1289 = vrot.lane.b32.xlu0 %v1222, 112
    %v1290 = vpop.permute.xlu0 %1289
    %1291 = vrot.lane.b32.xlu0 %v1223, 112
    %v1292 = vpop.permute.xlu0 %1291
    %1293 = vrot.lane.b32.xlu0 %v1224, 112
    %v1294 = vpop.permute.xlu0 %1293
    %v1295 = vsel %vm370, %v1290, %v1292
    %v1296 = vsel %vm370, %v1292, %v1294
    %1299 = vrot.lane.b32.xlu0 %v1174, 111
    %v1300 = vpop.permute.xlu0 %1299
    %1301 = vrot.lane.b32.xlu0 %v1169, 111
    %v1302 = vpop.permute.xlu0 %1301
    %1303 = vrot.lane.b32.xlu0 %v1175, 111
    %v1304 = vpop.permute.xlu0 %1303
    %v1305 = vsel %vm407, %v1300, %v1302
    %v1306 = vsel %vm407, %v1302, %v1304
    %1312 = vrot.lane.b32.xlu0 %v1233, 110
    %v1313 = vpop.permute.xlu0 %1312
    %1314 = vrot.lane.b32.xlu0 %v1234, 110
    %v1315 = vpop.permute.xlu0 %1314
    %1316 = vrot.lane.b32.xlu0 %v1235, 110
    %v1317 = vpop.permute.xlu0 %1316
    %vm1318 = vcmask 900096
    %v1319 = vsel %vm1318, %v1313, %v1315
    %v1320 = vsel %vm1318, %v1315, %v1317
    %1326 = vrot.lane.b32.xlu0 %v1245, 96
    %v1327 = vpop.permute.xlu0 %1326
    %1328 = vrot.lane.b32.xlu0 %v1246, 96
    %v1329 = vpop.permute.xlu0 %1328
    %1330 = vrot.lane.b32.xlu0 %v1247, 96
    %v1331 = vpop.permute.xlu0 %1330
    %vm1332 = vcmask 785408
    %v1333 = vsel %vm1332, %v1327, %v1329
    %v1334 = vsel %vm1332, %v1329, %v1331
    %1337 = vrot.lane.b32.xlu0 %v1174, 95
    %v1338 = vpop.permute.xlu0 %1337
    %1339 = vrot.lane.b32.xlu0 %v1169, 95
    %v1340 = vpop.permute.xlu0 %1339
    %1341 = vrot.lane.b32.xlu0 %v1175, 95
    %v1342 = vpop.permute.xlu0 %1341
    %vm1343 = vcmask 777216
    %v1344 = vsel %vm1343, %v1338, %v1340
    %v1345 = vsel %vm1343, %v1340, %v1342
    %1351 = vrot.lane.b32.xlu0 %v1257, 94
    %v1352 = vpop.permute.xlu0 %1351
    %1353 = vrot.lane.b32.xlu0 %v1258, 94
    %v1354 = vpop.permute.xlu0 %1353
    %1355 = vrot.lane.b32.xlu0 %v1259, 94
    %v1356 = vpop.permute.xlu0 %1355
    %vm1357 = vcmask 769024
    %v1358 = vsel %vm1357, %v1352, %v1354
    %v1359 = vsel %vm1357, %v1354, %v1356
    %vm1362 = vcmask 588800
    %v1364 = vsel %vm1362, %v1121, 0
    %v1367 = vsel %vm1362, %v1122, 0
    %1369 = vmatprep.subr.mxu0 %v1187
    %1370 = vmatpush1.msra.mxu0 %v1186
    %1371 = vmatprep.subr.mxu0 %v1269
    %1372 = vmatpush1.msra.mxu0 %v1268
    %1373 = vmatprep.subr.mxu0 %v1283
    %1374 = vmatpush1.msra.mxu0 %v1282
    %1375 = vmatprep.subr.mxu0 %v1296
    %1376 = vmatpush1.msra.mxu0 %v1295
    %1377 = vmatprep.subr.mxu0 %v1306
    %1378 = vmatpush1.msra.mxu0 %v1305
    %1379 = vmatprep.subr.mxu0 %v1320
    %1380 = vmatpush1.msra.mxu0 %v1319
    %1381 = vmatprep.subr.mxu0 %v1334
    %1382 = vmatpush1.msra.mxu0 %v1333
    %1383 = vmatprep.subr.mxu0 %v1345
    %1384 = vmatpush1.msra.mxu0 %v1344
    %1385 = vmatprep.subr.mxu0 %v1359
    %1386 = vmatpush1.msra.mxu0 %v1358
    %1387 = vmatprep.subr.mxu0 0.0
    %1388 = vmatpush1.msra.mxu0 0.0
    %1389 = vmatprep.subr.mxu0 0.0
    %1390 = vmatpush1.msra.mxu0 0.0
    %1391 = vmatprep.subr.mxu0 0.0
    %1392 = vmatpush1.msra.mxu0 0.0
    %1393 = vmatprep.subr.mxu0 0.0
    %1394 = vmatpush1.msra.mxu0 0.0
    %1395 = vmatprep.subr.mxu0 0.0
    %1396 = vmatpush1.msra.mxu0 0.0
    %1397 = vmatprep.subr.mxu0 0.0
    %1398 = vmatpush1.msra.mxu0 0.0
    %1399 = vmatprep.subr.mxu0 0.0
    %1400 = vmatpush1.msra.mxu0 0.0
    %1401 = vmatprep.subr.mxu0 0.0
    %1402 = vmatpush1.msra.mxu0 0.0
    %1403 = vmatprep.subr.mxu0 0.0
    %1404 = vmatpush1.msra.mxu0 0.0
    %1405 = vmatprep.subr.mxu0 0.0
    %1406 = vmatpush1.msra.mxu0 0.0
    %1407 = vmatprep.subr.mxu0 0.0
    %1408 = vmatpush1.msra.mxu0 0.0
    %1409 = vmatprep.subr.mxu0 0.0
    %1410 = vmatpush1.msra.mxu0 0.0
    %1411 = vmatprep.subr.mxu0 0.0
    %1412 = vmatpush1.msra.mxu0 0.0
    %1413 = vmatprep.subr.mxu0 0.0
    %1414 = vmatpush1.msra.mxu0 0.0
    %1415 = vmatprep.subr.mxu0 0.0
    %1416 = vmatpush1.msra.mxu0 0.0
    %1417 = vmatprep.subr.mxu0 0.0
    %1418 = vmatpush1.msra.mxu0 0.0
    %1419 = vmatprep.subr.mxu0 0.0
    %1420 = vmatpush1.msra.mxu0 0.0
    %1421 = vmatprep.subr.mxu0 0.0
    %1422 = vmatpush1.msra.mxu0 0.0
    %1423 = vmatprep.subr.mxu0 0.0
    %1424 = vmatpush1.msra.mxu0 0.0
    %1425 = vmatprep.subr.mxu0 0.0
    %1426 = vmatpush1.msra.mxu0 0.0
    %1427 = vmatprep.subr.mxu0 0.0
    %1428 = vmatpush1.msra.mxu0 0.0
    %1429 = vmatprep.subr.mxu0 0.0
    %1430 = vmatpush1.msra.mxu0 0.0
    %1431 = vmatprep.subr.mxu0 0.0
    %1432 = vmatpush1.msra.mxu0 0.0
    %1433 = vmatprep.mubr.f32.mxu0 0.0
    %1434 = vmatmul.mubr.f32.gmra.mrb[0].mxu0 %v1364
    %v1435 = vpop.f32.mrb[0].mxu0
    %v1436 = vadd.f32 0.0, %v1435
    %v1437 = vpop.f32.mrb[0].mxu0
    %v1438 = vadd.f32 0.0, %v1437
    %1439 = vmatprep.mubr.f32.mxu0 0.0
    %1440 = vmatmul.mubr.f32.gmra.mrb[0].mxu0 %v1367
    %v1441 = vpop.f32.mrb[0].mxu0
    %v1442 = vadd.f32 0.0, %v1441
    %v1443 = vpop.f32.mrb[0].mxu0
    %v1444 = vadd.f32 0.0, %v1443
    %1445 = vdwg.mxu0
    %1447 = vset.pattern.permute.xlu0 0
    %1448 = vperm.xlu0 %1447, %v1123
    %v1449 = vpop.permute.xlu0 %1448
    %1452 = vset.pattern.permute.xlu0 0
    %1453 = vperm.xlu0 %1452, %v1124
    %v1454 = vpop.permute.xlu0 %1453
    %v1456 = vmul.f32 %v1436, %v1449
    %v1457 = vmul.f32 %v1438, %v1449
    %v1458 = vmul.f32 %v1442, %v1454
    %v1459 = vmul.f32 %v1444, %v1454
    %1461 = vset.pattern.permute.xlu0 0
    %1462 = vperm.xlu0 %1461, %v1125
    %v1463 = vpop.permute.xlu0 %1462
    %1466 = vset.pattern.permute.xlu0 0
    %1467 = vperm.xlu0 %1466, %v1126
    %v1468 = vpop.permute.xlu0 %1467
    %v1470 = vadd.f32 %v1456, %v1463
    %v1471 = vadd.f32 %v1457, %v1463
    %v1472 = vadd.f32 %v1458, %v1468
    %v1473 = vadd.f32 %v1459, %v1468
    %v1474 = vmax.f32 %v1470, 0.0
    %v1475 = vmax.f32 %v1471, 0.0
    %v1476 = vmax.f32 %v1472, 0.0
    %v1477 = vmax.f32 %v1473, 0.0
    %1483 = vrot.lane.b32.xlu0 %v1474, 127
    %v1484 = vpop.permute.xlu0 %1483
    %1485 = vrot.lane.b32.xlu0 %v1475, 127
    %v1486 = vpop.permute.xlu0 %1485
    %1487 = vrot.lane.b32.xlu0 0.0, 127
    %v1488 = vpop.permute.xlu0 %1487
    %1489 = vrot.lane.b32.xlu0 %v1476, 127
    %v1490 = vpop.permute.xlu0 %1489
    %1491 = vrot.lane.b32.xlu0 %v1477, 127
    %v1492 = vpop.permute.xlu0 %1491
    %v1493 = vsel %vm297, %v1484, %v1486
    %v1494 = vsel %vm297, %v1486, %v1488
    %v1495 = vsel %vm297, %v1490, %v1492
    %v1496 = vsel %vm297, %v1492, %v1488
    %v1501 = vmax.f32 %v1474, %v1493
    %v1502 = vmax.f32 %v1475, %v1494
    %v1503 = vmax.f32 %v1476, %v1495
    %v1504 = vmax.f32 %v1477, %v1496
    %1505 = vrot.lane.b32.xlu0 %v1474, 112
    %v1506 = vpop.permute.xlu0 %1505
    %1507 = vrot.lane.b32.xlu0 %v1475, 112
    %v1508 = vpop.permute.xlu0 %1507
    %1509 = vrot.lane.b32.xlu0 0.0, 112
    %v1510 = vpop.permute.xlu0 %1509
    %1511 = vrot.lane.b32.xlu0 %v1476, 112
    %v1512 = vpop.permute.xlu0 %1511
    %1513 = vrot.lane.b32.xlu0 %v1477, 112
    %v1514 = vpop.permute.xlu0 %1513
    %v1515 = vsel %vm370, %v1506, %v1508
    %v1516 = vsel %vm370, %v1508, %v1510
    %v1517 = vsel %vm370, %v1512, %v1514
    %v1518 = vsel %vm370, %v1514, %v1510
    %v1523 = vmax.f32 %v1501, %v1515
    %v1524 = vmax.f32 %v1502, %v1516
    %v1525 = vmax.f32 %v1503, %v1517
    %v1526 = vmax.f32 %v1504, %v1518
    %1527 = vrot.lane.b32.xlu0 %v1474, 111
    %v1528 = vpop.permute.xlu0 %1527
    %1529 = vrot.lane.b32.xlu0 %v1475, 111
    %v1530 = vpop.permute.xlu0 %1529
    %1531 = vrot.lane.b32.xlu0 0.0, 111
    %v1532 = vpop.permute.xlu0 %1531
    %1533 = vrot.lane.b32.xlu0 %v1476, 111
    %v1534 = vpop.permute.xlu0 %1533
    %1535 = vrot.lane.b32.xlu0 %v1477, 111
    %v1536 = vpop.permute.xlu0 %1535
    %v1537 = vsel %vm407, %v1528, %v1530
    %v1538 = vsel %vm407, %v1530, %v1532
    %v1539 = vsel %vm407, %v1534, %v1536
    %v1540 = vsel %vm407, %v1536, %v1532
    %v1545 = vmax.f32 %v1523, %v1537
    %v1546 = vmax.f32 %v1524, %v1538
    %v1547 = vmax.f32 %v1525, %v1539
    %v1548 = vmax.f32 %v1526, %v1540
    %1549 = vmatprep.subr.mxu0 0.0
    %1550 = vmatpush1.msra.mxu0 %v1127
    %1551 = vmatprep.subr.mxu0 0.0
    %1552 = vmatpush1.msra.mxu0 %v1128
    %1553 = vmatprep.subr.mxu0 0.0
    %1554 = vmatpush1.msra.mxu0 %v1129
    %1555 = vmatprep.subr.mxu0 0.0
    %1556 = vmatpush1.msra.mxu0 %v1130
    %1557 = vmatprep.subr.mxu0 0.0
    %1558 = vmatpush1.msra.mxu0 %v1131
    %1559 = vmatprep.subr.mxu0 0.0
    %1560 = vmatpush1.msra.mxu0 %v1132
    %1561 = vmatprep.subr.mxu0 0.0
    %1562 = vmatpush1.msra.mxu0 %v1133
    %1563 = vmatprep.subr.mxu0 0.0
    %1564 = vmatpush1.msra.mxu0 %v1134
    %1565 = vmatprep.subr.mxu0 0.0
    %1566 = vmatpush1.msra.mxu0 %v1135
    %1567 = vmatprep.subr.mxu0 0.0
    %1568 = vmatpush1.msra.mxu0 %v1136
    %1569 = vmatprep.subr.mxu0 0.0
    %1570 = vmatpush1.msra.mxu0 %v1137
    %1571 = vmatprep.subr.mxu0 0.0
    %1572 = vmatpush1.msra.mxu0 %v1138
    %1573 = vmatprep.subr.mxu0 0.0
    %1574 = vmatpush1.msra.mxu0 %v1139
    %1575 = vmatprep.subr.mxu0 0.0
    %1576 = vmatpush1.msra.mxu0 %v1140
    %1577 = vmatprep.subr.mxu0 0.0
    %1578 = vmatpush1.msra.mxu0 %v1141
    %1579 = vmatprep.subr.mxu0 0.0
    %1580 = vmatpush1.msra.mxu0 %v1142
    %1581 = vmatprep.subr.mxu0 0.0
    %1582 = vmatpush1.msra.mxu0 %v1143
    %1583 = vmatprep.subr.mxu0 0.0
    %1584 = vmatpush1.msra.mxu0 %v1144
    %1585 = vmatprep.subr.mxu0 0.0
    %1586 = vmatpush1.msra.mxu0 %v1145
    %1587 = vmatprep.subr.mxu0 0.0
    %1588 = vmatpush1.msra.mxu0 %v1146
    %1589 = vmatprep.subr.mxu0 0.0
    %1590 = vmatpush1.msra.mxu0 %v1147
    %1591 = vmatprep.subr.mxu0 0.0
    %1592 = vmatpush1.msra.mxu0 %v1148
    %1593 = vmatprep.subr.mxu0 0.0
    %1594 = vmatpush1.msra.mxu0 %v1149
    %1595 = vmatprep.subr.mxu0 0.0
    %1596 = vmatpush1.msra.mxu0 %v1150
    %1597 = vmatprep.subr.mxu0 0.0
    %1598 = vmatpush1.msra.mxu0 %v1151
    %1599 = vmatprep.subr.mxu0 0.0
    %1600 = vmatpush1.msra.mxu0 %v1152
    %1601 = vmatprep.subr.mxu0 0.0
    %1602 = vmatpush1.msra.mxu0 %v1153
    %1603 = vmatprep.subr.mxu0 0.0
    %1604 = vmatpush1.msra.mxu0 %v1154
    %1605 = vmatprep.subr.mxu0 0.0
    %1606 = vmatpush1.msra.mxu0 %v1155
    %1607 = vmatprep.subr.mxu0 0.0
    %1608 = vmatpush1.msra.mxu0 %v1156
    %1609 = vmatprep.subr.mxu0 0.0
    %1610 = vmatpush1.msra.mxu0 %v1157
    %1611 = vmatprep.subr.mxu0 0.0
    %1612 = vmatpush1.msra.mxu0 %v1158
    %1613 = vmatprep.mubr.f32.mxu0 %v1546
    %1614 = vmatmul.mubr.f32.gmra.mrb[0].mxu0 %v1545
    %v1615 = vpop.f32.mrb[0].mxu0
    %v1616 = vadd.f32 0.0, %v1615
    %v1617 = vpop.f32.mrb[0].mxu0
    %1618 = vmatprep.mubr.f32.mxu0 %v1548
    %1619 = vmatmul.mubr.f32.gmra.mrb[0].mxu0 %v1547
    %v1620 = vpop.f32.mrb[0].mxu0
    %v1621 = vadd.f32 0.0, %v1620
    %v1622 = vpop.f32.mrb[0].mxu0
    %1623 = vdwg.mxu0
    %v1624 = vld [vmem:[%s7] sm:$0xff]
    %v1625 = vld [vmem:[%s7 + $0x8] sm:$0xff]
    %v1626 = vld [vmem:[%s7 + $0x10] sm:$0xff]
    %v1627 = vld [vmem:[%s7 + $0x18] sm:$0xff]
    %v1628 = vld [vmem:[%s8] sm:$0xff]
    %v1629 = vld [vmem:[%s8 + $0x8] sm:$0xff]
    %v1630 = vld [vmem:[%s9] sm:$0xff]
    %v1631 = vld [vmem:[%s9 + $0x8] sm:$0xff]
    %v1632 = vld [vmem:[%s14] sm:$0x3]
    %v1633 = vld [vmem:[%s17] sm:$0xff]
    %v1634 = vld [vmem:[%s17 + $0x8] sm:$0xff]
    %v1635 = vld [vmem:[%s17 + $0x10] sm:$0xff]
    %v1636 = vld [vmem:[%s17 + $0x18] sm:$0xff]
    %v1637 = vld [vmem:[%s17 + $0x20] sm:$0xff]
    %v1638 = vld [vmem:[%s17 + $0x28] sm:$0xff]
    %v1639 = vld [vmem:[%s17 + $0x30] sm:$0xff]
    %v1640 = vld [vmem:[%s17 + $0x38] sm:$0xff]
    %1643 = vrot.lane.b32.xlu0 %v1616, 9
    %v1644 = vpop.permute.xlu0 %1643
    %1645 = vrot.lane.b32.xlu0 %v1621, 9
    %v1646 = vpop.permute.xlu0 %1645
    %vm1649 = vcmask 72704
    %v1650 = vsel %vm1649, 0.0, %v1644
    %v1651 = vsel %vm1649, 0.0, %v1646
    %vm1652 = vcmask 596992
    %v1653 = vsel %vm1652, %v1650, 0.0
    %v1654 = vsel %vm1652, %v1651, 0.0
    %v1655 = vlaneseq
    %v1656 = vshrl.u32 %v1655, 7
    %v1657 = vsub.s32 0, %v1656
    %v1658 = vrot.slane %v1632, %v1657
    %v1659 = vmul.f32 %v1653, %v1658
    %v1660 = vmul.f32 %v1654, %v1658
    %v1661 = vlaneseq
    %v1662 = vshrl.u32 %v1661, 7
    %v1663 = vsub.s32 1, %v1662
    %v1664 = vrot.slane %v1632, %v1663
    %1666 = vrot.lane.b32.xlu0 %v1664, 2
    %v1667 = vpop.permute.xlu0 %1666
    %v1669 = vmul.f32 %v1653, %v1667
    %v1670 = vmul.f32 %v1654, %v1667
    %1672 = vrot.lane.b32.xlu0 %v1658, 8
    %v1673 = vpop.permute.xlu0 %1672
    %v1675 = vmul.f32 %v1653, %v1673
    %v1676 = vmul.f32 %v1654, %v1673
    %1677 = vrot.lane.b32.xlu0 %v1664, 10
    %v1678 = vpop.permute.xlu0 %1677
    %v1680 = vmul.f32 %v1653, %v1678
    %v1681 = vmul.f32 %v1654, %v1678
    %1682 = vrot.lane.b32.xlu0 %v1658, 16
    %v1683 = vpop.permute.xlu0 %1682
    %v1685 = vmul.f32 %v1653, %v1683
    %v1686 = vmul.f32 %v1654, %v1683
    %1687 = vrot.lane.b32.xlu0 %v1664, 18
    %v1688 = vpop.permute.xlu0 %1687
    %v1690 = vmul.f32 %v1653, %v1688
    %v1691 = vmul.f32 %v1654, %v1688
    %1694 = vrot.lane.b32.xlu0 %v1653, 127
    %v1695 = vpop.permute.xlu0 %1694
    %1696 = vrot.lane.b32.xlu0 %v1654, 127
    %v1697 = vpop.permute.xlu0 %1696
    %1702 = vrot.lane.b32.xlu0 %v1669, 126
    %v1703 = vpop.permute.xlu0 %1702
    %1704 = vrot.lane.b32.xlu0 %v1670, 126
    %v1705 = vpop.permute.xlu0 %1704
    %1710 = vrot.lane.b32.xlu0 %v1675, 120
    %v1711 = vpop.permute.xlu0 %1710
    %1712 = vrot.lane.b32.xlu0 %v1676, 120
    %v1713 = vpop.permute.xlu0 %1712
    %1716 = vrot.lane.b32.xlu0 %v1653, 119
    %v1717 = vpop.permute.xlu0 %1716
    %1718 = vrot.lane.b32.xlu0 %v1654, 119
    %v1719 = vpop.permute.xlu0 %1718
    %1724 = vrot.lane.b32.xlu0 %v1680, 118
    %v1725 = vpop.permute.xlu0 %1724
    %1726 = vrot.lane.b32.xlu0 %v1681, 118
    %v1727 = vpop.permute.xlu0 %1726
    %1732 = vrot.lane.b32.xlu0 %v1685, 112
    %v1733 = vpop.permute.xlu0 %1732
    %1734 = vrot.lane.b32.xlu0 %v1686, 112
    %v1735 = vpop.permute.xlu0 %1734
    %1738 = vrot.lane.b32.xlu0 %v1653, 111
    %v1739 = vpop.permute.xlu0 %1738
    %1740 = vrot.lane.b32.xlu0 %v1654, 111
    %v1741 = vpop.permute.xlu0 %1740
    %1746 = vrot.lane.b32.xlu0 %v1690, 110
    %v1747 = vpop.permute.xlu0 %1746
    %1748 = vrot.lane.b32.xlu0 %v1691, 110
    %v1749 = vpop.permute.xlu0 %1748
    %v1753 = vsel %vm1168, %v1625, 0
    %v1756 = vsel %vm1168, %v1627, 0
    %1758 = vmatprep.subr.mxu0 0.0
    %1759 = vmatpush1.msra.mxu0 %v1659
    %1760 = vmatprep.subr.mxu0 0.0
    %1761 = vmatpush1.msra.mxu0 %v1660
    %1762 = vmatprep.subr.mxu0 0.0
    %1763 = vmatpush1.msra.mxu0 %v1695
    %1764 = vmatprep.subr.mxu0 0.0
    %1765 = vmatpush1.msra.mxu0 %v1697
    %1766 = vmatprep.subr.mxu0 0.0
    %1767 = vmatpush1.msra.mxu0 %v1703
    %1768 = vmatprep.subr.mxu0 0.0
    %1769 = vmatpush1.msra.mxu0 %v1705
    %1770 = vmatprep.subr.mxu0 0.0
    %1771 = vmatpush1.msra.mxu0 %v1711
    %1772 = vmatprep.subr.mxu0 0.0
    %1773 = vmatpush1.msra.mxu0 %v1713
    %1774 = vmatprep.subr.mxu0 0.0
    %1775 = vmatpush1.msra.mxu0 %v1717
    %1776 = vmatprep.subr.mxu0 0.0
    %1777 = vmatpush1.msra.mxu0 %v1719
    %1778 = vmatprep.subr.mxu0 0.0
    %1779 = vmatpush1.msra.mxu0 %v1725
    %1780 = vmatprep.subr.mxu0 0.0
    %1781 = vmatpush1.msra.mxu0 %v1727
    %1782 = vmatprep.subr.mxu0 0.0
    %1783 = vmatpush1.msra.mxu0 %v1733
    %1784 = vmatprep.subr.mxu0 0.0
    %1785 = vmatpush1.msra.mxu0 %v1735
    %1786 = vmatprep.subr.mxu0 0.0
    %1787 = vmatpush1.msra.mxu0 %v1739
    %1788 = vmatprep.subr.mxu0 0.0
    %1789 = vmatpush1.msra.mxu0 %v1741
    %1790 = vmatprep.subr.mxu0 0.0
    %1791 = vmatpush1.msra.mxu0 %v1747
    %1792 = vmatprep.subr.mxu0 0.0
    %1793 = vmatpush1.msra.mxu0 %v1749
    %1794 = vmatprep.subr.mxu0 0.0
    %1795 = vmatpush1.msra.mxu0 0.0
    %1796 = vmatprep.subr.mxu0 0.0
    %1797 = vmatpush1.msra.mxu0 0.0
    %1798 = vmatprep.subr.mxu0 0.0
    %1799 = vmatpush1.msra.mxu0 0.0
    %1800 = vmatprep.subr.mxu0 0.0
    %1801 = vmatpush1.msra.mxu0 0.0
    %1802 = vmatprep.subr.mxu0 0.0
    %1803 = vmatpush1.msra.mxu0 0.0
    %1804 = vmatprep.subr.mxu0 0.0
    %1805 = vmatpush1.msra.mxu0 0.0
    %1806 = vmatprep.subr.mxu0 0.0
    %1807 = vmatpush1.msra.mxu0 0.0
    %1808 = vmatprep.subr.mxu0 0.0
    %1809 = vmatpush1.msra.mxu0 0.0
    %1810 = vmatprep.subr.mxu0 0.0
    %1811 = vmatpush1.msra.mxu0 0.0
    %1812 = vmatprep.subr.mxu0 0.0
    %1813 = vmatpush1.msra.mxu0 0.0
    %1814 = vmatprep.subr.mxu0 0.0
    %1815 = vmatpush1.msra.mxu0 0.0
    %1816 = vmatprep.subr.mxu0 0.0
    %1817 = vmatpush1.msra.mxu0 0.0
    %1818 = vmatprep.subr.mxu0 0.0
    %1819 = vmatpush1.msra.mxu0 0.0
    %1820 = vmatprep.subr.mxu0 0.0
    %1821 = vmatpush1.msra.mxu0 0.0
    %1822 = vmatprep.mubr.f32.mxu0 %v1753
    %1823 = vmatmul.mubr.f32.gmra.mrb[0].mxu0 %v1624
    %v1824 = vpop.f32.mrb[0].mxu0
    %v1825 = vadd.f32 0.0, %v1824
    %v1826 = vpop.f32.mrb[0].mxu0
    %1827 = vmatprep.mubr.f32.mxu0 %v1756
    %1828 = vmatmul.mubr.f32.gmra.mrb[0].mxu0 %v1626
    %v1829 = vpop.f32.mrb[0].mxu0
    %v1830 = vadd.f32 0.0, %v1829
    %v1831 = vpop.f32.mrb[0].mxu0
    %1832 = vdwg.mxu0
    %1834 = vset.pattern.permute.xlu0 0
    %1835 = vperm.xlu0 %1834, %v1628
    %v1836 = vpop.permute.xlu0 %1835
    %1839 = vset.pattern.permute.xlu0 0
    %1840 = vperm.xlu0 %1839, %v1629
    %v1841 = vpop.permute.xlu0 %1840
    %v1843 = vmul.f32 %v1825, %v1836
    %v1844 = vmul.f32 %v1830, %v1841
    %1846 = vset.pattern.permute.xlu0 0
    %1847 = vperm.xlu0 %1846, %v1630
    %v1848 = vpop.permute.xlu0 %1847
    %1851 = vset.pattern.permute.xlu0 0
    %1852 = vperm.xlu0 %1851, %v1631
    %v1853 = vpop.permute.xlu0 %1852
    %v1855 = vadd.f32 %v1843, %v1848
    %v1856 = vadd.f32 %v1844, %v1853
    %v1857 = vmax.f32 %v1855, 0.0
    %v1858 = vmax.f32 %v1856, 0.0
    %vm1859 = vcmask 523264
    %v1860 = vsel %vm1859, %v1857, 0.0
    %v1861 = vsel %vm1859, %v1858, 0.0
    %1864 = vrot.lane.b32.xlu0 %v1860, 127
    %v1865 = vpop.permute.xlu0 %1864
    %1866 = vrot.lane.b32.xlu0 %v1861, 127
    %v1867 = vpop.permute.xlu0 %1866
    %v1870 = vmax.f32 %v1857, %v1865
    %v1871 = vmax.f32 %v1858, %v1867
    %1872 = vrot.lane.b32.xlu0 %v1860, 120
    %v1873 = vpop.permute.xlu0 %1872
    %1874 = vrot.lane.b32.xlu0 %v1861, 120
    %v1875 = vpop.permute.xlu0 %1874
    %v1878 = vmax.f32 %v1870, %v1873
    %v1879 = vmax.f32 %v1871, %v1875
    %1880 = vrot.lane.b32.xlu0 %v1860, 119
    %v1881 = vpop.permute.xlu0 %1880
    %1882 = vrot.lane.b32.xlu0 %v1861, 119
    %v1883 = vpop.permute.xlu0 %1882
    %v1886 = vmax.f32 %v1878, %v1881
    %v1887 = vmax.f32 %v1879, %v1883
    %v1889 = vsel %vm1859, %v1886, 0
    %v1892 = vsel %vm1859, %v1887, 0
    %1894 = vmatprep.subr.mxu0 0.0
    %1895 = vmatpush1.msra.mxu0 %v1633
    %1896 = vmatprep.subr.mxu0 0.0
    %1897 = vmatpush1.msra.mxu0 %v1634
    %1898 = vmatprep.subr.mxu0 0.0
    %1899 = vmatpush1.msra.mxu0 %v1635
    %1900 = vmatprep.subr.mxu0 0.0
    %1901 = vmatpush1.msra.mxu0 %v1636
    %1902 = vmatprep.subr.mxu0 0.0
    %1903 = vmatpush1.msra.mxu0 %v1637
    %1904 = vmatprep.subr.mxu0 0.0
    %1905 = vmatpush1.msra.mxu0 %v1638
    %1906 = vmatprep.subr.mxu0 0.0
    %1907 = vmatpush1.msra.mxu0 %v1639
    %1908 = vmatprep.subr.mxu0 0.0
    %1909 = vmatpush1.msra.mxu0 %v1640
    %1910 = vmatprep.subr.mxu0 0.0
    %1911 = vmatpush1.msra.mxu0 0.0
    %1912 = vmatprep.subr.mxu0 0.0
    %1913 = vmatpush1.msra.mxu0 0.0
    %1914 = vmatprep.subr.mxu0 0.0
    %1915 = vmatpush1.msra.mxu0 0.0
    %1916 = vmatprep.subr.mxu0 0.0
    %1917 = vmatpush1.msra.mxu0 0.0
    %1918 = vmatprep.subr.mxu0 0.0
    %1919 = vmatpush1.msra.mxu0 0.0
    %1920 = vmatprep.subr.mxu0 0.0
    %1921 = vmatpush1.msra.mxu0 0.0
    %1922 = vmatprep.subr.mxu0 0.0
    %1923 = vmatpush1.msra.mxu0 0.0
    %1924 = vmatprep.subr.mxu0 0.0
    %1925 = vmatpush1.msra.mxu0 0.0
    %1926 = vmatprep.subr.mxu0 0.0
    %1927 = vmatpush1.msra.mxu0 0.0
    %1928 = vmatprep.subr.mxu0 0.0
    %1929 = vmatpush1.msra.mxu0 0.0
    %1930 = vmatprep.subr.mxu0 0.0
    %1931 = vmatpush1.msra.mxu0 0.0
    %1932 = vmatprep.subr.mxu0 0.0
    %1933 = vmatpush1.msra.mxu0 0.0
    %1934 = vmatprep.subr.mxu0 0.0
    %1935 = vmatpush1.msra.mxu0 0.0
    %1936 = vmatprep.subr.mxu0 0.0
    %1937 = vmatpush1.msra.mxu0 0.0
    %1938 = vmatprep.subr.mxu0 0.0
    %1939 = vmatpush1.msra.mxu0 0.0
    %1940 = vmatprep.subr.mxu0 0.0
    %1941 = vmatpush1.msra.mxu0 0.0
    %1942 = vmatprep.subr.mxu0 0.0
    %1943 = vmatpush1.msra.mxu0 0.0
    %1944 = vmatprep.subr.mxu0 0.0
    %1945 = vmatpush1.msra.mxu0 0.0
    %1946 = vmatprep.subr.mxu0 0.0
    %1947 = vmatpush1.msra.mxu0 0.0
    %1948 = vmatprep.subr.mxu0 0.0
    %1949 = vmatpush1.msra.mxu0 0.0
    %1950 = vmatprep.subr.mxu0 0.0
    %1951 = vmatpush1.msra.mxu0 0.0
    %1952 = vmatprep.subr.mxu0 0.0
    %1953 = vmatpush1.msra.mxu0 0.0
    %1954 = vmatprep.subr.mxu0 0.0
    %1955 = vmatpush1.msra.mxu0 0.0
    %1956 = vmatprep.subr.mxu0 0.0
    %1957 = vmatpush1.msra.mxu0 0.0
    %1958 = vmatprep.mubr.f32.mxu0 0.0
    %1959 = vmatmul.mubr.f32.gmra.mrb[0].mxu0 %v1889
    %v1960 = vpop.f32.mrb[0].mxu0
    %v1961 = vadd.f32 0.0, %v1960
    %v1962 = vpop.f32.mrb[0].mxu0
    %1963 = vmatprep.mubr.f32.mxu0 0.0
    %1964 = vmatmul.mubr.f32.gmra.mrb[0].mxu0 %v1892
    %v1965 = vpop.f32.mrb[0].mxu0
    %v1966 = vadd.f32 0.0, %v1965
    %v1967 = vpop.f32.mrb[0].mxu0
    %1968 = vdwg.mxu0
    %v1969 = vld [vmem:[%s10] sm:$0xff]
    %v1970 = vld [vmem:[%s10 + $0x8] sm:$0xff]
    %v1971 = vld [vmem:[%s10 + $0x10] sm:$0xff]
    %v1972 = vld [vmem:[%s10 + $0x18] sm:$0xff]
    %v1973 = vld [vmem:[%s11] sm:$0xff]
    %v1974 = vld [vmem:[%s11 + $0x8] sm:$0xff]
    %v1975 = vld [vmem:[%s12] sm:$0xff]
    %v1976 = vld [vmem:[%s12 + $0x8] sm:$0xff]
    %v1977 = vld [vmem:[%s15] sm:$0x3]
    %v1978 = vld [vmem:[%s18] sm:$0xff]
    %v1979 = vld [vmem:[%s18 + $0x8] sm:$0xff]
    %1982 = vrot.lane.b32.xlu0 %v1961, 5
    %v1983 = vpop.permute.xlu0 %1982
    %1984 = vrot.lane.b32.xlu0 %v1966, 5
    %v1985 = vpop.permute.xlu0 %1984
    %vm1988 = vcmask 39936
    %v1989 = vsel %vm1988, 0.0, %v1983
    %v1990 = vsel %vm1988, 0.0, %v1985
    %vm1991 = vcmask 171008
    %v1992 = vsel %vm1991, %v1989, 0.0
    %v1993 = vsel %vm1991, %v1990, 0.0
    %v1994 = vlaneseq
    %v1995 = vshrl.u32 %v1994, 7
    %v1996 = vsub.s32 0, %v1995
    %v1997 = vrot.slane %v1977, %v1996
    %v1998 = vmul.f32 %v1992, %v1997
    %v1999 = vmul.f32 %v1993, %v1997
    %v2000 = vlaneseq
    %v2001 = vshrl.u32 %v2000, 7
    %v2002 = vsub.s32 1, %v2001
    %v2003 = vrot.slane %v1977, %v2002
    %2005 = vrot.lane.b32.xlu0 %v2003, 2
    %v2006 = vpop.permute.xlu0 %2005
    %v2008 = vmul.f32 %v1992, %v2006
    %v2009 = vmul.f32 %v1993, %v2006
    %2011 = vrot.lane.b32.xlu0 %v1997, 4
    %v2012 = vpop.permute.xlu0 %2011
    %v2014 = vmul.f32 %v1992, %v2012
    %v2015 = vmul.f32 %v1993, %v2012
    %2016 = vrot.lane.b32.xlu0 %v2003, 6
    %v2017 = vpop.permute.xlu0 %2016
    %v2019 = vmul.f32 %v1992, %v2017
    %v2020 = vmul.f32 %v1993, %v2017
    %2021 = vrot.lane.b32.xlu0 %v1997, 8
    %v2022 = vpop.permute.xlu0 %2021
    %v2024 = vmul.f32 %v1992, %v2022
    %v2025 = vmul.f32 %v1993, %v2022
    %2026 = vrot.lane.b32.xlu0 %v2003, 10
    %v2027 = vpop.permute.xlu0 %2026
    %v2029 = vmul.f32 %v1992, %v2027
    %v2030 = vmul.f32 %v1993, %v2027
    %2033 = vrot.lane.b32.xlu0 %v1992, 127
    %v2034 = vpop.permute.xlu0 %2033
    %2035 = vrot.lane.b32.xlu0 %v1993, 127
    %v2036 = vpop.permute.xlu0 %2035
    %2041 = vrot.lane.b32.xlu0 %v2008, 126
    %v2042 = vpop.permute.xlu0 %2041
    %2043 = vrot.lane.b32.xlu0 %v2009, 126
    %v2044 = vpop.permute.xlu0 %2043
    %2049 = vrot.lane.b32.xlu0 %v2014, 124
    %v2050 = vpop.permute.xlu0 %2049
    %2051 = vrot.lane.b32.xlu0 %v2015, 124
    %v2052 = vpop.permute.xlu0 %2051
    %2055 = vrot.lane.b32.xlu0 %v1992, 123
    %v2056 = vpop.permute.xlu0 %2055
    %2057 = vrot.lane.b32.xlu0 %v1993, 123
    %v2058 = vpop.permute.xlu0 %2057
    %2063 = vrot.lane.b32.xlu0 %v2019, 122
    %v2064 = vpop.permute.xlu0 %2063
    %2065 = vrot.lane.b32.xlu0 %v2020, 122
    %v2066 = vpop.permute.xlu0 %2065
    %2071 = vrot.lane.b32.xlu0 %v2024, 120
    %v2072 = vpop.permute.xlu0 %2071
    %2073 = vrot.lane.b32.xlu0 %v2025, 120
    %v2074 = vpop.permute.xlu0 %2073
    %2077 = vrot.lane.b32.xlu0 %v1992, 119
    %v2078 = vpop.permute.xlu0 %2077
    %2079 = vrot.lane.b32.xlu0 %v1993, 119
    %v2080 = vpop.permute.xlu0 %2079
    %2085 = vrot.lane.b32.xlu0 %v2029, 118
    %v2086 = vpop.permute.xlu0 %2085
    %2087 = vrot.lane.b32.xlu0 %v2030, 118
    %v2088 = vpop.permute.xlu0 %2087
    %v2092 = vsel %vm1168, %v1970, 0
    %v2095 = vsel %vm1168, %v1972, 0
    %2097 = vmatprep.subr.mxu0 0.0
    %2098 = vmatpush1.msra.mxu0 %v1998
    %2099 = vmatprep.subr.mxu0 0.0
    %2100 = vmatpush1.msra.mxu0 %v1999
    %2101 = vmatprep.subr.mxu0 0.0
    %2102 = vmatpush1.msra.mxu0 %v2034
    %2103 = vmatprep.subr.mxu0 0.0
    %2104 = vmatpush1.msra.mxu0 %v2036
    %2105 = vmatprep.subr.mxu0 0.0
    %2106 = vmatpush1.msra.mxu0 %v2042
    %2107 = vmatprep.subr.mxu0 0.0
    %2108 = vmatpush1.msra.mxu0 %v2044
    %2109 = vmatprep.subr.mxu0 0.0
    %2110 = vmatpush1.msra.mxu0 %v2050
    %2111 = vmatprep.subr.mxu0 0.0
    %2112 = vmatpush1.msra.mxu0 %v2052
    %2113 = vmatprep.subr.mxu0 0.0
    %2114 = vmatpush1.msra.mxu0 %v2056
    %2115 = vmatprep.subr.mxu0 0.0
    %2116 = vmatpush1.msra.mxu0 %v2058
    %2117 = vmatprep.subr.mxu0 0.0
    %2118 = vmatpush1.msra.mxu0 %v2064
    %2119 = vmatprep.subr.mxu0 0.0
    %2120 = vmatpush1.msra.mxu0 %v2066
    %2121 = vmatprep.subr.mxu0 0.0
    %2122 = vmatpush1.msra.mxu0 %v2072
    %2123 = vmatprep.subr.mxu0 0.0
    %2124 = vmatpush1.msra.mxu0 %v2074
    %2125 = vmatprep.subr.mxu0 0.0
    %2126 = vmatpush1.msra.mxu0 %v2078
    %2127 = vmatprep.subr.mxu0 0.0
    %2128 = vmatpush1.msra.mxu0 %v2080
    %2129 = vmatprep.subr.mxu0 0.0
    %2130 = vmatpush1.msra.mxu0 %v2086
    %2131 = vmatprep.subr.mxu0 0.0
    %2132 = vmatpush1.msra.mxu0 %v2088
    %2133 = vmatprep.subr.mxu0 0.0
    %2134 = vmatpush1.msra.mxu0 0.0
    %2135 = vmatprep.subr.mxu0 0.0
    %2136 = vmatpush1.msra.mxu0 0.0
    %2137 = vmatprep.subr.mxu0 0.0
    %2138 = vmatpush1.msra.mxu0 0.0
    %2139 = vmatprep.subr.mxu0 0.0
    %2140 = vmatpush1.msra.mxu0 0.0
    %2141 = vmatprep.subr.mxu0 0.0
    %2142 = vmatpush1.msra.mxu0 0.0
    %2143 = vmatprep.subr.mxu0 0.0
    %2144 = vmatpush1.msra.mxu0 0.0
    %2145 = vmatprep.subr.mxu0 0.0
    %2146 = vmatpush1.msra.mxu0 0.0
    %2147 = vmatprep.subr.mxu0 0.0
    %2148 = vmatpush1.msra.mxu0 0.0
    %2149 = vmatprep.subr.mxu0 0.0
    %2150 = vmatpush1.msra.mxu0 0.0
    %2151 = vmatprep.subr.mxu0 0.0
    %2152 = vmatpush1.msra.mxu0 0.0
    %2153 = vmatprep.subr.mxu0 0.0
    %2154 = vmatpush1.msra.mxu0 0.0
    %2155 = vmatprep.subr.mxu0 0.0
    %2156 = vmatpush1.msra.mxu0 0.0
    %2157 = vmatprep.subr.mxu0 0.0
    %2158 = vmatpush1.msra.mxu0 0.0
    %2159 = vmatprep.subr.mxu0 0.0
    %2160 = vmatpush1.msra.mxu0 0.0
    %2161 = vmatprep.mubr.f32.mxu0 %v2092
    %2162 = vmatmul.mubr.f32.gmra.mrb[0].mxu0 %v1969
    %v2163 = vpop.f32.mrb[0].mxu0
    %v2164 = vadd.f32 0.0, %v2163
    %v2165 = vpop.f32.mrb[0].mxu0
    %2166 = vmatprep.mubr.f32.mxu0 %v2095
    %2167 = vmatmul.mubr.f32.gmra.mrb[0].mxu0 %v1971
    %v2168 = vpop.f32.mrb[0].mxu0
    %v2169 = vadd.f32 0.0, %v2168
    %v2170 = vpop.f32.mrb[0].mxu0
    %2171 = vdwg.mxu0
    %2173 = vset.pattern.permute.xlu0 0
    %2174 = vperm.xlu0 %2173, %v1973
    %v2175 = vpop.permute.xlu0 %2174
    %2178 = vset.pattern.permute.xlu0 0
    %2179 = vperm.xlu0 %2178, %v1974
    %v2180 = vpop.permute.xlu0 %2179
    %v2182 = vmul.f32 %v2164, %v2175
    %v2183 = vmul.f32 %v2169, %v2180
    %2185 = vset.pattern.permute.xlu0 0
    %2186 = vperm.xlu0 %2185, %v1975
    %v2187 = vpop.permute.xlu0 %2186
    %2190 = vset.pattern.permute.xlu0 0
    %2191 = vperm.xlu0 %2190, %v1976
    %v2192 = vpop.permute.xlu0 %2191
    %v2194 = vadd.f32 %v2182, %v2187
    %v2195 = vadd.f32 %v2183, %v2192
    %v2196 = vmax.f32 %v2194, 0.0
    %v2197 = vmax.f32 %v2195, 0.0
    %v2198 = vsel %vm1168, %v2196, 0.0
    %v2199 = vsel %vm1168, %v2197, 0.0
    %2202 = vrot.lane.b32.xlu0 %v2198, 127
    %v2203 = vpop.permute.xlu0 %2202
    %2204 = vrot.lane.b32.xlu0 %v2199, 127
    %v2205 = vpop.permute.xlu0 %2204
    %v2208 = vmax.f32 %v2196, %v2203
    %v2209 = vmax.f32 %v2197, %v2205
    %2210 = vrot.lane.b32.xlu0 %v2198, 124
    %v2211 = vpop.permute.xlu0 %2210
    %2212 = vrot.lane.b32.xlu0 %v2199, 124
    %v2213 = vpop.permute.xlu0 %2212
    %v2216 = vmax.f32 %v2208, %v2211
    %v2217 = vmax.f32 %v2209, %v2213
    %2218 = vrot.lane.b32.xlu0 %v2198, 123
    %v2219 = vpop.permute.xlu0 %2218
    %2220 = vrot.lane.b32.xlu0 %v2199, 123
    %v2221 = vpop.permute.xlu0 %2220
    %v2224 = vmax.f32 %v2216, %v2219
    %v2225 = vmax.f32 %v2217, %v2221
    %v2227 = vsel %vm1168, %v2224, 0
    %v2230 = vsel %vm1168, %v2225, 0
    %2232 = vmatprep.subr.mxu0 0.0
    %2233 = vmatpush1.msra.mxu0 %v1978
    %2234 = vmatprep.subr.mxu0 0.0
    %2235 = vmatpush1.msra.mxu0 %v1979
    %2236 = vmatprep.subr.mxu0 0.0
    %2237 = vmatpush1.msra.mxu0 0.0
    %2238 = vmatprep.subr.mxu0 0.0
    %2239 = vmatpush1.msra.mxu0 0.0
    %2240 = vmatprep.subr.mxu0 0.0
    %2241 = vmatpush1.msra.mxu0 0.0
    %2242 = vmatprep.subr.mxu0 0.0
    %2243 = vmatpush1.msra.mxu0 0.0
    %2244 = vmatprep.subr.mxu0 0.0
    %2245 = vmatpush1.msra.mxu0 0.0
    %2246 = vmatprep.subr.mxu0 0.0
    %2247 = vmatpush1.msra.mxu0 0.0
    %2248 = vmatprep.subr.mxu0 0.0
    %2249 = vmatpush1.msra.mxu0 0.0
    %2250 = vmatprep.subr.mxu0 0.0
    %2251 = vmatpush1.msra.mxu0 0.0
    %2252 = vmatprep.subr.mxu0 0.0
    %2253 = vmatpush1.msra.mxu0 0.0
    %2254 = vmatprep.subr.mxu0 0.0
    %2255 = vmatpush1.msra.mxu0 0.0
    %2256 = vmatprep.subr.mxu0 0.0
    %2257 = vmatpush1.msra.mxu0 0.0
    %2258 = vmatprep.subr.mxu0 0.0
    %2259 = vmatpush1.msra.mxu0 0.0
    %2260 = vmatprep.subr.mxu0 0.0
    %2261 = vmatpush1.msra.mxu0 0.0
    %2262 = vmatprep.subr.mxu0 0.0
    %2263 = vmatpush1.msra.mxu0 0.0
    %2264 = vmatprep.subr.mxu0 0.0
    %2265 = vmatpush1.msra.mxu0 0.0
    %2266 = vmatprep.subr.mxu0 0.0
    %2267 = vmatpush1.msra.mxu0 0.0
    %2268 = vmatprep.subr.mxu0 0.0
    %2269 = vmatpush1.msra.mxu0 0.0
    %2270 = vmatprep.subr.mxu0 0.0
    %2271 = vmatpush1.msra.mxu0 0.0
    %2272 = vmatprep.subr.mxu0 0.0
    %2273 = vmatpush1.msra.mxu0 0.0
    %2274 = vmatprep.subr.mxu0 0.0
    %2275 = vmatpush1.msra.mxu0 0.0
    %2276 = vmatprep.subr.mxu0 0.0
    %2277 = vmatpush1.msra.mxu0 0.0
    %2278 = vmatprep.subr.mxu0 0.0
    %2279 = vmatpush1.msra.mxu0 0.0
    %2280 = vmatprep.subr.mxu0 0.0
    %2281 = vmatpush1.msra.mxu0 0.0
    %2282 = vmatprep.subr.mxu0 0.0
    %2283 = vmatpush1.msra.mxu0 0.0
    %2284 = vmatprep.subr.mxu0 0.0
    %2285 = vmatpush1.msra.mxu0 0.0
    %2286 = vmatprep.subr.mxu0 0.0
    %2287 = vmatpush1.msra.mxu0 0.0
    %2288 = vmatprep.subr.mxu0 0.0
    %2289 = vmatpush1.msra.mxu0 0.0
    %2290 = vmatprep.subr.mxu0 0.0
    %2291 = vmatpush1.msra.mxu0 0.0
    %2292 = vmatprep.subr.mxu0 0.0
    %2293 = vmatpush1.msra.mxu0 0.0
    %2294 = vmatprep.subr.mxu0 0.0
    %2295 = vmatpush1.msra.mxu0 0.0
    %2296 = vmatprep.mubr.f32.mxu0 0.0
    %2297 = vmatmul.mubr.f32.gmra.mrb[0].mxu0 %v2227
    %v2298 = vpop.f32.mrb[0].mxu0
    %v2299 = vadd.f32 0.0, %v2298
    %v2300 = vpop.f32.mrb[0].mxu0
    %2301 = vmatprep.mubr.f32.mxu0 0.0
    %2302 = vmatmul.mubr.f32.gmra.mrb[0].mxu0 %v2230
    %v2303 = vpop.f32.mrb[0].mxu0
    %v2304 = vadd.f32 0.0, %v2303
    %v2305 = vpop.f32.mrb[0].mxu0
    %2306 = vdwg.mxu0
    %2308 = vset.pattern.permute.xlu0 0
    %2309 = vperm.xlu0 %2308, %v2299
    %v2310 = vpop.permute.xlu0 %2309
    %2313 = vset.pattern.permute.xlu0 0
    %2314 = vperm.xlu0 %2313, %v2304
    %v2315 = vpop.permute.xlu0 %2314
    %v2317 = vmul.f32 %v2310, %v73
    %v2318 = vmul.f32 %v2315, %v74
    %v2319 = vadd.f32 %v2317, 0.0
    %v2320 = vadd.f32 %v2318, 0.0
    %2321 = vset.pattern.permute.xlu0 1
    %2322 = vperm.xlu0 %2321, %v2299
    %v2323 = vpop.permute.xlu0 %2322
    %2325 = vset.pattern.permute.xlu0 1
    %2326 = vperm.xlu0 %2325, %v2304
    %v2327 = vpop.permute.xlu0 %2326
    %v2329 = vmul.f32 %v2323, %v73
    %v2330 = vmul.f32 %v2327, %v74
    %2333 = vrot.lane.b32.xlu0 %v2329, 122
    %v2334 = vpop.permute.xlu0 %2333
    %2335 = vrot.lane.b32.xlu0 %v2330, 122
    %v2336 = vpop.permute.xlu0 %2335
    %v2339 = vadd.f32 %v2319, %v2334
    %v2340 = vadd.f32 %v2320, %v2336
    %2341 = vset.pattern.permute.xlu0 2
    %2342 = vperm.xlu0 %2341, %v2299
    %v2343 = vpop.permute.xlu0 %2342
    %2345 = vset.pattern.permute.xlu0 2
    %2346 = vperm.xlu0 %2345, %v2304
    %v2347 = vpop.permute.xlu0 %2346
    %v2349 = vmul.f32 %v2343, %v73
    %v2350 = vmul.f32 %v2347, %v74
    %2353 = vrot.lane.b32.xlu0 %v2349, 116
    %v2354 = vpop.permute.xlu0 %2353
    %2355 = vrot.lane.b32.xlu0 %v2350, 116
    %v2356 = vpop.permute.xlu0 %2355
    %v2359 = vadd.f32 %v2339, %v2354
    %v2360 = vadd.f32 %v2340, %v2356
    %2361 = vset.pattern.permute.xlu0 3
    %2362 = vperm.xlu0 %2361, %v2299
    %v2363 = vpop.permute.xlu0 %2362
    %2365 = vset.pattern.permute.xlu0 3
    %2366 = vperm.xlu0 %2365, %v2304
    %v2367 = vpop.permute.xlu0 %2366
    %v2369 = vmul.f32 %v2363, %v73
    %v2370 = vmul.f32 %v2367, %v74
    %2373 = vrot.lane.b32.xlu0 %v2369, 110
    %v2374 = vpop.permute.xlu0 %2373
    %2375 = vrot.lane.b32.xlu0 %v2370, 110
    %v2376 = vpop.permute.xlu0 %2375
    %v2379 = vadd.f32 %v2359, %v2374
    %v2380 = vadd.f32 %v2360, %v2376
    %vm2381 = vcmask 48128
    %v2382 = vsel %vm2381, %v2379, 0.0
    %v2383 = vsel %vm2381, %v2380, 0.0
    %v2384 = vadd.f32 %v2382, %v2383
    %v2385 = vrot.slane %v2384, 4
    %v2386 = vadd.f32 %v2384, %v2385
    %v2387 = vrot.slane %v2386, 2
    %v2388 = vadd.f32 %v2386, %v2387
    %v2389 = vrot.slane %v2388, 1
    %v2390 = vadd.f32 %v2388, %v2389
    %v2391 = vadd.f32 %v2390, %v75
    %s2392 = scalar_lea.vmem %s0, 8
    %v2393 = vld [vmem:[%s2392] sm:$0xff]
    %v2395 = vlaneseq
    %v2396 = vshrl.u32 %v2395, 7
    %v2397 = vsub.s32 0, %v2396
    %v2398 = vrot.slane %v2393, %v2397
    %v2399 = vlaneseq
    %v2400 = vshrl.u32 %v2399, 7
    %v2401 = vsub.s32 4, %v2400
    %v2402 = vrot.slane %v2393, %v2401
    %2403 = vrot.lane.b32.xlu0 %v2398, 18
    %v2404 = vpop.permute.xlu0 %2403
    %2405 = vrot.lane.b32.xlu0 %v2402, 18
    %v2406 = vpop.permute.xlu0 %2405
    %v2407 = vsel %vm90, %v2404, %v2406
    %v2411 = vsel %vm90, 0.0, %v2404
    %v2412 = vsel %vm90, %v2406, 0.0
    %v2413 = vlaneseq
    %v2414 = vshrl.u32 %v2413, 7
    %v2415 = vsub.s32 1, %v2414
    %v2416 = vrot.slane %v2393, %v2415
    %v2417 = vlaneseq
    %v2418 = vshrl.u32 %v2417, 7
    %v2419 = vsub.s32 5, %v2418
    %v2420 = vrot.slane %v2393, %v2419
    %2421 = vrot.lane.b32.xlu0 %v2416, 18
    %v2422 = vpop.permute.xlu0 %2421
    %2423 = vrot.lane.b32.xlu0 %v2420, 18
    %v2424 = vpop.permute.xlu0 %2423
    %v2425 = vsel %vm90, %v2422, %v2424
    %v2429 = vsel %vm90, 0.0, %v2422
    %v2430 = vsel %vm90, %v2424, 0.0
    %v2431 = vlaneseq
    %v2432 = vshrl.u32 %v2431, 7
    %v2433 = vsub.s32 2, %v2432
    %v2434 = vrot.slane %v2393, %v2433
    %v2435 = vlaneseq
    %v2436 = vshrl.u32 %v2435, 7
    %v2437 = vsub.s32 6, %v2436
    %v2438 = vrot.slane %v2393, %v2437
    %2439 = vrot.lane.b32.xlu0 %v2434, 18
    %v2440 = vpop.permute.xlu0 %2439
    %2441 = vrot.lane.b32.xlu0 %v2438, 18
    %v2442 = vpop.permute.xlu0 %2441
    %v2443 = vsel %vm90, %v2440, %v2442
    %v2447 = vsel %vm90, 0.0, %v2440
    %v2448 = vsel %vm90, %v2442, 0.0
    %v2449 = vlaneseq
    %v2450 = vshrl.u32 %v2449, 7
    %v2451 = vsub.s32 3, %v2450
    %v2452 = vrot.slane %v2393, %v2451
    %v2453 = vlaneseq
    %v2454 = vshrl.u32 %v2453, 7
    %v2455 = vsub.s32 7, %v2454
    %v2456 = vrot.slane %v2393, %v2455
    %2457 = vrot.lane.b32.xlu0 %v2452, 18
    %v2458 = vpop.permute.xlu0 %2457
    %2459 = vrot.lane.b32.xlu0 %v2456, 18
    %v2460 = vpop.permute.xlu0 %2459
    %v2461 = vsel %vm90, %v2458, %v2460
    %v2465 = vsel %vm90, 0.0, %v2458
    %v2466 = vsel %vm90, %v2460, 0.0
    %v2467 = vmul.f32 %v2465, %v161
    %v2468 = vmul.f32 %v2461, %v165
    %v2469 = vmul.f32 %v2466, %v163
    %v2470 = vmul.f32 %v2447, %v181
    %v2471 = vmul.f32 %v2443, %v185
    %v2472 = vmul.f32 %v2448, %v183
    %v2473 = vmul.f32 %v2429, %v193
    %v2474 = vmul.f32 %v2425, %v197
    %v2475 = vmul.f32 %v2430, %v195
    %v2476 = vmul.f32 %v2411, %v205
    %v2477 = vmul.f32 %v2407, %v209
    %v2478 = vmul.f32 %v2412, %v207
    %v2479 = vmul.f32 %v2465, %v193
    %v2480 = vmul.f32 %v2461, %v197
    %v2481 = vmul.f32 %v2466, %v195
    %v2482 = vmul.f32 %v2447, %v205
    %v2483 = vmul.f32 %v2443, %v209
    %v2484 = vmul.f32 %v2448, %v207
    %v2485 = vmul.f32 %v2429, %v223
    %v2486 = vmul.f32 %v2425, %v227
    %v2487 = vmul.f32 %v2430, %v225
    %v2488 = vmul.f32 %v2411, %v235
    %v2489 = vmul.f32 %v2407, %v239
    %v2490 = vmul.f32 %v2412, %v237
    %v2491 = vlaneseq
    %v2492 = vshrl.u32 %v2491, 7
    %v2493 = vsub.s32 0, %v2492
    %v2494 = vrot.slane %v2467, %v2493
    %v2495 = vlaneseq
    %v2496 = vshrl.u32 %v2495, 7
    %v2497 = vsub.s32 0, %v2496
    %v2498 = vrot.slane %v2468, %v2497
    %v2499 = vlaneseq
    %v2500 = vshrl.u32 %v2499, 7
    %v2501 = vsub.s32 0, %v2500
    %v2502 = vrot.slane %v2469, %v2501
    %v2503 = vmul.f32 %v249, %v2494
    %v2504 = vmul.f32 %v249, %v2498
    %v2505 = vmul.f32 %v249, %v2502
    %v2506 = vadd.f32 %v2503, 0.0
    %v2507 = vadd.f32 %v2504, 0.0
    %v2508 = vadd.f32 %v2505, 0.0
    %v2509 = vlaneseq
    %v2510 = vshrl.u32 %v2509, 7
    %v2511 = vsub.s32 0, %v2510
    %v2512 = vrot.slane %v2447, %v2511
    %v2513 = vlaneseq
    %v2514 = vshrl.u32 %v2513, 7
    %v2515 = vsub.s32 0, %v2514
    %v2516 = vrot.slane %v2443, %v2515
    %v2517 = vlaneseq
    %v2518 = vshrl.u32 %v2517, 7
    %v2519 = vsub.s32 0, %v2518
    %v2520 = vrot.slane %v2448, %v2519
    %v2521 = vmul.f32 %v271, %v2512
    %v2522 = vmul.f32 %v271, %v2516
    %v2523 = vmul.f32 %v271, %v2520
    %2527 = vrot.lane.b32.xlu0 %v2521, 127
    %v2528 = vpop.permute.xlu0 %2527
    %2529 = vrot.lane.b32.xlu0 %v2522, 127
    %v2530 = vpop.permute.xlu0 %2529
    %2531 = vrot.lane.b32.xlu0 %v2523, 127
    %v2532 = vpop.permute.xlu0 %2531
    %v2533 = vsel %vm297, %v2528, %v2530
    %v2534 = vsel %vm297, %v2530, %v2532
    %v2538 = vadd.f32 %v2506, %v2533
    %v2539 = vadd.f32 %v2507, %v2534
    %v2540 = vadd.f32 %v2508, %v2532
    %v2541 = vlaneseq
    %v2542 = vshrl.u32 %v2541, 7
    %v2543 = vsub.s32 0, %v2542
    %v2544 = vrot.slane %v2465, %v2543
    %v2545 = vlaneseq
    %v2546 = vshrl.u32 %v2545, 7
    %v2547 = vsub.s32 0, %v2546
    %v2548 = vrot.slane %v2461, %v2547
    %v2549 = vlaneseq
    %v2550 = vshrl.u32 %v2549, 7
    %v2551 = vsub.s32 0, %v2550
    %v2552 = vrot.slane %v2466, %v2551
    %v2553 = vmul.f32 %v308, %v2544
    %v2554 = vmul.f32 %v308, %v2548
    %v2555 = vmul.f32 %v308, %v2552
    %2559 = vrot.lane.b32.xlu0 %v2553, 127
    %v2560 = vpop.permute.xlu0 %2559
    %2561 = vrot.lane.b32.xlu0 %v2554, 127
    %v2562 = vpop.permute.xlu0 %2561
    %2563 = vrot.lane.b32.xlu0 %v2555, 127
    %v2564 = vpop.permute.xlu0 %2563
    %v2565 = vsel %vm297, %v2560, %v2562
    %v2566 = vsel %vm297, %v2562, %v2564
    %v2570 = vadd.f32 %v2538, %v2565
    %v2571 = vadd.f32 %v2539, %v2566
    %v2572 = vadd.f32 %v2540, %v2564
    %v2573 = vlaneseq
    %v2574 = vshrl.u32 %v2573, 7
    %v2575 = vsub.s32 0, %v2574
    %v2576 = vrot.slane %v2473, %v2575
    %v2577 = vlaneseq
    %v2578 = vshrl.u32 %v2577, 7
    %v2579 = vsub.s32 0, %v2578
    %v2580 = vrot.slane %v2474, %v2579
    %v2581 = vlaneseq
    %v2582 = vshrl.u32 %v2581, 7
    %v2583 = vsub.s32 0, %v2582
    %v2584 = vrot.slane %v2475, %v2583
    %v2585 = vmul.f32 %v344, %v2576
    %v2586 = vmul.f32 %v344, %v2580
    %v2587 = vmul.f32 %v344, %v2584
    %2591 = vrot.lane.b32.xlu0 %v2585, 112
    %v2592 = vpop.permute.xlu0 %2591
    %2593 = vrot.lane.b32.xlu0 %v2586, 112
    %v2594 = vpop.permute.xlu0 %2593
    %2595 = vrot.lane.b32.xlu0 %v2587, 112
    %v2596 = vpop.permute.xlu0 %2595
    %v2597 = vsel %vm370, %v2592, %v2594
    %v2598 = vsel %vm370, %v2594, %v2596
    %v2602 = vadd.f32 %v2570, %v2597
    %v2603 = vadd.f32 %v2571, %v2598
    %v2604 = vadd.f32 %v2572, %v2596
    %v2605 = vlaneseq
    %v2606 = vshrl.u32 %v2605, 7
    %v2607 = vsub.s32 0, %v2606
    %v2608 = vrot.slane %v2411, %v2607
    %v2609 = vlaneseq
    %v2610 = vshrl.u32 %v2609, 7
    %v2611 = vsub.s32 0, %v2610
    %v2612 = vrot.slane %v2407, %v2611
    %v2613 = vlaneseq
    %v2614 = vshrl.u32 %v2613, 7
    %v2615 = vsub.s32 0, %v2614
    %v2616 = vrot.slane %v2412, %v2615
    %v2617 = vmul.f32 %v381, %v2608
    %v2618 = vmul.f32 %v381, %v2612
    %v2619 = vmul.f32 %v381, %v2616
    %2623 = vrot.lane.b32.xlu0 %v2617, 111
    %v2624 = vpop.permute.xlu0 %2623
    %2625 = vrot.lane.b32.xlu0 %v2618, 111
    %v2626 = vpop.permute.xlu0 %2625
    %2627 = vrot.lane.b32.xlu0 %v2619, 111
    %v2628 = vpop.permute.xlu0 %2627
    %v2629 = vsel %vm407, %v2624, %v2626
    %v2630 = vsel %vm407, %v2626, %v2628
    %v2634 = vadd.f32 %v2602, %v2629
    %v2635 = vadd.f32 %v2603, %v2630
    %v2636 = vadd.f32 %v2604, %v2628
    %v2637 = vlaneseq
    %v2638 = vshrl.u32 %v2637, 7
    %v2639 = vsub.s32 0, %v2638
    %v2640 = vrot.slane %v2429, %v2639
    %v2641 = vlaneseq
    %v2642 = vshrl.u32 %v2641, 7
    %v2643 = vsub.s32 0, %v2642
    %v2644 = vrot.slane %v2425, %v2643
    %v2645 = vlaneseq
    %v2646 = vshrl.u32 %v2645, 7
    %v2647 = vsub.s32 0, %v2646
    %v2648 = vrot.slane %v2430, %v2647
    %v2649 = vmul.f32 %v418, %v2640
    %v2650 = vmul.f32 %v418, %v2644
    %v2651 = vmul.f32 %v418, %v2648
    %2655 = vrot.lane.b32.xlu0 %v2649, 111
    %v2656 = vpop.permute.xlu0 %2655
    %2657 = vrot.lane.b32.xlu0 %v2650, 111
    %v2658 = vpop.permute.xlu0 %2657
    %2659 = vrot.lane.b32.xlu0 %v2651, 111
    %v2660 = vpop.permute.xlu0 %2659
    %v2661 = vsel %vm407, %v2656, %v2658
    %v2662 = vsel %vm407, %v2658, %v2660
    %v2666 = vadd.f32 %v2634, %v2661
    %v2667 = vadd.f32 %v2635, %v2662
    %v2668 = vadd.f32 %v2636, %v2660
    %v2669 = vlaneseq
    %v2670 = vshrl.u32 %v2669, 7
    %v2671 = vsub.s32 0, %v2670
    %v2672 = vrot.slane %v2479, %v2671
    %v2673 = vlaneseq
    %v2674 = vshrl.u32 %v2673, 7
    %v2675 = vsub.s32 0, %v2674
    %v2676 = vrot.slane %v2480, %v2675
    %v2677 = vlaneseq
    %v2678 = vshrl.u32 %v2677, 7
    %v2679 = vsub.s32 0, %v2678
    %v2680 = vrot.slane %v2481, %v2679
    %v2681 = vmul.f32 %v454, %v2672
    %v2682 = vmul.f32 %v454, %v2676
    %v2683 = vmul.f32 %v454, %v2680
    %2687 = vrot.lane.b32.xlu0 %v2681, 112
    %v2688 = vpop.permute.xlu0 %2687
    %2689 = vrot.lane.b32.xlu0 %v2682, 112
    %v2690 = vpop.permute.xlu0 %2689
    %2691 = vrot.lane.b32.xlu0 %v2683, 112
    %v2692 = vpop.permute.xlu0 %2691
    %v2693 = vsel %vm370, %v2688, %v2690
    %v2694 = vsel %vm370, %v2690, %v2692
    %v2698 = vadd.f32 %v2666, %v2693
    %v2699 = vadd.f32 %v2667, %v2694
    %v2700 = vadd.f32 %v2668, %v2692
    %v2701 = vmul.f32 %v490, %v2512
    %v2702 = vmul.f32 %v490, %v2516
    %v2703 = vmul.f32 %v490, %v2520
    %2707 = vrot.lane.b32.xlu0 %v2701, 111
    %v2708 = vpop.permute.xlu0 %2707
    %2709 = vrot.lane.b32.xlu0 %v2702, 111
    %v2710 = vpop.permute.xlu0 %2709
    %2711 = vrot.lane.b32.xlu0 %v2703, 111
    %v2712 = vpop.permute.xlu0 %2711
    %v2713 = vsel %vm407, %v2708, %v2710
    %v2714 = vsel %vm407, %v2710, %v2712
    %v2718 = vadd.f32 %v2698, %v2713
    %v2719 = vadd.f32 %v2699, %v2714
    %v2720 = vadd.f32 %v2700, %v2712
    %v2721 = vmul.f32 %v514, %v2544
    %v2722 = vmul.f32 %v514, %v2548
    %v2723 = vmul.f32 %v514, %v2552
    %2727 = vrot.lane.b32.xlu0 %v2721, 111
    %v2728 = vpop.permute.xlu0 %2727
    %2729 = vrot.lane.b32.xlu0 %v2722, 111
    %v2730 = vpop.permute.xlu0 %2729
    %2731 = vrot.lane.b32.xlu0 %v2723, 111
    %v2732 = vpop.permute.xlu0 %2731
    %v2733 = vsel %vm407, %v2728, %v2730
    %v2734 = vsel %vm407, %v2730, %v2732
    %v2738 = vadd.f32 %v2718, %v2733
    %v2739 = vadd.f32 %v2719, %v2734
    %v2740 = vadd.f32 %v2720, %v2732
    %v2741 = vmul.f32 %v2738, %v539
    %v2742 = vmul.f32 %v2739, %v539
    %v2743 = vmul.f32 %v2740, %v539
    %v2744 = vadd.f32 %v2741, %v547
    %v2745 = vadd.f32 %v2742, %v547
    %v2746 = vadd.f32 %v2743, %v547
    %v2747 = vmax.f32 %v2744, 0.0
    %v2748 = vmax.f32 %v2745, 0.0
    %v2749 = vmax.f32 %v2746, 0.0
    %v2750 = vmul.f32 %v249, %v2512
    %v2751 = vmul.f32 %v249, %v2516
    %v2752 = vmul.f32 %v249, %v2520
    %v2753 = vadd.f32 %v2750, 0.0
    %v2754 = vadd.f32 %v2751, 0.0
    %v2755 = vadd.f32 %v2752, 0.0
    %v2756 = vmul.f32 %v271, %v2544
    %v2757 = vmul.f32 %v271, %v2548
    %v2758 = vmul.f32 %v271, %v2552
    %v2759 = vadd.f32 %v2753, %v2756
    %v2760 = vadd.f32 %v2754, %v2757
    %v2761 = vadd.f32 %v2755, %v2758
    %v2762 = vlaneseq
    %v2763 = vshrl.u32 %v2762, 7
    %v2764 = vsub.s32 0, %v2763
    %v2765 = vrot.slane %v2470, %v2764
    %v2766 = vlaneseq
    %v2767 = vshrl.u32 %v2766, 7
    %v2768 = vsub.s32 0, %v2767
    %v2769 = vrot.slane %v2471, %v2768
    %v2770 = vlaneseq
    %v2771 = vshrl.u32 %v2770, 7
    %v2772 = vsub.s32 0, %v2771
    %v2773 = vrot.slane %v2472, %v2772
    %v2774 = vmul.f32 %v308, %v2765
    %v2775 = vmul.f32 %v308, %v2769
    %v2776 = vmul.f32 %v308, %v2773
    %2780 = vrot.lane.b32.xlu0 %v2774, 127
    %v2781 = vpop.permute.xlu0 %2780
    %2782 = vrot.lane.b32.xlu0 %v2775, 127
    %v2783 = vpop.permute.xlu0 %2782
    %2784 = vrot.lane.b32.xlu0 %v2776, 127
    %v2785 = vpop.permute.xlu0 %2784
    %v2786 = vsel %vm297, %v2781, %v2783
    %v2787 = vsel %vm297, %v2783, %v2785
    %v2791 = vadd.f32 %v2759, %v2786
    %v2792 = vadd.f32 %v2760, %v2787
    %v2793 = vadd.f32 %v2761, %v2785
    %v2794 = vmul.f32 %v344, %v2608
    %v2795 = vmul.f32 %v344, %v2612
    %v2796 = vmul.f32 %v344, %v2616
    %2800 = vrot.lane.b32.xlu0 %v2794, 112
    %v2801 = vpop.permute.xlu0 %2800
    %2802 = vrot.lane.b32.xlu0 %v2795, 112
    %v2803 = vpop.permute.xlu0 %2802
    %2804 = vrot.lane.b32.xlu0 %v2796, 112
    %v2805 = vpop.permute.xlu0 %2804
    %v2806 = vsel %vm370, %v2801, %v2803
    %v2807 = vsel %vm370, %v2803, %v2805
    %v2811 = vadd.f32 %v2791, %v2806
    %v2812 = vadd.f32 %v2792, %v2807
    %v2813 = vadd.f32 %v2793, %v2805
    %v2814 = vmul.f32 %v381, %v2640
    %v2815 = vmul.f32 %v381, %v2644
    %v2816 = vmul.f32 %v381, %v2648
    %2820 = vrot.lane.b32.xlu0 %v2814, 112
    %v2821 = vpop.permute.xlu0 %2820
    %2822 = vrot.lane.b32.xlu0 %v2815, 112
    %v2823 = vpop.permute.xlu0 %2822
    %2824 = vrot.lane.b32.xlu0 %v2816, 112
    %v2825 = vpop.permute.xlu0 %2824
    %v2826 = vsel %vm370, %v2821, %v2823
    %v2827 = vsel %vm370, %v2823, %v2825
    %v2831 = vadd.f32 %v2811, %v2826
    %v2832 = vadd.f32 %v2812, %v2827
    %v2833 = vadd.f32 %v2813, %v2825
    %v2834 = vlaneseq
    %v2835 = vshrl.u32 %v2834, 7
    %v2836 = vsub.s32 0, %v2835
    %v2837 = vrot.slane %v2476, %v2836
    %v2838 = vlaneseq
    %v2839 = vshrl.u32 %v2838, 7
    %v2840 = vsub.s32 0, %v2839
    %v2841 = vrot.slane %v2477, %v2840
    %v2842 = vlaneseq
    %v2843 = vshrl.u32 %v2842, 7
    %v2844 = vsub.s32 0, %v2843
    %v2845 = vrot.slane %v2478, %v2844
    %v2846 = vmul.f32 %v418, %v2837
    %v2847 = vmul.f32 %v418, %v2841
    %v2848 = vmul.f32 %v418, %v2845
    %2852 = vrot.lane.b32.xlu0 %v2846, 111
    %v2853 = vpop.permute.xlu0 %2852
    %2854 = vrot.lane.b32.xlu0 %v2847, 111
    %v2855 = vpop.permute.xlu0 %2854
    %2856 = vrot.lane.b32.xlu0 %v2848, 111
    %v2857 = vpop.permute.xlu0 %2856
    %v2858 = vsel %vm407, %v2853, %v2855
    %v2859 = vsel %vm407, %v2855, %v2857
    %v2863 = vadd.f32 %v2831, %v2858
    %v2864 = vadd.f32 %v2832, %v2859
    %v2865 = vadd.f32 %v2833, %v2857
    %v2866 = vmul.f32 %v454, %v2512
    %v2867 = vmul.f32 %v454, %v2516
    %v2868 = vmul.f32 %v454, %v2520
    %2872 = vrot.lane.b32.xlu0 %v2866, 112
    %v2873 = vpop.permute.xlu0 %2872
    %2874 = vrot.lane.b32.xlu0 %v2867, 112
    %v2875 = vpop.permute.xlu0 %2874
    %2876 = vrot.lane.b32.xlu0 %v2868, 112
    %v2877 = vpop.permute.xlu0 %2876
    %v2878 = vsel %vm370, %v2873, %v2875
    %v2879 = vsel %vm370, %v2875, %v2877
    %v2883 = vadd.f32 %v2863, %v2878
    %v2884 = vadd.f32 %v2864, %v2879
    %v2885 = vadd.f32 %v2865, %v2877
    %v2886 = vmul.f32 %v490, %v2544
    %v2887 = vmul.f32 %v490, %v2548
    %v2888 = vmul.f32 %v490, %v2552
    %2892 = vrot.lane.b32.xlu0 %v2886, 112
    %v2893 = vpop.permute.xlu0 %2892
    %2894 = vrot.lane.b32.xlu0 %v2887, 112
    %v2895 = vpop.permute.xlu0 %2894
    %2896 = vrot.lane.b32.xlu0 %v2888, 112
    %v2897 = vpop.permute.xlu0 %2896
    %v2898 = vsel %vm370, %v2893, %v2895
    %v2899 = vsel %vm370, %v2895, %v2897
    %v2903 = vadd.f32 %v2883, %v2898
    %v2904 = vadd.f32 %v2884, %v2899
    %v2905 = vadd.f32 %v2885, %v2897
    %v2906 = vlaneseq
    %v2907 = vshrl.u32 %v2906, 7
    %v2908 = vsub.s32 0, %v2907
    %v2909 = vrot.slane %v2482, %v2908
    %v2910 = vlaneseq
    %v2911 = vshrl.u32 %v2910, 7
    %v2912 = vsub.s32 0, %v2911
    %v2913 = vrot.slane %v2483, %v2912
    %v2914 = vlaneseq
    %v2915 = vshrl.u32 %v2914, 7
    %v2916 = vsub.s32 0, %v2915
    %v2917 = vrot.slane %v2484, %v2916
    %v2918 = vmul.f32 %v514, %v2909
    %v2919 = vmul.f32 %v514, %v2913
    %v2920 = vmul.f32 %v514, %v2917
    %2924 = vrot.lane.b32.xlu0 %v2918, 111
    %v2925 = vpop.permute.xlu0 %2924
    %2926 = vrot.lane.b32.xlu0 %v2919, 111
    %v2927 = vpop.permute.xlu0 %2926
    %2928 = vrot.lane.b32.xlu0 %v2920, 111
    %v2929 = vpop.permute.xlu0 %2928
    %v2930 = vsel %vm407, %v2925, %v2927
    %v2931 = vsel %vm407, %v2927, %v2929
    %v2935 = vadd.f32 %v2903, %v2930
    %v2936 = vadd.f32 %v2904, %v2931
    %v2937 = vadd.f32 %v2905, %v2929
    %v2938 = vmul.f32 %v2935, %v539
    %v2939 = vmul.f32 %v2936, %v539
    %v2940 = vmul.f32 %v2937, %v539
    %v2941 = vadd.f32 %v2938, %v547
    %v2942 = vadd.f32 %v2939, %v547
    %v2943 = vadd.f32 %v2940, %v547
    %v2944 = vmax.f32 %v2941, 0.0
    %v2945 = vmax.f32 %v2942, 0.0
    %v2946 = vmax.f32 %v2943, 0.0
    %2950 = vrot.lane.b32.xlu0 %v2944, 127
    %v2951 = vpop.permute.xlu0 %2950
    %2952 = vrot.lane.b32.xlu0 %v2945, 127
    %v2953 = vpop.permute.xlu0 %2952
    %2954 = vrot.lane.b32.xlu0 %v2946, 127
    %v2955 = vpop.permute.xlu0 %2954
    %v2956 = vsel %vm297, %v2951, %v2953
    %v2957 = vsel %vm297, %v2953, %v2955
    %v2961 = vmax.f32 %v2747, %v2956
    %v2962 = vmax.f32 %v2748, %v2957
    %v2963 = vmax.f32 %v2749, %v2955
    %v2964 = vmul.f32 %v249, %v2576
    %v2965 = vmul.f32 %v249, %v2580
    %v2966 = vmul.f32 %v249, %v2584
    %v2967 = vadd.f32 %v2964, 0.0
    %v2968 = vadd.f32 %v2965, 0.0
    %v2969 = vadd.f32 %v2966, 0.0
    %v2970 = vmul.f32 %v271, %v2608
    %v2971 = vmul.f32 %v271, %v2612
    %v2972 = vmul.f32 %v271, %v2616
    %2976 = vrot.lane.b32.xlu0 %v2970, 127
    %v2977 = vpop.permute.xlu0 %2976
    %2978 = vrot.lane.b32.xlu0 %v2971, 127
    %v2979 = vpop.permute.xlu0 %2978
    %2980 = vrot.lane.b32.xlu0 %v2972, 127
    %v2981 = vpop.permute.xlu0 %2980
    %v2982 = vsel %vm297, %v2977, %v2979
    %v2983 = vsel %vm297, %v2979, %v2981
    %v2987 = vadd.f32 %v2967, %v2982
    %v2988 = vadd.f32 %v2968, %v2983
    %v2989 = vadd.f32 %v2969, %v2981
    %v2990 = vmul.f32 %v308, %v2640
    %v2991 = vmul.f32 %v308, %v2644
    %v2992 = vmul.f32 %v308, %v2648
    %2996 = vrot.lane.b32.xlu0 %v2990, 127
    %v2997 = vpop.permute.xlu0 %2996
    %2998 = vrot.lane.b32.xlu0 %v2991, 127
    %v2999 = vpop.permute.xlu0 %2998
    %3000 = vrot.lane.b32.xlu0 %v2992, 127
    %v3001 = vpop.permute.xlu0 %3000
    %v3002 = vsel %vm297, %v2997, %v2999
    %v3003 = vsel %vm297, %v2999, %v3001
    %v3007 = vadd.f32 %v2987, %v3002
    %v3008 = vadd.f32 %v2988, %v3003
    %v3009 = vadd.f32 %v2989, %v3001
    %v3010 = vmul.f32 %v344, %v2672
    %v3011 = vmul.f32 %v344, %v2676
    %v3012 = vmul.f32 %v344, %v2680
    %v3013 = vadd.f32 %v3007, %v3010
    %v3014 = vadd.f32 %v3008, %v3011
    %v3015 = vadd.f32 %v3009, %v3012
    %v3016 = vmul.f32 %v381, %v2512
    %v3017 = vmul.f32 %v381, %v2516
    %v3018 = vmul.f32 %v381, %v2520
    %3022 = vrot.lane.b32.xlu0 %v3016, 127
    %v3023 = vpop.permute.xlu0 %3022
    %3024 = vrot.lane.b32.xlu0 %v3017, 127
    %v3025 = vpop.permute.xlu0 %3024
    %3026 = vrot.lane.b32.xlu0 %v3018, 127
    %v3027 = vpop.permute.xlu0 %3026
    %v3028 = vsel %vm297, %v3023, %v3025
    %v3029 = vsel %vm297, %v3025, %v3027
    %v3033 = vadd.f32 %v3013, %v3028
    %v3034 = vadd.f32 %v3014, %v3029
    %v3035 = vadd.f32 %v3015, %v3027
    %v3036 = vmul.f32 %v418, %v2544
    %v3037 = vmul.f32 %v418, %v2548
    %v3038 = vmul.f32 %v418, %v2552
    %3042 = vrot.lane.b32.xlu0 %v3036, 127
    %v3043 = vpop.permute.xlu0 %3042
    %3044 = vrot.lane.b32.xlu0 %v3037, 127
    %v3045 = vpop.permute.xlu0 %3044
    %3046 = vrot.lane.b32.xlu0 %v3038, 127
    %v3047 = vpop.permute.xlu0 %3046
    %v3048 = vsel %vm297, %v3043, %v3045
    %v3049 = vsel %vm297, %v3045, %v3047
    %v3053 = vadd.f32 %v3033, %v3048
    %v3054 = vadd.f32 %v3034, %v3049
    %v3055 = vadd.f32 %v3035, %v3047
    %v3056 = vlaneseq
    %v3057 = vshrl.u32 %v3056, 7
    %v3058 = vsub.s32 0, %v3057
    %v3059 = vrot.slane %v2485, %v3058
    %v3060 = vlaneseq
    %v3061 = vshrl.u32 %v3060, 7
    %v3062 = vsub.s32 0, %v3061
    %v3063 = vrot.slane %v2486, %v3062
    %v3064 = vlaneseq
    %v3065 = vshrl.u32 %v3064, 7
    %v3066 = vsub.s32 0, %v3065
    %v3067 = vrot.slane %v2487, %v3066
    %v3068 = vmul.f32 %v454, %v3059
    %v3069 = vmul.f32 %v454, %v3063
    %v3070 = vmul.f32 %v454, %v3067
    %3074 = vrot.lane.b32.xlu0 %v3068, 112
    %v3075 = vpop.permute.xlu0 %3074
    %3076 = vrot.lane.b32.xlu0 %v3069, 112
    %v3077 = vpop.permute.xlu0 %3076
    %3078 = vrot.lane.b32.xlu0 %v3070, 112
    %v3079 = vpop.permute.xlu0 %3078
    %v3080 = vsel %vm370, %v3075, %v3077
    %v3081 = vsel %vm370, %v3077, %v3079
    %v3085 = vadd.f32 %v3053, %v3080
    %v3086 = vadd.f32 %v3054, %v3081
    %v3087 = vadd.f32 %v3055, %v3079
    %v3088 = vmul.f32 %v490, %v2608
    %v3089 = vmul.f32 %v490, %v2612
    %v3090 = vmul.f32 %v490, %v2616
    %3094 = vrot.lane.b32.xlu0 %v3088, 111
    %v3095 = vpop.permute.xlu0 %3094
    %3096 = vrot.lane.b32.xlu0 %v3089, 111
    %v3097 = vpop.permute.xlu0 %3096
    %3098 = vrot.lane.b32.xlu0 %v3090, 111
    %v3099 = vpop.permute.xlu0 %3098
    %v3100 = vsel %vm407, %v3095, %v3097
    %v3101 = vsel %vm407, %v3097, %v3099
    %v3105 = vadd.f32 %v3085, %v3100
    %v3106 = vadd.f32 %v3086, %v3101
    %v3107 = vadd.f32 %v3087, %v3099
    %v3108 = vmul.f32 %v514, %v2640
    %v3109 = vmul.f32 %v514, %v2644
    %v3110 = vmul.f32 %v514, %v2648
    %3114 = vrot.lane.b32.xlu0 %v3108, 111
    %v3115 = vpop.permute.xlu0 %3114
    %3116 = vrot.lane.b32.xlu0 %v3109, 111
    %v3117 = vpop.permute.xlu0 %3116
    %3118 = vrot.lane.b32.xlu0 %v3110, 111
    %v3119 = vpop.permute.xlu0 %3118
    %v3120 = vsel %vm407, %v3115, %v3117
    %v3121 = vsel %vm407, %v3117, %v3119
    %v3125 = vadd.f32 %v3105, %v3120
    %v3126 = vadd.f32 %v3106, %v3121
    %v3127 = vadd.f32 %v3107, %v3119
    %v3128 = vmul.f32 %v3125, %v539
    %v3129 = vmul.f32 %v3126, %v539
    %v3130 = vmul.f32 %v3127, %v539
    %v3131 = vadd.f32 %v3128, %v547
    %v3132 = vadd.f32 %v3129, %v547
    %v3133 = vadd.f32 %v3130, %v547
    %v3134 = vmax.f32 %v3131, 0.0
    %v3135 = vmax.f32 %v3132, 0.0
    %v3136 = vmax.f32 %v3133, 0.0
    %3140 = vrot.lane.b32.xlu0 %v3134, 112
    %v3141 = vpop.permute.xlu0 %3140
    %3142 = vrot.lane.b32.xlu0 %v3135, 112
    %v3143 = vpop.permute.xlu0 %3142
    %3144 = vrot.lane.b32.xlu0 %v3136, 112
    %v3145 = vpop.permute.xlu0 %3144
    %v3146 = vsel %vm370, %v3141, %v3143
    %v3147 = vsel %vm370, %v3143, %v3145
    %v3151 = vmax.f32 %v2961, %v3146
    %v3152 = vmax.f32 %v2962, %v3147
    %v3153 = vmax.f32 %v2963, %v3145
    %v3154 = vmul.f32 %v249, %v2608
    %v3155 = vmul.f32 %v249, %v2612
    %v3156 = vmul.f32 %v249, %v2616
    %v3157 = vadd.f32 %v3154, 0.0
    %v3158 = vadd.f32 %v3155, 0.0
    %v3159 = vadd.f32 %v3156, 0.0
    %v3160 = vmul.f32 %v271, %v2640
    %v3161 = vmul.f32 %v271, %v2644
    %v3162 = vmul.f32 %v271, %v2648
    %v3163 = vadd.f32 %v3157, %v3160
    %v3164 = vadd.f32 %v3158, %v3161
    %v3165 = vadd.f32 %v3159, %v3162
    %v3166 = vmul.f32 %v308, %v2837
    %v3167 = vmul.f32 %v308, %v2841
    %v3168 = vmul.f32 %v308, %v2845
    %3172 = vrot.lane.b32.xlu0 %v3166, 127
    %v3173 = vpop.permute.xlu0 %3172
    %3174 = vrot.lane.b32.xlu0 %v3167, 127
    %v3175 = vpop.permute.xlu0 %3174
    %3176 = vrot.lane.b32.xlu0 %v3168, 127
    %v3177 = vpop.permute.xlu0 %3176
    %v3178 = vsel %vm297, %v3173, %v3175
    %v3179 = vsel %vm297, %v3175, %v3177
    %v3183 = vadd.f32 %v3163, %v3178
    %v3184 = vadd.f32 %v3164, %v3179
    %v3185 = vadd.f32 %v3165, %v3177
    %v3186 = vmul.f32 %v344, %v2512
    %v3187 = vmul.f32 %v344, %v2516
    %v3188 = vmul.f32 %v344, %v2520
    %v3189 = vadd.f32 %v3183, %v3186
    %v3190 = vadd.f32 %v3184, %v3187
    %v3191 = vadd.f32 %v3185, %v3188
    %v3192 = vmul.f32 %v381, %v2544
    %v3193 = vmul.f32 %v381, %v2548
    %v3194 = vmul.f32 %v381, %v2552
    %v3195 = vadd.f32 %v3189, %v3192
    %v3196 = vadd.f32 %v3190, %v3193
    %v3197 = vadd.f32 %v3191, %v3194
    %v3198 = vmul.f32 %v418, %v2909
    %v3199 = vmul.f32 %v418, %v2913
    %v3200 = vmul.f32 %v418, %v2917
    %3204 = vrot.lane.b32.xlu0 %v3198, 127
    %v3205 = vpop.permute.xlu0 %3204
    %3206 = vrot.lane.b32.xlu0 %v3199, 127
    %v3207 = vpop.permute.xlu0 %3206
    %3208 = vrot.lane.b32.xlu0 %v3200, 127
    %v3209 = vpop.permute.xlu0 %3208
    %v3210 = vsel %vm297, %v3205, %v3207
    %v3211 = vsel %vm297, %v3207, %v3209
    %v3215 = vadd.f32 %v3195, %v3210
    %v3216 = vadd.f32 %v3196, %v3211
    %v3217 = vadd.f32 %v3197, %v3209
    %v3218 = vmul.f32 %v454, %v2608
    %v3219 = vmul.f32 %v454, %v2612
    %v3220 = vmul.f32 %v454, %v2616
    %3224 = vrot.lane.b32.xlu0 %v3218, 112
    %v3225 = vpop.permute.xlu0 %3224
    %3226 = vrot.lane.b32.xlu0 %v3219, 112
    %v3227 = vpop.permute.xlu0 %3226
    %3228 = vrot.lane.b32.xlu0 %v3220, 112
    %v3229 = vpop.permute.xlu0 %3228
    %v3230 = vsel %vm370, %v3225, %v3227
    %v3231 = vsel %vm370, %v3227, %v3229
    %v3235 = vadd.f32 %v3215, %v3230
    %v3236 = vadd.f32 %v3216, %v3231
    %v3237 = vadd.f32 %v3217, %v3229
    %v3238 = vmul.f32 %v490, %v2640
    %v3239 = vmul.f32 %v490, %v2644
    %v3240 = vmul.f32 %v490, %v2648
    %3244 = vrot.lane.b32.xlu0 %v3238, 112
    %v3245 = vpop.permute.xlu0 %3244
    %3246 = vrot.lane.b32.xlu0 %v3239, 112
    %v3247 = vpop.permute.xlu0 %3246
    %3248 = vrot.lane.b32.xlu0 %v3240, 112
    %v3249 = vpop.permute.xlu0 %3248
    %v3250 = vsel %vm370, %v3245, %v3247
    %v3251 = vsel %vm370, %v3247, %v3249
    %v3255 = vadd.f32 %v3235, %v3250
    %v3256 = vadd.f32 %v3236, %v3251
    %v3257 = vadd.f32 %v3237, %v3249
    %v3258 = vlaneseq
    %v3259 = vshrl.u32 %v3258, 7
    %v3260 = vsub.s32 0, %v3259
    %v3261 = vrot.slane %v2488, %v3260
    %v3262 = vlaneseq
    %v3263 = vshrl.u32 %v3262, 7
    %v3264 = vsub.s32 0, %v3263
    %v3265 = vrot.slane %v2489, %v3264
    %v3266 = vlaneseq
    %v3267 = vshrl.u32 %v3266, 7
    %v3268 = vsub.s32 0, %v3267
    %v3269 = vrot.slane %v2490, %v3268
    %v3270 = vmul.f32 %v514, %v3261
    %v3271 = vmul.f32 %v514, %v3265
    %v3272 = vmul.f32 %v514, %v3269
    %3276 = vrot.lane.b32.xlu0 %v3270, 111
    %v3277 = vpop.permute.xlu0 %3276
    %3278 = vrot.lane.b32.xlu0 %v3271, 111
    %v3279 = vpop.permute.xlu0 %3278
    %3280 = vrot.lane.b32.xlu0 %v3272, 111
    %v3281 = vpop.permute.xlu0 %3280
    %v3282 = vsel %vm407, %v3277, %v3279
    %v3283 = vsel %vm407, %v3279, %v3281
    %v3287 = vadd.f32 %v3255, %v3282
    %v3288 = vadd.f32 %v3256, %v3283
    %v3289 = vadd.f32 %v3257, %v3281
    %v3290 = vmul.f32 %v3287, %v539
    %v3291 = vmul.f32 %v3288, %v539
    %v3292 = vmul.f32 %v3289, %v539
    %v3293 = vadd.f32 %v3290, %v547
    %v3294 = vadd.f32 %v3291, %v547
    %v3295 = vadd.f32 %v3292, %v547
    %v3296 = vmax.f32 %v3293, 0.0
    %v3297 = vmax.f32 %v3294, 0.0
    %v3298 = vmax.f32 %v3295, 0.0
    %3302 = vrot.lane.b32.xlu0 %v3296, 111
    %v3303 = vpop.permute.xlu0 %3302
    %3304 = vrot.lane.b32.xlu0 %v3297, 111
    %v3305 = vpop.permute.xlu0 %3304
    %3306 = vrot.lane.b32.xlu0 %v3298, 111
    %v3307 = vpop.permute.xlu0 %3306
    %v3308 = vsel %vm407, %v3303, %v3305
    %v3309 = vsel %vm407, %v3305, %v3307
    %v3313 = vmax.f32 %v3151, %v3308
    %v3314 = vmax.f32 %v3152, %v3309
    %v3315 = vmax.f32 %v3153, %v3307
    %3319 = vrot.lane.b32.xlu0 %v3313, 16
    %v3320 = vpop.permute.xlu0 %3319
    %3321 = vrot.lane.b32.xlu0 %v3314, 16
    %v3322 = vpop.permute.xlu0 %3321
    %3323 = vrot.lane.b32.xlu0 %v3315, 16
    %v3324 = vpop.permute.xlu0 %3323
    %v3325 = vsel %vm1168, %v3320, %v3322
    %v3326 = vsel %vm1168, %v3322, %v3324
    %v3330 = vsel %vm196, 0.0, %v3320
    %v3331 = vsel %vm196, %v3326, 0.0
    %v3332 = vmul.f32 %v3330, %v1181
    %v3333 = vmul.f32 %v3325, %v1185
    %v3334 = vmul.f32 %v3330, %v1201
    %v3335 = vmul.f32 %v3325, %v1205
    %v3336 = vmul.f32 %v3331, %v1203
    %v3337 = vmul.f32 %v3330, %v1215
    %v3338 = vmul.f32 %v3325, %v1218
    %v3339 = vmul.f32 %v3331, %v1217
    %v3340 = vmul.f32 %v3330, %v1226
    %v3341 = vmul.f32 %v3325, %v1229
    %v3342 = vmul.f32 %v3331, %v1228
    %v3343 = vmul.f32 %v3330, %v1237
    %v3344 = vmul.f32 %v3325, %v1241
    %v3345 = vmul.f32 %v3331, %v1239
    %v3346 = vmul.f32 %v3330, %v1249
    %v3347 = vmul.f32 %v3325, %v1253
    %v3348 = vmul.f32 %v3331, %v1251
    %3351 = vrot.lane.b32.xlu0 %v3330, 127
    %v3352 = vpop.permute.xlu0 %3351
    %3353 = vrot.lane.b32.xlu0 %v3325, 127
    %v3354 = vpop.permute.xlu0 %3353
    %3355 = vrot.lane.b32.xlu0 %v3331, 127
    %v3356 = vpop.permute.xlu0 %3355
    %v3357 = vsel %vm297, %v3352, %v3354
    %v3358 = vsel %vm297, %v3354, %v3356
    %3364 = vrot.lane.b32.xlu0 %v3334, 126
    %v3365 = vpop.permute.xlu0 %3364
    %3366 = vrot.lane.b32.xlu0 %v3335, 126
    %v3367 = vpop.permute.xlu0 %3366
    %3368 = vrot.lane.b32.xlu0 %v3336, 126
    %v3369 = vpop.permute.xlu0 %3368
    %v3370 = vsel %vm1281, %v3365, %v3367
    %v3371 = vsel %vm1281, %v3367, %v3369
    %3377 = vrot.lane.b32.xlu0 %v3337, 112
    %v3378 = vpop.permute.xlu0 %3377
    %3379 = vrot.lane.b32.xlu0 %v3338, 112
    %v3380 = vpop.permute.xlu0 %3379
    %3381 = vrot.lane.b32.xlu0 %v3339, 112
    %v3382 = vpop.permute.xlu0 %3381
    %v3383 = vsel %vm370, %v3378, %v3380
    %v3384 = vsel %vm370, %v3380, %v3382
    %3387 = vrot.lane.b32.xlu0 %v3330, 111
    %v3388 = vpop.permute.xlu0 %3387
    %3389 = vrot.lane.b32.xlu0 %v3325, 111
    %v3390 = vpop.permute.xlu0 %3389
    %3391 = vrot.lane.b32.xlu0 %v3331, 111
    %v3392 = vpop.permute.xlu0 %3391
    %v3393 = vsel %vm407, %v3388, %v3390
    %v3394 = vsel %vm407, %v3390, %v3392
    %3400 = vrot.lane.b32.xlu0 %v3340, 110
    %v3401 = vpop.permute.xlu0 %3400
    %3402 = vrot.lane.b32.xlu0 %v3341, 110
    %v3403 = vpop.permute.xlu0 %3402
    %3404 = vrot.lane.b32.xlu0 %v3342, 110
    %v3405 = vpop.permute.xlu0 %3404
    %v3406 = vsel %vm1318, %v3401, %v3403
    %v3407 = vsel %vm1318, %v3403, %v3405
    %3413 = vrot.lane.b32.xlu0 %v3343, 96
    %v3414 = vpop.permute.xlu0 %3413
    %3415 = vrot.lane.b32.xlu0 %v3344, 96
    %v3416 = vpop.permute.xlu0 %3415
    %3417 = vrot.lane.b32.xlu0 %v3345, 96
    %v3418 = vpop.permute.xlu0 %3417
    %v3419 = vsel %vm1332, %v3414, %v3416
    %v3420 = vsel %vm1332, %v3416, %v3418
    %3423 = vrot.lane.b32.xlu0 %v3330, 95
    %v3424 = vpop.permute.xlu0 %3423
    %3425 = vrot.lane.b32.xlu0 %v3325, 95
    %v3426 = vpop.permute.xlu0 %3425
    %3427 = vrot.lane.b32.xlu0 %v3331, 95
    %v3428 = vpop.permute.xlu0 %3427
    %v3429 = vsel %vm1343, %v3424, %v3426
    %v3430 = vsel %vm1343, %v3426, %v3428
    %3436 = vrot.lane.b32.xlu0 %v3346, 94
    %v3437 = vpop.permute.xlu0 %3436
    %3438 = vrot.lane.b32.xlu0 %v3347, 94
    %v3439 = vpop.permute.xlu0 %3438
    %3440 = vrot.lane.b32.xlu0 %v3348, 94
    %v3441 = vpop.permute.xlu0 %3440
    %v3442 = vsel %vm1357, %v3437, %v3439
    %v3443 = vsel %vm1357, %v3439, %v3441
    %3446 = vmatprep.subr.mxu0 %v3333
    %3447 = vmatpush1.msra.mxu0 %v3332
    %3448 = vmatprep.subr.mxu0 %v3358
    %3449 = vmatpush1.msra.mxu0 %v3357
    %3450 = vmatprep.subr.mxu0 %v3371
    %3451 = vmatpush1.msra.mxu0 %v3370
    %3452 = vmatprep.subr.mxu0 %v3384
    %3453 = vmatpush1.msra.mxu0 %v3383
    %3454 = vmatprep.subr.mxu0 %v3394
    %3455 = vmatpush1.msra.mxu0 %v3393
    %3456 = vmatprep.subr.mxu0 %v3407
    %3457 = vmatpush1.msra.mxu0 %v3406
    %3458 = vmatprep.subr.mxu0 %v3420
    %3459 = vmatpush1.msra.mxu0 %v3419
    %3460 = vmatprep.subr.mxu0 %v3430
    %3461 = vmatpush1.msra.mxu0 %v3429
    %3462 = vmatprep.subr.mxu0 %v3443
    %3463 = vmatpush1.msra.mxu0 %v3442
    %3464 = vmatprep.subr.mxu0 0.0
    %3465 = vmatpush1.msra.mxu0 0.0
    %3466 = vmatprep.subr.mxu0 0.0
    %3467 = vmatpush1.msra.mxu0 0.0
    %3468 = vmatprep.subr.mxu0 0.0
    %3469 = vmatpush1.msra.mxu0 0.0
    %3470 = vmatprep.subr.mxu0 0.0
    %3471 = vmatpush1.msra.mxu0 0.0
    %3472 = vmatprep.subr.mxu0 0.0
    %3473 = vmatpush1.msra.mxu0 0.0
    %3474 = vmatprep.subr.mxu0 0.0
    %3475 = vmatpush1.msra.mxu0 0.0
    %3476 = vmatprep.subr.mxu0 0.0
    %3477 = vmatpush1.msra.mxu0 0.0
    %3478 = vmatprep.subr.mxu0 0.0
    %3479 = vmatpush1.msra.mxu0 0.0
    %3480 = vmatprep.subr.mxu0 0.0
    %3481 = vmatpush1.msra.mxu0 0.0
    %3482 = vmatprep.subr.mxu0 0.0
    %3483 = vmatpush1.msra.mxu0 0.0
    %3484 = vmatprep.subr.mxu0 0.0
    %3485 = vmatpush1.msra.mxu0 0.0
    %3486 = vmatprep.subr.mxu0 0.0
    %3487 = vmatpush1.msra.mxu0 0.0
    %3488 = vmatprep.subr.mxu0 0.0
    %3489 = vmatpush1.msra.mxu0 0.0
    %3490 = vmatprep.subr.mxu0 0.0
    %3491 = vmatpush1.msra.mxu0 0.0
    %3492 = vmatprep.subr.mxu0 0.0
    %3493 = vmatpush1.msra.mxu0 0.0
    %3494 = vmatprep.subr.mxu0 0.0
    %3495 = vmatpush1.msra.mxu0 0.0
    %3496 = vmatprep.subr.mxu0 0.0
    %3497 = vmatpush1.msra.mxu0 0.0
    %3498 = vmatprep.subr.mxu0 0.0
    %3499 = vmatpush1.msra.mxu0 0.0
    %3500 = vmatprep.subr.mxu0 0.0
    %3501 = vmatpush1.msra.mxu0 0.0
    %3502 = vmatprep.subr.mxu0 0.0
    %3503 = vmatpush1.msra.mxu0 0.0
    %3504 = vmatprep.subr.mxu0 0.0
    %3505 = vmatpush1.msra.mxu0 0.0
    %3506 = vmatprep.subr.mxu0 0.0
    %3507 = vmatpush1.msra.mxu0 0.0
    %3508 = vmatprep.subr.mxu0 0.0
    %3509 = vmatpush1.msra.mxu0 0.0
    %3510 = vmatprep.mubr.f32.mxu0 0.0
    %3511 = vmatmul.mubr.f32.gmra.mrb[0].mxu0 %v1364
    %v3512 = vpop.f32.mrb[0].mxu0
    %v3513 = vadd.f32 0.0, %v3512
    %v3514 = vpop.f32.mrb[0].mxu0
    %v3515 = vadd.f32 0.0, %v3514
    %3516 = vmatprep.mubr.f32.mxu0 0.0
    %3517 = vmatmul.mubr.f32.gmra.mrb[0].mxu0 %v1367
    %v3518 = vpop.f32.mrb[0].mxu0
    %v3519 = vadd.f32 0.0, %v3518
    %v3520 = vpop.f32.mrb[0].mxu0
    %v3521 = vadd.f32 0.0, %v3520
    %3522 = vdwg.mxu0
    %v3523 = vmul.f32 %v3513, %v1449
    %v3524 = vmul.f32 %v3515, %v1449
    %v3525 = vmul.f32 %v3519, %v1454
    %v3526 = vmul.f32 %v3521, %v1454
    %v3527 = vadd.f32 %v3523, %v1463
    %v3528 = vadd.f32 %v3524, %v1463
    %v3529 = vadd.f32 %v3525, %v1468
    %v3530 = vadd.f32 %v3526, %v1468
    %v3531 = vmax.f32 %v3527, 0.0
    %v3532 = vmax.f32 %v3528, 0.0
    %v3533 = vmax.f32 %v3529, 0.0
    %v3534 = vmax.f32 %v3530, 0.0
    %3539 = vrot.lane.b32.xlu0 %v3531, 127
    %v3540 = vpop.permute.xlu0 %3539
    %3541 = vrot.lane.b32.xlu0 %v3532, 127
    %v3542 = vpop.permute.xlu0 %3541
    %3543 = vrot.lane.b32.xlu0 %v3533, 127
    %v3544 = vpop.permute.xlu0 %3543
    %3545 = vrot.lane.b32.xlu0 %v3534, 127
    %v3546 = vpop.permute.xlu0 %3545
    %v3547 = vsel %vm297, %v3540, %v3542
    %v3548 = vsel %vm297, %v3542, %v1488
    %v3549 = vsel %vm297, %v3544, %v3546
    %v3550 = vsel %vm297, %v3546, %v1488
    %v3555 = vmax.f32 %v3531, %v3547
    %v3556 = vmax.f32 %v3532, %v3548
    %v3557 = vmax.f32 %v3533, %v3549
    %v3558 = vmax.f32 %v3534, %v3550
    %3559 = vrot.lane.b32.xlu0 %v3531, 112
    %v3560 = vpop.permute.xlu0 %3559
    %3561 = vrot.lane.b32.xlu0 %v3532, 112
    %v3562 = vpop.permute.xlu0 %3561
    %3563 = vrot.lane.b32.xlu0 %v3533, 112
    %v3564 = vpop.permute.xlu0 %3563
    %3565 = vrot.lane.b32.xlu0 %v3534, 112
    %v3566 = vpop.permute.xlu0 %3565
    %v3567 = vsel %vm370, %v3560, %v3562
    %v3568 = vsel %vm370, %v3562, %v1510
    %v3569 = vsel %vm370, %v3564, %v3566
    %v3570 = vsel %vm370, %v3566, %v1510
    %v3575 = vmax.f32 %v3555, %v3567
    %v3576 = vmax.f32 %v3556, %v3568
    %v3577 = vmax.f32 %v3557, %v3569
    %v3578 = vmax.f32 %v3558, %v3570
    %3579 = vrot.lane.b32.xlu0 %v3531, 111
    %v3580 = vpop.permute.xlu0 %3579
    %3581 = vrot.lane.b32.xlu0 %v3532, 111
    %v3582 = vpop.permute.xlu0 %3581
    %3583 = vrot.lane.b32.xlu0 %v3533, 111
    %v3584 = vpop.permute.xlu0 %3583
    %3585 = vrot.lane.b32.xlu0 %v3534, 111
    %v3586 = vpop.permute.xlu0 %3585
    %v3587 = vsel %vm407, %v3580, %v3582
    %v3588 = vsel %vm407, %v3582, %v1532
    %v3589 = vsel %vm407, %v3584, %v3586
    %v3590 = vsel %vm407, %v3586, %v1532
    %v3595 = vmax.f32 %v3575, %v3587
    %v3596 = vmax.f32 %v3576, %v3588
    %v3597 = vmax.f32 %v3577, %v3589
    %v3598 = vmax.f32 %v3578, %v3590
    %3599 = vmatprep.subr.mxu0 0.0
    %3600 = vmatpush1.msra.mxu0 %v1127
    %3601 = vmatprep.subr.mxu0 0.0
    %3602 = vmatpush1.msra.mxu0 %v1128
    %3603 = vmatprep.subr.mxu0 0.0
    %3604 = vmatpush1.msra.mxu0 %v1129
    %3605 = vmatprep.subr.mxu0 0.0
    %3606 = vmatpush1.msra.mxu0 %v1130
    %3607 = vmatprep.subr.mxu0 0.0
    %3608 = vmatpush1.msra.mxu0 %v1131
    %3609 = vmatprep.subr.mxu0 0.0
    %3610 = vmatpush1.msra.mxu0 %v1132
    %3611 = vmatprep.subr.mxu0 0.0
    %3612 = vmatpush1.msra.mxu0 %v1133
    %3613 = vmatprep.subr.mxu0 0.0
    %3614 = vmatpush1.msra.mxu0 %v1134
    %3615 = vmatprep.subr.mxu0 0.0
    %3616 = vmatpush1.msra.mxu0 %v1135
    %3617 = vmatprep.subr.mxu0 0.0
    %3618 = vmatpush1.msra.mxu0 %v1136
    %3619 = vmatprep.subr.mxu0 0.0
    %3620 = vmatpush1.msra.mxu0 %v1137
    %3621 = vmatprep.subr.mxu0 0.0
    %3622 = vmatpush1.msra.mxu0 %v1138
    %3623 = vmatprep.subr.mxu0 0.0
    %3624 = vmatpush1.msra.mxu0 %v1139
    %3625 = vmatprep.subr.mxu0 0.0
    %3626 = vmatpush1.msra.mxu0 %v1140
    %3627 = vmatprep.subr.mxu0 0.0
    %3628 = vmatpush1.msra.mxu0 %v1141
    %3629 = vmatprep.subr.mxu0 0.0
    %3630 = vmatpush1.msra.mxu0 %v1142
    %3631 = vmatprep.subr.mxu0 0.0
    %3632 = vmatpush1.msra.mxu0 %v1143
    %3633 = vmatprep.subr.mxu0 0.0
    %3634 = vmatpush1.msra.mxu0 %v1144
    %3635 = vmatprep.subr.mxu0 0.0
    %3636 = vmatpush1.msra.mxu0 %v1145
    %3637 = vmatprep.subr.mxu0 0.0
    %3638 = vmatpush1.msra.mxu0 %v1146
    %3639 = vmatprep.subr.mxu0 0.0
    %3640 = vmatpush1.msra.mxu0 %v1147
    %3641 = vmatprep.subr.mxu0 0.0
    %3642 = vmatpush1.msra.mxu0 %v1148
    %3643 = vmatprep.subr.mxu0 0.0
    %3644 = vmatpush1.msra.mxu0 %v1149
    %3645 = vmatprep.subr.mxu0 0.0
    %3646 = vmatpush1.msra.mxu0 %v1150
    %3647 = vmatprep.subr.mxu0 0.0
    %3648 = vmatpush1.msra.mxu0 %v1151
    %3649 = vmatprep.subr.mxu0 0.0
    %3650 = vmatpush1.msra.mxu0 %v1152
    %3651 = vmatprep.subr.mxu0 0.0
    %3652 = vmatpush1.msra.mxu0 %v1153
    %3653 = vmatprep.subr.mxu0 0.0
    %3654 = vmatpush1.msra.mxu0 %v1154
    %3655 = vmatprep.subr.mxu0 0.0
    %3656 = vmatpush1.msra.mxu0 %v1155
    %3657 = vmatprep.subr.mxu0 0.0
    %3658 = vmatpush1.msra.mxu0 %v1156
    %3659 = vmatprep.subr.mxu0 0.0
    %3660 = vmatpush1.msra.mxu0 %v1157
    %3661 = vmatprep.subr.mxu0 0.0
    %3662 = vmatpush1.msra.mxu0 %v1158
    %3663 = vmatprep.mubr.f32.mxu0 %v3596
    %3664 = vmatmul.mubr.f32.gmra.mrb[0].mxu0 %v3595
    %v3665 = vpop.f32.mrb[0].mxu0
    %v3666 = vadd.f32 0.0, %v3665
    %v3667 = vpop.f32.mrb[0].mxu0
    %3668 = vmatprep.mubr.f32.mxu0 %v3598
    %3669 = vmatmul.mubr.f32.gmra.mrb[0].mxu0 %v3597
    %v3670 = vpop.f32.mrb[0].mxu0
    %v3671 = vadd.f32 0.0, %v3670
    %v3672 = vpop.f32.mrb[0].mxu0
    %3673 = vdwg.mxu0
    %3676 = vrot.lane.b32.xlu0 %v3666, 9
    %v3677 = vpop.permute.xlu0 %3676
    %3678 = vrot.lane.b32.xlu0 %v3671, 9
    %v3679 = vpop.permute.xlu0 %3678
    %v3682 = vsel %vm1649, 0.0, %v3677
    %v3683 = vsel %vm1649, 0.0, %v3679
    %v3684 = vsel %vm1652, %v3682, 0.0
    %v3685 = vsel %vm1652, %v3683, 0.0
    %v3686 = vmul.f32 %v3684, %v1658
    %v3687 = vmul.f32 %v3685, %v1658
    %v3688 = vmul.f32 %v3684, %v1667
    %v3689 = vmul.f32 %v3685, %v1667
    %v3690 = vmul.f32 %v3684, %v1673
    %v3691 = vmul.f32 %v3685, %v1673
    %v3692 = vmul.f32 %v3684, %v1678
    %v3693 = vmul.f32 %v3685, %v1678
    %v3694 = vmul.f32 %v3684, %v1683
    %v3695 = vmul.f32 %v3685, %v1683
    %v3696 = vmul.f32 %v3684, %v1688
    %v3697 = vmul.f32 %v3685, %v1688
    %3700 = vrot.lane.b32.xlu0 %v3684, 127
    %v3701 = vpop.permute.xlu0 %3700
    %3702 = vrot.lane.b32.xlu0 %v3685, 127
    %v3703 = vpop.permute.xlu0 %3702
    %3708 = vrot.lane.b32.xlu0 %v3688, 126
    %v3709 = vpop.permute.xlu0 %3708
    %3710 = vrot.lane.b32.xlu0 %v3689, 126
    %v3711 = vpop.permute.xlu0 %3710
    %3716 = vrot.lane.b32.xlu0 %v3690, 120
    %v3717 = vpop.permute.xlu0 %3716
    %3718 = vrot.lane.b32.xlu0 %v3691, 120
    %v3719 = vpop.permute.xlu0 %3718
    %3722 = vrot.lane.b32.xlu0 %v3684, 119
    %v3723 = vpop.permute.xlu0 %3722
    %3724 = vrot.lane.b32.xlu0 %v3685, 119
    %v3725 = vpop.permute.xlu0 %3724
    %3730 = vrot.lane.b32.xlu0 %v3692, 118
    %v3731 = vpop.permute.xlu0 %3730
    %3732 = vrot.lane.b32.xlu0 %v3693, 118
    %v3733 = vpop.permute.xlu0 %3732
    %3738 = vrot.lane.b32.xlu0 %v3694, 112
    %v3739 = vpop.permute.xlu0 %3738
    %3740 = vrot.lane.b32.xlu0 %v3695, 112
    %v3741 = vpop.permute.xlu0 %3740
    %3744 = vrot.lane.b32.xlu0 %v3684, 111
    %v3745 = vpop.permute.xlu0 %3744
    %3746 = vrot.lane.b32.xlu0 %v3685, 111
    %v3747 = vpop.permute.xlu0 %3746
    %3752 = vrot.lane.b32.xlu0 %v3696, 110
    %v3753 = vpop.permute.xlu0 %3752
    %3754 = vrot.lane.b32.xlu0 %v3697, 110
    %v3755 = vpop.permute.xlu0 %3754
    %3758 = vmatprep.subr.mxu0 0.0
    %3759 = vmatpush1.msra.mxu0 %v3686
    %3760 = vmatprep.subr.mxu0 0.0
    %3761 = vmatpush1.msra.mxu0 %v3687
    %3762 = vmatprep.subr.mxu0 0.0
    %3763 = vmatpush1.msra.mxu0 %v3701
    %3764 = vmatprep.subr.mxu0 0.0
    %3765 = vmatpush1.msra.mxu0 %v3703
    %3766 = vmatprep.subr.mxu0 0.0
    %3767 = vmatpush1.msra.mxu0 %v3709
    %3768 = vmatprep.subr.mxu0 0.0
    %3769 = vmatpush1.msra.mxu0 %v3711
    %3770 = vmatprep.subr.mxu0 0.0
    %3771 = vmatpush1.msra.mxu0 %v3717
    %3772 = vmatprep.subr.mxu0 0.0
    %3773 = vmatpush1.msra.mxu0 %v3719
    %3774 = vmatprep.subr.mxu0 0.0
    %3775 = vmatpush1.msra.mxu0 %v3723
    %3776 = vmatprep.subr.mxu0 0.0
    %3777 = vmatpush1.msra.mxu0 %v3725
    %3778 = vmatprep.subr.mxu0 0.0
    %3779 = vmatpush1.msra.mxu0 %v3731
    %3780 = vmatprep.subr.mxu0 0.0
    %3781 = vmatpush1.msra.mxu0 %v3733
    %3782 = vmatprep.subr.mxu0 0.0
    %3783 = vmatpush1.msra.mxu0 %v3739
    %3784 = vmatprep.subr.mxu0 0.0
    %3785 = vmatpush1.msra.mxu0 %v3741
    %3786 = vmatprep.subr.mxu0 0.0
    %3787 = vmatpush1.msra.mxu0 %v3745
    %3788 = vmatprep.subr.mxu0 0.0
    %3789 = vmatpush1.msra.mxu0 %v3747
    %3790 = vmatprep.subr.mxu0 0.0
    %3791 = vmatpush1.msra.mxu0 %v3753
    %3792 = vmatprep.subr.mxu0 0.0
    %3793 = vmatpush1.msra.mxu0 %v3755
    %3794 = vmatprep.subr.mxu0 0.0
    %3795 = vmatpush1.msra.mxu0 0.0
    %3796 = vmatprep.subr.mxu0 0.0
    %3797 = vmatpush1.msra.mxu0 0.0
    %3798 = vmatprep.subr.mxu0 0.0
    %3799 = vmatpush1.msra.mxu0 0.0
    %3800 = vmatprep.subr.mxu0 0.0
    %3801 = vmatpush1.msra.mxu0 0.0
    %3802 = vmatprep.subr.mxu0 0.0
    %3803 = vmatpush1.msra.mxu0 0.0
    %3804 = vmatprep.subr.mxu0 0.0
    %3805 = vmatpush1.msra.mxu0 0.0
    %3806 = vmatprep.subr.mxu0 0.0
    %3807 = vmatpush1.msra.mxu0 0.0
    %3808 = vmatprep.subr.mxu0 0.0
    %3809 = vmatpush1.msra.mxu0 0.0
    %3810 = vmatprep.subr.mxu0 0.0
    %3811 = vmatpush1.msra.mxu0 0.0
    %3812 = vmatprep.subr.mxu0 0.0
    %3813 = vmatpush1.msra.mxu0 0.0
    %3814 = vmatprep.subr.mxu0 0.0
    %3815 = vmatpush1.msra.mxu0 0.0
    %3816 = vmatprep.subr.mxu0 0.0
    %3817 = vmatpush1.msra.mxu0 0.0
    %3818 = vmatprep.subr.mxu0 0.0
    %3819 = vmatpush1.msra.mxu0 0.0
    %3820 = vmatprep.subr.mxu0 0.0
    %3821 = vmatpush1.msra.mxu0 0.0
    %3822 = vmatprep.mubr.f32.mxu0 %v1753
    %3823 = vmatmul.mubr.f32.gmra.mrb[0].mxu0 %v1624
    %v3824 = vpop.f32.mrb[0].mxu0
    %v3825 = vadd.f32 0.0, %v3824
    %v3826 = vpop.f32.mrb[0].mxu0
    %3827 = vmatprep.mubr.f32.mxu0 %v1756
    %3828 = vmatmul.mubr.f32.gmra.mrb[0].mxu0 %v1626
    %v3829 = vpop.f32.mrb[0].mxu0
    %v3830 = vadd.f32 0.0, %v3829
    %v3831 = vpop.f32.mrb[0].mxu0
    %3832 = vdwg.mxu0
    %v3833 = vmul.f32 %v3825, %v1836
    %v3834 = vmul.f32 %v3830, %v1841
    %v3835 = vadd.f32 %v3833, %v1848
    %v3836 = vadd.f32 %v3834, %v1853
    %v3837 = vmax.f32 %v3835, 0.0
    %v3838 = vmax.f32 %v3836, 0.0
    %v3839 = vsel %vm1859, %v3837, 0.0
    %v3840 = vsel %vm1859, %v3838, 0.0
    %3843 = vrot.lane.b32.xlu0 %v3839, 127
    %v3844 = vpop.permute.xlu0 %3843
    %3845 = vrot.lane.b32.xlu0 %v3840, 127
    %v3846 = vpop.permute.xlu0 %3845
    %v3849 = vmax.f32 %v3837, %v3844
    %v3850 = vmax.f32 %v3838, %v3846
    %3851 = vrot.lane.b32.xlu0 %v3839, 120
    %v3852 = vpop.permute.xlu0 %3851
    %3853 = vrot.lane.b32.xlu0 %v3840, 120
    %v3854 = vpop.permute.xlu0 %3853
    %v3857 = vmax.f32 %v3849, %v3852
    %v3858 = vmax.f32 %v3850, %v3854
    %3859 = vrot.lane.b32.xlu0 %v3839, 119
    %v3860 = vpop.permute.xlu0 %3859
    %3861 = vrot.lane.b32.xlu0 %v3840, 119
    %v3862 = vpop.permute.xlu0 %3861
    %v3865 = vmax.f32 %v3857, %v3860
    %v3866 = vmax.f32 %v3858, %v3862
    %v3868 = vsel %vm1859, %v3865, 0
    %v3871 = vsel %vm1859, %v3866, 0
    %3873 = vmatprep.subr.mxu0 0.0
    %3874 = vmatpush1.msra.mxu0 %v1633
    %3875 = vmatprep.subr.mxu0 0.0
    %3876 = vmatpush1.msra.mxu0 %v1634
    %3877 = vmatprep.subr.mxu0 0.0
    %3878 = vmatpush1.msra.mxu0 %v1635
    %3879 = vmatprep.subr.mxu0 0.0
    %3880 = vmatpush1.msra.mxu0 %v1636
    %3881 = vmatprep.subr.mxu0 0.0
    %3882 = vmatpush1.msra.mxu0 %v1637
    %3883 = vmatprep.subr.mxu0 0.0
    %3884 = vmatpush1.msra.mxu0 %v1638
    %3885 = vmatprep.subr.mxu0 0.0
    %3886 = vmatpush1.msra.mxu0 %v1639
    %3887 = vmatprep.subr.mxu0 0.0
    %3888 = vmatpush1.msra.mxu0 %v1640
    %3889 = vmatprep.subr.mxu0 0.0
    %3890 = vmatpush1.msra.mxu0 0.0
    %3891 = vmatprep.subr.mxu0 0.0
    %3892 = vmatpush1.msra.mxu0 0.0
    %3893 = vmatprep.subr.mxu0 0.0
    %3894 = vmatpush1.msra.mxu0 0.0
    %3895 = vmatprep.subr.mxu0 0.0
    %3896 = vmatpush1.msra.mxu0 0.0
    %3897 = vmatprep.subr.mxu0 0.0
    %3898 = vmatpush1.msra.mxu0 0.0
    %3899 = vmatprep.subr.mxu0 0.0
    %3900 = vmatpush1.msra.mxu0 0.0
    %3901 = vmatprep.subr.mxu0 0.0
    %3902 = vmatpush1.msra.mxu0 0.0
    %3903 = vmatprep.subr.mxu0 0.0
    %3904 = vmatpush1.msra.mxu0 0.0
    %3905 = vmatprep.subr.mxu0 0.0
    %3906 = vmatpush1.msra.mxu0 0.0
    %3907 = vmatprep.subr.mxu0 0.0
    %3908 = vmatpush1.msra.mxu0 0.0
    %3909 = vmatprep.subr.mxu0 0.0
    %3910 = vmatpush1.msra.mxu0 0.0
    %3911 = vmatprep.subr.mxu0 0.0
    %3912 = vmatpush1.msra.mxu0 0.0
    %3913 = vmatprep.subr.mxu0 0.0
    %3914 = vmatpush1.msra.mxu0 0.0
    %3915 = vmatprep.subr.mxu0 0.0
    %3916 = vmatpush1.msra.mxu0 0.0
    %3917 = vmatprep.subr.mxu0 0.0
    %3918 = vmatpush1.msra.mxu0 0.0
    %3919 = vmatprep.subr.mxu0 0.0
    %3920 = vmatpush1.msra.mxu0 0.0
    %3921 = vmatprep.subr.mxu0 0.0
    %3922 = vmatpush1.msra.mxu0 0.0
    %3923 = vmatprep.subr.mxu0 0.0
    %3924 = vmatpush1.msra.mxu0 0.0
    %3925 = vmatprep.subr.mxu0 0.0
    %3926 = vmatpush1.msra.mxu0 0.0
    %3927 = vmatprep.subr.mxu0 0.0
    %3928 = vmatpush1.msra.mxu0 0.0
    %3929 = vmatprep.subr.mxu0 0.0
    %3930 = vmatpush1.msra.mxu0 0.0
    %3931 = vmatprep.subr.mxu0 0.0
    %3932 = vmatpush1.msra.mxu0 0.0
    %3933 = vmatprep.subr.mxu0 0.0
    %3934 = vmatpush1.msra.mxu0 0.0
    %3935 = vmatprep.subr.mxu0 0.0
    %3936 = vmatpush1.msra.mxu0 0.0
    %3937 = vmatprep.mubr.f32.mxu0 0.0
    %3938 = vmatmul.mubr.f32.gmra.mrb[0].mxu0 %v3868
    %v3939 = vpop.f32.mrb[0].mxu0
    %v3940 = vadd.f32 0.0, %v3939
    %v3941 = vpop.f32.mrb[0].mxu0
    %3942 = vmatprep.mubr.f32.mxu0 0.0
    %3943 = vmatmul.mubr.f32.gmra.mrb[0].mxu0 %v3871
    %v3944 = vpop.f32.mrb[0].mxu0
    %v3945 = vadd.f32 0.0, %v3944
    %v3946 = vpop.f32.mrb[0].mxu0
    %3947 = vdwg.mxu0
    %3950 = vrot.lane.b32.xlu0 %v3940, 5
    %v3951 = vpop.permute.xlu0 %3950
    %3952 = vrot.lane.b32.xlu0 %v3945, 5
    %v3953 = vpop.permute.xlu0 %3952
    %v3956 = vsel %vm1988, 0.0, %v3951
    %v3957 = vsel %vm1988, 0.0, %v3953
    %v3958 = vsel %vm1991, %v3956, 0.0
    %v3959 = vsel %vm1991, %v3957, 0.0
    %v3960 = vmul.f32 %v3958, %v1997
    %v3961 = vmul.f32 %v3959, %v1997
    %v3962 = vmul.f32 %v3958, %v2006
    %v3963 = vmul.f32 %v3959, %v2006
    %v3964 = vmul.f32 %v3958, %v2012
    %v3965 = vmul.f32 %v3959, %v2012
    %v3966 = vmul.f32 %v3958, %v2017
    %v3967 = vmul.f32 %v3959, %v2017
    %v3968 = vmul.f32 %v3958, %v2022
    %v3969 = vmul.f32 %v3959, %v2022
    %v3970 = vmul.f32 %v3958, %v2027
    %v3971 = vmul.f32 %v3959, %v2027
    %3974 = vrot.lane.b32.xlu0 %v3958, 127
    %v3975 = vpop.permute.xlu0 %3974
    %3976 = vrot.lane.b32.xlu0 %v3959, 127
    %v3977 = vpop.permute.xlu0 %3976
    %3982 = vrot.lane.b32.xlu0 %v3962, 126
    %v3983 = vpop.permute.xlu0 %3982
    %3984 = vrot.lane.b32.xlu0 %v3963, 126
    %v3985 = vpop.permute.xlu0 %3984
    %3990 = vrot.lane.b32.xlu0 %v3964, 124
    %v3991 = vpop.permute.xlu0 %3990
    %3992 = vrot.lane.b32.xlu0 %v3965, 124
    %v3993 = vpop.permute.xlu0 %3992
    %3996 = vrot.lane.b32.xlu0 %v3958, 123
    %v3997 = vpop.permute.xlu0 %3996
    %3998 = vrot.lane.b32.xlu0 %v3959, 123
    %v3999 = vpop.permute.xlu0 %3998
    %4004 = vrot.lane.b32.xlu0 %v3966, 122
    %v4005 = vpop.permute.xlu0 %4004
    %4006 = vrot.lane.b32.xlu0 %v3967, 122
    %v4007 = vpop.permute.xlu0 %4006
    %4012 = vrot.lane.b32.xlu0 %v3968, 120
    %v4013 = vpop.permute.xlu0 %4012
    %4014 = vrot.lane.b32.xlu0 %v3969, 120
    %v4015 = vpop.permute.xlu0 %4014
    %4018 = vrot.lane.b32.xlu0 %v3958, 119
    %v4019 = vpop.permute.xlu0 %4018
    %4020 = vrot.lane.b32.xlu0 %v3959, 119
    %v4021 = vpop.permute.xlu0 %4020
    %4026 = vrot.lane.b32.xlu0 %v3970, 118
    %v4027 = vpop.permute.xlu0 %4026
    %4028 = vrot.lane.b32.xlu0 %v3971, 118
    %v4029 = vpop.permute.xlu0 %4028
    %4032 = vmatprep.subr.mxu0 0.0
    %4033 = vmatpush1.msra.mxu0 %v3960
    %4034 = vmatprep.subr.mxu0 0.0
    %4035 = vmatpush1.msra.mxu0 %v3961
    %4036 = vmatprep.subr.mxu0 0.0
    %4037 = vmatpush1.msra.mxu0 %v3975
    %4038 = vmatprep.subr.mxu0 0.0
    %4039 = vmatpush1.msra.mxu0 %v3977
    %4040 = vmatprep.subr.mxu0 0.0
    %4041 = vmatpush1.msra.mxu0 %v3983
    %4042 = vmatprep.subr.mxu0 0.0
    %4043 = vmatpush1.msra.mxu0 %v3985
    %4044 = vmatprep.subr.mxu0 0.0
    %4045 = vmatpush1.msra.mxu0 %v3991
    %4046 = vmatprep.subr.mxu0 0.0
    %4047 = vmatpush1.msra.mxu0 %v3993
    %4048 = vmatprep.subr.mxu0 0.0
    %4049 = vmatpush1.msra.mxu0 %v3997
    %4050 = vmatprep.subr.mxu0 0.0
    %4051 = vmatpush1.msra.mxu0 %v3999
    %4052 = vmatprep.subr.mxu0 0.0
    %4053 = vmatpush1.msra.mxu0 %v4005
    %4054 = vmatprep.subr.mxu0 0.0
    %4055 = vmatpush1.msra.mxu0 %v4007
    %4056 = vmatprep.subr.mxu0 0.0
    %4057 = vmatpush1.msra.mxu0 %v4013
    %4058 = vmatprep.subr.mxu0 0.0
    %4059 = vmatpush1.msra.mxu0 %v4015
    %4060 = vmatprep.subr.mxu0 0.0
    %4061 = vmatpush1.msra.mxu0 %v4019
    %4062 = vmatprep.subr.mxu0 0.0
    %4063 = vmatpush1.msra.mxu0 %v4021
    %4064 = vmatprep.subr.mxu0 0.0
    %4065 = vmatpush1.msra.mxu0 %v4027
    %4066 = vmatprep.subr.mxu0 0.0
    %4067 = vmatpush1.msra.mxu0 %v4029
    %4068 = vmatprep.subr.mxu0 0.0
    %4069 = vmatpush1.msra.mxu0 0.0
    %4070 = vmatprep.subr.mxu0 0.0
    %4071 = vmatpush1.msra.mxu0 0.0
    %4072 = vmatprep.subr.mxu0 0.0
    %4073 = vmatpush1.msra.mxu0 0.0
    %4074 = vmatprep.subr.mxu0 0.0
    %4075 = vmatpush1.msra.mxu0 0.0
    %4076 = vmatprep.subr.mxu0 0.0
    %4077 = vmatpush1.msra.mxu0 0.0
    %4078 = vmatprep.subr.mxu0 0.0
    %4079 = vmatpush1.msra.mxu0 0.0
    %4080 = vmatprep.subr.mxu0 0.0
    %4081 = vmatpush1.msra.mxu0 0.0
    %4082 = vmatprep.subr.mxu0 0.0
    %4083 = vmatpush1.msra.mxu0 0.0
    %4084 = vmatprep.subr.mxu0 0.0
    %4085 = vmatpush1.msra.mxu0 0.0
    %4086 = vmatprep.subr.mxu0 0.0
    %4087 = vmatpush1.msra.mxu0 0.0
    %4088 = vmatprep.subr.mxu0 0.0
    %4089 = vmatpush1.msra.mxu0 0.0
    %4090 = vmatprep.subr.mxu0 0.0
    %4091 = vmatpush1.msra.mxu0 0.0
    %4092 = vmatprep.subr.mxu0 0.0
    %4093 = vmatpush1.msra.mxu0 0.0
    %4094 = vmatprep.subr.mxu0 0.0
    %4095 = vmatpush1.msra.mxu0 0.0
    %4096 = vmatprep.mubr.f32.mxu0 %v2092
    %4097 = vmatmul.mubr.f32.gmra.mrb[0].mxu0 %v1969
    %v4098 = vpop.f32.mrb[0].mxu0
    %v4099 = vadd.f32 0.0, %v4098
    %v4100 = vpop.f32.mrb[0].mxu0
    %4101 = vmatprep.mubr.f32.mxu0 %v2095
    %4102 = vmatmul.mubr.f32.gmra.mrb[0].mxu0 %v1971
    %v4103 = vpop.f32.mrb[0].mxu0
    %v4104 = vadd.f32 0.0, %v4103
    %v4105 = vpop.f32.mrb[0].mxu0
    %4106 = vdwg.mxu0
    %v4107 = vmul.f32 %v4099, %v2175
    %v4108 = vmul.f32 %v4104, %v2180
    %v4109 = vadd.f32 %v4107, %v2187
    %v4110 = vadd.f32 %v4108, %v2192
    %v4111 = vmax.f32 %v4109, 0.0
    %v4112 = vmax.f32 %v4110, 0.0
    %v4113 = vsel %vm1168, %v4111, 0.0
    %v4114 = vsel %vm1168, %v4112, 0.0
    %4117 = vrot.lane.b32.xlu0 %v4113, 127
    %v4118 = vpop.permute.xlu0 %4117
    %4119 = vrot.lane.b32.xlu0 %v4114, 127
    %v4120 = vpop.permute.xlu0 %4119
    %v4123 = vmax.f32 %v4111, %v4118
    %v4124 = vmax.f32 %v4112, %v4120
    %4125 = vrot.lane.b32.xlu0 %v4113, 124
    %v4126 = vpop.permute.xlu0 %4125
    %4127 = vrot.lane.b32.xlu0 %v4114, 124
    %v4128 = vpop.permute.xlu0 %4127
    %v4131 = vmax.f32 %v4123, %v4126
    %v4132 = vmax.f32 %v4124, %v4128
    %4133 = vrot.lane.b32.xlu0 %v4113, 123
    %v4134 = vpop.permute.xlu0 %4133
    %4135 = vrot.lane.b32.xlu0 %v4114, 123
    %v4136 = vpop.permute.xlu0 %4135
    %v4139 = vmax.f32 %v4131, %v4134
    %v4140 = vmax.f32 %v4132, %v4136
    %v4142 = vsel %vm1168, %v4139, 0
    %v4145 = vsel %vm1168, %v4140, 0
    %4147 = vmatprep.subr.mxu0 0.0
    %4148 = vmatpush1.msra.mxu0 %v1978
    %4149 = vmatprep.subr.mxu0 0.0
    %4150 = vmatpush1.msra.mxu0 %v1979
    %4151 = vmatprep.subr.mxu0 0.0
    %4152 = vmatpush1.msra.mxu0 0.0
    %4153 = vmatprep.subr.mxu0 0.0
    %4154 = vmatpush1.msra.mxu0 0.0
    %4155 = vmatprep.subr.mxu0 0.0
    %4156 = vmatpush1.msra.mxu0 0.0
    %4157 = vmatprep.subr.mxu0 0.0
    %4158 = vmatpush1.msra.mxu0 0.0
    %4159 = vmatprep.subr.mxu0 0.0
    %4160 = vmatpush1.msra.mxu0 0.0
    %4161 = vmatprep.subr.mxu0 0.0
    %4162 = vmatpush1.msra.mxu0 0.0
    %4163 = vmatprep.subr.mxu0 0.0
    %4164 = vmatpush1.msra.mxu0 0.0
    %4165 = vmatprep.subr.mxu0 0.0
    %4166 = vmatpush1.msra.mxu0 0.0
    %4167 = vmatprep.subr.mxu0 0.0
    %4168 = vmatpush1.msra.mxu0 0.0
    %4169 = vmatprep.subr.mxu0 0.0
    %4170 = vmatpush1.msra.mxu0 0.0
    %4171 = vmatprep.subr.mxu0 0.0
    %4172 = vmatpush1.msra.mxu0 0.0
    %4173 = vmatprep.subr.mxu0 0.0
    %4174 = vmatpush1.msra.mxu0 0.0
    %4175 = vmatprep.subr.mxu0 0.0
    %4176 = vmatpush1.msra.mxu0 0.0
    %4177 = vmatprep.subr.mxu0 0.0
    %4178 = vmatpush1.msra.mxu0 0.0
    %4179 = vmatprep.subr.mxu0 0.0
    %4180 = vmatpush1.msra.mxu0 0.0
    %4181 = vmatprep.subr.mxu0 0.0
    %4182 = vmatpush1.msra.mxu0 0.0
    %4183 = vmatprep.subr.mxu0 0.0
    %4184 = vmatpush1.msra.mxu0 0.0
    %4185 = vmatprep.subr.mxu0 0.0
    %4186 = vmatpush1.msra.mxu0 0.0
    %4187 = vmatprep.subr.mxu0 0.0
    %4188 = vmatpush1.msra.mxu0 0.0
    %4189 = vmatprep.subr.mxu0 0.0
    %4190 = vmatpush1.msra.mxu0 0.0
    %4191 = vmatprep.subr.mxu0 0.0
    %4192 = vmatpush1.msra.mxu0 0.0
    %4193 = vmatprep.subr.mxu0 0.0
    %4194 = vmatpush1.msra.mxu0 0.0
    %4195 = vmatprep.subr.mxu0 0.0
    %4196 = vmatpush1.msra.mxu0 0.0
    %4197 = vmatprep.subr.mxu0 0.0
    %4198 = vmatpush1.msra.mxu0 0.0
    %4199 = vmatprep.subr.mxu0 0.0
    %4200 = vmatpush1.msra.mxu0 0.0
    %4201 = vmatprep.subr.mxu0 0.0
    %4202 = vmatpush1.msra.mxu0 0.0
    %4203 = vmatprep.subr.mxu0 0.0
    %4204 = vmatpush1.msra.mxu0 0.0
    %4205 = vmatprep.subr.mxu0 0.0
    %4206 = vmatpush1.msra.mxu0 0.0
    %4207 = vmatprep.subr.mxu0 0.0
    %4208 = vmatpush1.msra.mxu0 0.0
    %4209 = vmatprep.subr.mxu0 0.0
    %4210 = vmatpush1.msra.mxu0 0.0
    %4211 = vmatprep.mubr.f32.mxu0 0.0
    %4212 = vmatmul.mubr.f32.gmra.mrb[0].mxu0 %v4142
    %v4213 = vpop.f32.mrb[0].mxu0
    %v4214 = vadd.f32 0.0, %v4213
    %v4215 = vpop.f32.mrb[0].mxu0
    %4216 = vmatprep.mubr.f32.mxu0 0.0
    %4217 = vmatmul.mubr.f32.gmra.mrb[0].mxu0 %v4145
    %v4218 = vpop.f32.mrb[0].mxu0
    %v4219 = vadd.f32 0.0, %v4218
    %v4220 = vpop.f32.mrb[0].mxu0
    %4221 = vdwg.mxu0
    %4223 = vset.pattern.permute.xlu0 0
    %4224 = vperm.xlu0 %4223, %v4214
    %v4225 = vpop.permute.xlu0 %4224
    %4228 = vset.pattern.permute.xlu0 0
    %4229 = vperm.xlu0 %4228, %v4219
    %v4230 = vpop.permute.xlu0 %4229
    %v4232 = vmul.f32 %v4225, %v73
    %v4233 = vmul.f32 %v4230, %v74
    %v4234 = vadd.f32 %v4232, 0.0
    %v4235 = vadd.f32 %v4233, 0.0
    %4236 = vset.pattern.permute.xlu0 1
    %4237 = vperm.xlu0 %4236, %v4214
    %v4238 = vpop.permute.xlu0 %4237
    %4240 = vset.pattern.permute.xlu0 1
    %4241 = vperm.xlu0 %4240, %v4219
    %v4242 = vpop.permute.xlu0 %4241
    %v4244 = vmul.f32 %v4238, %v73
    %v4245 = vmul.f32 %v4242, %v74
    %4248 = vrot.lane.b32.xlu0 %v4244, 122
    %v4249 = vpop.permute.xlu0 %4248
    %4250 = vrot.lane.b32.xlu0 %v4245, 122
    %v4251 = vpop.permute.xlu0 %4250
    %v4254 = vadd.f32 %v4234, %v4249
    %v4255 = vadd.f32 %v4235, %v4251
    %4256 = vset.pattern.permute.xlu0 2
    %4257 = vperm.xlu0 %4256, %v4214
    %v4258 = vpop.permute.xlu0 %4257
    %4260 = vset.pattern.permute.xlu0 2
    %4261 = vperm.xlu0 %4260, %v4219
    %v4262 = vpop.permute.xlu0 %4261
    %v4264 = vmul.f32 %v4258, %v73
    %v4265 = vmul.f32 %v4262, %v74
    %4268 = vrot.lane.b32.xlu0 %v4264, 116
    %v4269 = vpop.permute.xlu0 %4268
    %4270 = vrot.lane.b32.xlu0 %v4265, 116
    %v4271 = vpop.permute.xlu0 %4270
    %v4274 = vadd.f32 %v4254, %v4269
    %v4275 = vadd.f32 %v4255, %v4271
    %4276 = vset.pattern.permute.xlu0 3
    %4277 = vperm.xlu0 %4276, %v4214
    %v4278 = vpop.permute.xlu0 %4277
    %4280 = vset.pattern.permute.xlu0 3
    %4281 = vperm.xlu0 %4280, %v4219
    %v4282 = vpop.permute.xlu0 %4281
    %v4284 = vmul.f32 %v4278, %v73
    %v4285 = vmul.f32 %v4282, %v74
    %4288 = vrot.lane.b32.xlu0 %v4284, 110
    %v4289 = vpop.permute.xlu0 %4288
    %4290 = vrot.lane.b32.xlu0 %v4285, 110
    %v4291 = vpop.permute.xlu0 %4290
    %v4294 = vadd.f32 %v4274, %v4289
    %v4295 = vadd.f32 %v4275, %v4291
    %v4296 = vsel %vm2381, %v4294, 0.0
    %v4297 = vsel %vm2381, %v4295, 0.0
    %v4298 = vadd.f32 %v4296, %v4297
    %v4299 = vrot.slane %v4298, 4
    %v4300 = vadd.f32 %v4298, %v4299
    %v4301 = vrot.slane %v4300, 2
    %v4302 = vadd.f32 %v4300, %v4301
    %v4303 = vrot.slane %v4302, 1
    %v4304 = vadd.f32 %v4302, %v4303
    %v4305 = vadd.f32 %v4304, %v75
    %v4307 = vrot.slane %v4305, 7
    %vm4309 = vcmask 1040384
    %v4310 = vsel %vm4309, %v2391, %v4307
    %vm4311 = vcmask 41984
    %4312 = vst.msk [vmem:[#allocation2] sm:$0x3] %vm4311, %v4310
    // Predicated region
    $region86: #{base_cnn_forward.1} parent=1 // pred_check
      _
    $region87: #{base_cnn_forward.1} parent=1 // pred_check_branch
      %4314 = sbr.rel (0) target = $region89
    $region88: #{base_cnn_forward.1} parent=1 // pred_region
      %s4316 = ssub.s32 32, 32
      %4317 = vsyncadd [#allocation3], %s4316
      %s4319 = sshll.u32 [#allocation2], 4
      %s4320 = int_to_ptr.vmem [resolvable:$true] %s4319
      %4322 = dma.vmem_to_hbm [thread:$0]  %s4320, 32, %s21, [#allocation3]
    $region89: #{base_cnn_forward.1} parent=1 // pred_fallthru
      _
    // Predicated region
    $region90: #{base_cnn_forward.1} parent=1 // pred_check
      _
    $region91: #{base_cnn_forward.1} parent=1 // pred_check_branch
      %4324 = sbr.rel (0) target = $region93
    $region92: #{base_cnn_forward.1} parent=1 // pred_region
      %4325 = dma.done [#allocation3], 32
    $region93: #{base_cnn_forward.1} parent=1 // pred_fallthru
      _
    %4326 = vsyncpa [#allocation3], 1

</llo_original>
